<compile_context>
chip_gen: v7x
topology: tpu7x:2x2x1
jax: 0.10.0
libtpu: 0.0.40
codegen_flags: <defaults>
</compile_context>

<pallas_src>
import jax
import jax.numpy as jnp
from jax import lax
from jax.experimental import pallas as pl
from jax.experimental.pallas import tpu as pltpu

# ----------------------------------------------------------------------------
# Static network geometry (CIFAR-style 'simple-cnn').
# ----------------------------------------------------------------------------
CIN, H_IN, W_IN = 3, 32, 32
KH = KW = 5
C1_OUT, C2_OUT = 6, 16
WO1 = W_IN - KW + 1          # 28  conv1 valid width
HP1, WP1 = 14, 14            # conv1 pooled map
HP1_PAD = 16                 # pad pooled rows per channel to a multiple of 8
WO2 = WP1 - KW + 1           # 10  conv2 valid width
HP2, WP2 = 5, 5              # conv2 pooled map
FC1_OUT, FC2_OUT = 120, 84


# ----------------------------------------------------------------------------
# The fused kernel: one grid step == one image.
# ----------------------------------------------------------------------------
def _fedcon_simplecnn_kernel(x_ref,
                             b1e_ref, b1o_ref, bias1_ref, s1e_ref, s1o_ref,
                             b2e_ref, b2o_ref, bias2_ref, s2e_ref, s2o_ref,
                             w1_ref, b1f_ref, w2_ref, b2f_ref, w3_ref, b3f_ref,
                             h_ref, y_ref):
    f32 = jnp.float32
    bf16 = jnp.bfloat16

    # ---- Stage 1: conv1(5x5, 3->6) + bias + ReLU + 2x2/stride-2 max-pool ----
    # x_ref: (Cin*H, W) = (96, 32), rows ordered c*32 + h (plain NCHW view).
    xb = x_ref[...]                                                    # (96, 32)
    xcat = jnp.concatenate(
        [xb[:, kw:kw + WO1] for kw in range(KW)], axis=0).astype(bf16)  # (480, 28)
    r_e = jnp.dot(b1e_ref[...], xcat, preferred_element_type=f32) + bias1_ref[...]
    r_o = jnp.dot(b1o_ref[...], xcat, preferred_element_type=f32) + bias1_ref[...]
    # Even/odd output rows were split at prep time -> H-pooling is a plain max.
    hp1 = jnp.maximum(jnp.maximum(r_e, 0.0), jnp.maximum(r_o, 0.0))     # (96, 28)
    # W-direction stride-2 pooling via exact 0/1 selection matmuls (f32).
    p1 = jnp.maximum(
        jnp.dot(hp1, s1e_ref[...], preferred_element_type=f32),
        jnp.dot(hp1, s1o_ref[...], preferred_element_type=f32))        # (96, 14)

    # ---- Stage 2: conv2(5x5, 6->16) + bias + ReLU + 2x2/stride-2 max-pool ----
    xcat2 = jnp.concatenate(
        [p1[:, kw:kw + WO2] for kw in range(KW)], axis=0).astype(bf16)  # (480, 10)
    r2e = jnp.dot(b2e_ref[...], xcat2, preferred_element_type=f32) + bias2_ref[...]
    r2o = jnp.dot(b2o_ref[...], xcat2, preferred_element_type=f32) + bias2_ref[...]
    hp2 = jnp.maximum(jnp.maximum(r2e, 0.0), jnp.maximum(r2o, 0.0))     # (80, 10)
    p2 = jnp.maximum(
        jnp.dot(hp2, s2e_ref[...], preferred_element_type=f32),
        jnp.dot(hp2, s2o_ref[...], preferred_element_type=f32))        # (80, 5)

    # ---- FC head: fc1 + ReLU -> fc2 + ReLU (=h) -> l3 (=y) ----
    # fc1 weights are pre-permuted to (5, 80, 120) so the pooled (80, 5) map is
    # contracted directly: lane axis (w, width 5) on the VPU in f32, row axis
    # (c*5+h, width 80) by a cross-sublane reduction.  No flatten / transpose.
    acc = jnp.zeros((C2_OUT * HP2, FC1_OUT), f32)                       # (80, 120)
    for w in range(WP2):
        acc = acc + p2[:, w:w + 1] * w1_ref[w]
    a1 = jnp.maximum(jnp.sum(acc, axis=0, keepdims=True) + b1f_ref[...], 0.0)
    a2 = jnp.maximum(
        jnp.dot(a1.astype(bf16), w2_ref[...], preferred_element_type=f32)
        + b2f_ref[...], 0.0)                                            # (1, 84) = h
    h_ref[...] = a2
    y_ref[...] = (jnp.dot(a2.astype(bf16), w3_ref[...], preferred_element_type=f32)
                  + b3f_ref[...])


# ----------------------------------------------------------------------------
# Parameters (PyTorch layout) and ONE-TIME kernel layout prep.
# ----------------------------------------------------------------------------
def init_params(key, n_classes=10):
    """Parameters in PyTorch layout: conv (O, I, KH, KW), linear (out, in)."""
    def conv_p(k, cout, cin, ksize):
        k1, k2 = jax.random.split(k)
        fan_in = cin * ksize * ksize
        w = jax.random.normal(k1, (cout, cin, ksize, ksize), jnp.float32)
        w = w * (2.0 / fan_in) ** 0.5
        b = jax.random.normal(k2, (cout,), jnp.float32) * 0.01
        return w, b

    def fc_p(k, out_f, in_f):
        k1, k2 = jax.random.split(k)
        w = jax.random.normal(k1, (out_f, in_f), jnp.float32) * (2.0 / in_f) ** 0.5
        b = jax.random.normal(k2, (out_f,), jnp.float32) * 0.01
        return w, b

    ks = jax.random.split(key, 5)
    return dict(
        conv1=conv_p(ks[0], C1_OUT, CIN, KH),
        conv2=conv_p(ks[1], C2_OUT, C1_OUT, KH),
        fc1=fc_p(ks[2], FC1_OUT, C2_OUT * HP2 * WP2),
        fc2=fc_p(ks[3], FC2_OUT, FC1_OUT),
        l3=fc_p(ks[4], n_classes, FC2_OUT),
    )


def _conv_band(w, h_in, hp, hp_pad, parity):
    """Banded matrix B with B[(cout*hp_pad+i), kw*(Cin*h_in)+c*h_in+h] =
    w[cout, c, h-(2i+parity), kw] (0 where the kernel row is out of range or the
    pooled row i is padding).  (B @ X_cat) computes every even(/odd) output row
    of the valid 5x5 conv for the whole image in one matmul."""
    cout, cin, kh_sz, kw_sz = w.shape
    i_idx = jnp.arange(hp_pad)
    h_idx = jnp.arange(h_in)
    kh = h_idx[None, :] - (2 * i_idx[:, None] + parity)            # (hp_pad, h_in)
    valid = (kh >= 0) & (kh < kh_sz) & (i_idx[:, None] < hp)
    kh_c = jnp.clip(kh, 0, kh_sz - 1)
    wg = w[:, :, kh_c, :]                           # (cout, cin, hp_pad, h_in, kw)
    wg = jnp.where(valid[None, None, :, :, None], wg, 0.0)
    b = jnp.transpose(wg, (0, 2, 4, 1, 3))          # (cout, hp_pad, kw, cin, h_in)
    return b.reshape(cout * hp_pad, kw_sz * cin * h_in)


def _pool_select(wo):
    """Exact 0/1 (wo, wo//2) matrices picking even / odd columns (f32)."""
    wp = wo // 2
    w_idx = jnp.arange(wo)[:, None]
    j_idx = jnp.arange(wp)[None, :]
    se = (w_idx == 2 * j_idx).astype(jnp.float32)
    so = (w_idx == 2 * j_idx + 1).astype(jnp.float32)
    return se, so


def prepare_kernel_params(params):
    """Done ONCE, outside the hot path."""
    w1, b1 = params["conv1"]
    w2, b2 = params["conv2"]
    fw1, fb1 = params["fc1"]
    fw2, fb2 = params["fc2"]
    fw3, fb3 = params["l3"]

    b1e = _conv_band(w1, H_IN, HP1, HP1_PAD, 0).astype(jnp.bfloat16)    # (96, 480)
    b1o = _conv_band(w1, H_IN, HP1, HP1_PAD, 1).astype(jnp.bfloat16)
    b2e = _conv_band(w2, HP1_PAD, HP2, HP2, 0).astype(jnp.bfloat16)     # (80, 480)
    b2o = _conv_band(w2, HP1_PAD, HP2, HP2, 1).astype(jnp.bfloat16)
    s1e, s1o = _pool_select(WO1)                                        # (28, 14)
    s2e, s2o = _pool_select(WO2)                                        # (10, 5)
    bias1 = jnp.repeat(b1, HP1_PAD).reshape(-1, 1).astype(jnp.float32)  # (96, 1)
    bias2 = jnp.repeat(b2, HP2).reshape(-1, 1).astype(jnp.float32)      # (80, 1)
    # fc1 weights permuted so index order matches the pooled map (rows=c*5+h,
    # lanes=w); equivalent to PyTorch's CHW flatten of the (16,5,5) feature map.
    w1s = fw1.T.reshape(C2_OUT * HP2, WP2, FC1_OUT)
    w1s = jnp.transpose(w1s, (1, 0, 2)).astype(jnp.float32)             # (5, 80, 120)
    return dict(
        b1e=b1e, b1o=b1o, bias1=bias1, s1e=s1e, s1o=s1o,
        b2e=b2e, b2o=b2o, bias2=bias2, s2e=s2e, s2o=s2o,
        w1s=w1s, b1f=fb1.reshape(1, -1).astype(jnp.float32),
        w2t=fw2.T.astype(jnp.bfloat16), b2f=fb2.reshape(1, -1).astype(jnp.float32),
        w3t=fw3.T.astype(jnp.bfloat16), b3f=fb3.reshape(1, -1).astype(jnp.float32),
    )


# ----------------------------------------------------------------------------
# ModelFedCon_noheader forward: returns (h, h, y).
# ----------------------------------------------------------------------------
def forward(kparams, x_nchw):
    N = x_nchw.shape[0]
    assert x_nchw.shape[1:] == (CIN, H_IN, W_IN)
    n_classes = kparams["w3t"].shape[1]
    # Free view (no transpose/copy): NCHW -> (N, C*H, W); lane dim stays W=32.
    xb = x_nchw.reshape(N, CIN * H_IN, W_IN)

    def w2d(arr):
        return pl.BlockSpec(arr.shape, lambda n: (0, 0))

    def w3d(arr):
        return pl.BlockSpec(arr.shape, lambda n: (0, 0, 0))

    h3, y3 = pl.pallas_call(
        _fedcon_simplecnn_kernel,
        out_shape=(jax.ShapeDtypeStruct((N, 1, FC2_OUT), jnp.float32),
                   jax.ShapeDtypeStruct((N, 1, n_classes), jnp.float32)),
        grid=(N,),
        in_specs=[
            pl.BlockSpec((None, CIN * H_IN, W_IN), lambda n: (n, 0, 0)),
            w2d(kparams["b1e"]), w2d(kparams["b1o"]), w2d(kparams["bias1"]),
            w2d(kparams["s1e"]), w2d(kparams["s1o"]),
            w2d(kparams["b2e"]), w2d(kparams["b2o"]), w2d(kparams["bias2"]),
            w2d(kparams["s2e"]), w2d(kparams["s2o"]),
            w3d(kparams["w1s"]), w2d(kparams["b1f"]),
            w2d(kparams["w2t"]), w2d(kparams["b2f"]),
            w2d(kparams["w3t"]), w2d(kparams["b3f"]),
        ],
        out_specs=(pl.BlockSpec((None, 1, FC2_OUT), lambda n: (n, 0, 0)),
                   pl.BlockSpec((None, 1, n_classes), lambda n: (n, 0, 0))),
        compiler_params=pltpu.CompilerParams(
            dimension_semantics=("parallel",)),
    )(xb,
      kparams["b1e"], kparams["b1o"], kparams["bias1"],
      kparams["s1e"], kparams["s1o"],
      kparams["b2e"], kparams["b2o"], kparams["bias2"],
      kparams["s2e"], kparams["s2o"],
      kparams["w1s"], kparams["b1f"],
      kparams["w2t"], kparams["b2f"],
      kparams["w3t"], kparams["b3f"])

    h = h3.reshape(N, FC2_OUT)
    y = y3.reshape(N, n_classes)
    # PyTorch's h.squeeze() is a no-op for batch > 1; keep (N, 84).
    return h, h, y


# ----------------------------------------------------------------------------
# Pure-JAX f32 reference for the correctness sanity check.
# ----------------------------------------------------------------------------
def reference_forward(params, x_nchw):
    hp = lax.Precision.HIGHEST

    def conv(x, w, b):
        y = lax.conv_general_dilated(
            x, w, window_strides=(1, 1), padding="VALID",
            dimension_numbers=("NCHW", "OIHW", "NCHW"), precision=hp)
        return jax.nn.relu(y + b[None, :, None, None])

    def pool(x):
        return lax.reduce_window(x, -jnp.inf, lax.max,
                                 (1, 1, 2, 2), (1, 1, 2, 2), "VALID")

    x = pool(conv(x_nchw, *params["conv1"]))
    x = pool(conv(x, *params["conv2"]))
    h = x.reshape(x.shape[0], -1)
    h = jax.nn.relu(jnp.dot(h, params["fc1"][0].T, precision=hp) + params["fc1"][1])
    h = jax.nn.relu(jnp.dot(h, params["fc2"][0].T, precision=hp) + params["fc2"][1])
    y = jnp.dot(h, params["l3"][0].T, precision=hp) + params["l3"][1]
    return h, h, y


if __name__ == "__main__":
    key = jax.random.PRNGKey(0)
    k_params, k_x = jax.random.split(key)
    n_classes = 10
    params = init_params(k_params, n_classes=n_classes)
    kparams = prepare_kernel_params(params)      # layout prep done once, outside jit

    # 'simple-cnn' base model expects CIFAR-style input: (N, 3, 32, 32).
    x = jax.random.normal(k_x, (2, 3, 32, 32), jnp.float32)

    fwd = jax.jit(forward)
    h1, h2, y = jax.block_until_ready(fwd(kparams, x))
    assert h1.shape == (2, FC2_OUT) and h2.shape == (2, FC2_OUT)
    assert y.shape == (2, n_classes)
    assert jnp.all(jnp.isfinite(h1)) and jnp.all(jnp.isfinite(y))

    rh, _, ry = reference_forward(params, x)
    assert jnp.allclose(h1, rh, rtol=5e-2, atol=5e-2), (h1, rh)
    assert jnp.allclose(y, ry, rtol=5e-2, atol=5e-2), (y, ry)

    print("KERNEL_OK")
</pallas_src>

<mosaic_0001>
module attributes {stable_mosaic.version = 11 : i64} {
  func.func @_fedcon_simplecnn_kernel(%arg0: i32, %arg1: memref<1x96x32xf32, #tpu.memory_space<vmem>>, %arg2: memref<96x480xbf16, #tpu.memory_space<vmem>>, %arg3: memref<96x480xbf16, #tpu.memory_space<vmem>>, %arg4: memref<96x1xf32, #tpu.memory_space<vmem>>, %arg5: memref<28x14xf32, #tpu.memory_space<vmem>>, %arg6: memref<28x14xf32, #tpu.memory_space<vmem>>, %arg7: memref<80x480xbf16, #tpu.memory_space<vmem>>, %arg8: memref<80x480xbf16, #tpu.memory_space<vmem>>, %arg9: memref<80x1xf32, #tpu.memory_space<vmem>>, %arg10: memref<10x5xf32, #tpu.memory_space<vmem>>, %arg11: memref<10x5xf32, #tpu.memory_space<vmem>>, %arg12: memref<5x80x120xf32, #tpu.memory_space<vmem>>, %arg13: memref<1x120xf32, #tpu.memory_space<vmem>>, %arg14: memref<120x84xbf16, #tpu.memory_space<vmem>>, %arg15: memref<1x84xf32, #tpu.memory_space<vmem>>, %arg16: memref<84x10xbf16, #tpu.memory_space<vmem>>, %arg17: memref<1x10xf32, #tpu.memory_space<vmem>>, %arg18: memref<1x1x84xf32, #tpu.memory_space<vmem>>, %arg19: memref<1x1x10xf32, #tpu.memory_space<vmem>>) attributes {dimension_semantics = [#tpu.dimension_semantics<parallel>], iteration_bounds = array<i64: 2>, scalar_prefetch = 0 : i64, scratch_operands = 0 : i64, tpu.core_type = #tpu.core_type<tc>, window_params = [{transform_indices = @transform_0, window_bounds = array<i64: 1, 96, 32>}, {pipeline_mode = #tpu.pipeline_mode<synchronous>, transform_indices = @transform_1, window_bounds = array<i64: 96, 480>}, {pipeline_mode = #tpu.pipeline_mode<synchronous>, transform_indices = @transform_2, window_bounds = array<i64: 96, 480>}, {pipeline_mode = #tpu.pipeline_mode<synchronous>, transform_indices = @transform_3, window_bounds = array<i64: 96, 1>}, {pipeline_mode = #tpu.pipeline_mode<synchronous>, transform_indices = @transform_4, window_bounds = array<i64: 28, 14>}, {pipeline_mode = #tpu.pipeline_mode<synchronous>, transform_indices = @transform_5, window_bounds = array<i64: 28, 14>}, {pipeline_mode = #tpu.pipeline_mode<synchronous>, transform_indices = @transform_6, window_bounds = array<i64: 80, 480>}, {pipeline_mode = #tpu.pipeline_mode<synchronous>, transform_indices = @transform_7, window_bounds = array<i64: 80, 480>}, {pipeline_mode = #tpu.pipeline_mode<synchronous>, transform_indices = @transform_8, window_bounds = array<i64: 80, 1>}, {pipeline_mode = #tpu.pipeline_mode<synchronous>, transform_indices = @transform_9, window_bounds = array<i64: 10, 5>}, {pipeline_mode = #tpu.pipeline_mode<synchronous>, transform_indices = @transform_10, window_bounds = array<i64: 10, 5>}, {pipeline_mode = #tpu.pipeline_mode<synchronous>, transform_indices = @transform_11, window_bounds = array<i64: 5, 80, 120>}, {pipeline_mode = #tpu.pipeline_mode<synchronous>, transform_indices = @transform_12, window_bounds = array<i64: 1, 120>}, {pipeline_mode = #tpu.pipeline_mode<synchronous>, transform_indices = @transform_13, window_bounds = array<i64: 120, 84>}, {pipeline_mode = #tpu.pipeline_mode<synchronous>, transform_indices = @transform_14, window_bounds = array<i64: 1, 84>}, {pipeline_mode = #tpu.pipeline_mode<synchronous>, transform_indices = @transform_15, window_bounds = array<i64: 84, 10>}, {pipeline_mode = #tpu.pipeline_mode<synchronous>, transform_indices = @transform_16, window_bounds = array<i64: 1, 10>}, {transform_indices = @transform_17, window_bounds = array<i64: 1, 1, 84>}, {transform_indices = @transform_18, window_bounds = array<i64: 1, 1, 10>}]} {
    %c0 = arith.constant 0 : index
    %c0_0 = arith.constant 0 : index
    %c0_1 = arith.constant 0 : index
    %0 = vector.load %arg1[%c0, %c0_0, %c0_1] : memref<1x96x32xf32, #tpu.memory_space<vmem>>, vector<1x96x32xf32>
    %1 = vector.shape_cast %0 : vector<1x96x32xf32> to vector<96x32xf32>
    %2 = vector.extract_strided_slice %1 {offsets = [0, 0], sizes = [96, 28], strides = [1, 1]} : vector<96x32xf32> to vector<96x28xf32>
    %3 = vector.extract_strided_slice %1 {offsets = [0, 1], sizes = [96, 28], strides = [1, 1]} : vector<96x32xf32> to vector<96x28xf32>
    %4 = vector.extract_strided_slice %1 {offsets = [0, 2], sizes = [96, 28], strides = [1, 1]} : vector<96x32xf32> to vector<96x28xf32>
    %5 = vector.extract_strided_slice %1 {offsets = [0, 3], sizes = [96, 28], strides = [1, 1]} : vector<96x32xf32> to vector<96x28xf32>
    %6 = vector.extract_strided_slice %1 {offsets = [0, 4], sizes = [96, 28], strides = [1, 1]} : vector<96x32xf32> to vector<96x28xf32>
    %7 = tpu.concatenate %2, %3, %4, %5, %6 in 0 : vector<96x28xf32>, vector<96x28xf32>, vector<96x28xf32>, vector<96x28xf32>, vector<96x28xf32> -> vector<480x28xf32>
    %8 = arith.truncf %7 : vector<480x28xf32> to vector<480x28xbf16>
    %c0_2 = arith.constant 0 : index
    %c0_3 = arith.constant 0 : index
    %9 = vector.load %arg2[%c0_2, %c0_3] : memref<96x480xbf16, #tpu.memory_space<vmem>>, vector<96x480xbf16>
    %cst = arith.constant dense<0.000000e+00> : vector<96x28xf32>
    %10 = tpu.matmul %9, %8, %cst {dimension_numbers = #tpu.dot_dimension_numbers<[1], [0], [0], [1], [0, 0, 1, 1], [], []>} : vector<96x480xbf16>, vector<480x28xbf16>, vector<96x28xf32> -> vector<96x28xf32>
    %c0_4 = arith.constant 0 : index
    %c0_5 = arith.constant 0 : index
    %11 = vector.load %arg4[%c0_4, %c0_5] : memref<96x1xf32, #tpu.memory_space<vmem>>, vector<96x1xf32>
    %12 = vector.broadcast %11 : vector<96x1xf32> to vector<96x28xf32>
    %13 = arith.addf %10, %12 : vector<96x28xf32>
    %c0_6 = arith.constant 0 : index
    %c0_7 = arith.constant 0 : index
    %14 = vector.load %arg3[%c0_6, %c0_7] : memref<96x480xbf16, #tpu.memory_space<vmem>>, vector<96x480xbf16>
    %cst_8 = arith.constant dense<0.000000e+00> : vector<96x28xf32>
    %15 = tpu.matmul %14, %8, %cst_8 {dimension_numbers = #tpu.dot_dimension_numbers<[1], [0], [0], [1], [0, 0, 1, 1], [], []>} : vector<96x480xbf16>, vector<480x28xbf16>, vector<96x28xf32> -> vector<96x28xf32>
    %c0_9 = arith.constant 0 : index
    %c0_10 = arith.constant 0 : index
    %16 = vector.load %arg4[%c0_9, %c0_10] : memref<96x1xf32, #tpu.memory_space<vmem>>, vector<96x1xf32>
    %17 = vector.broadcast %16 : vector<96x1xf32> to vector<96x28xf32>
    %18 = arith.addf %15, %17 : vector<96x28xf32>
    %cst_11 = arith.constant 0.000000e+00 : f32
    %19 = vector.broadcast %cst_11 : f32 to vector<96x28xf32>
    %20 = arith.maximumf %13, %19 : vector<96x28xf32>
    %cst_12 = arith.constant 0.000000e+00 : f32
    %21 = vector.broadcast %cst_12 : f32 to vector<96x28xf32>
    %22 = arith.maximumf %18, %21 : vector<96x28xf32>
    %23 = arith.maximumf %20, %22 : vector<96x28xf32>
    %c0_13 = arith.constant 0 : index
    %c0_14 = arith.constant 0 : index
    %24 = vector.load %arg5[%c0_13, %c0_14] : memref<28x14xf32, #tpu.memory_space<vmem>>, vector<28x14xf32>
    %cst_15 = arith.constant dense<0.000000e+00> : vector<96x14xf32>
    %25 = tpu.matmul %23, %24, %cst_15 {dimension_numbers = #tpu.dot_dimension_numbers<[1], [0], [0], [1], [0, 0, 1, 1], [], []>} : vector<96x28xf32>, vector<28x14xf32>, vector<96x14xf32> -> vector<96x14xf32>
    %c0_16 = arith.constant 0 : index
    %c0_17 = arith.constant 0 : index
    %26 = vector.load %arg6[%c0_16, %c0_17] : memref<28x14xf32, #tpu.memory_space<vmem>>, vector<28x14xf32>
    %cst_18 = arith.constant dense<0.000000e+00> : vector<96x14xf32>
    %27 = tpu.matmul %23, %26, %cst_18 {dimension_numbers = #tpu.dot_dimension_numbers<[1], [0], [0], [1], [0, 0, 1, 1], [], []>} : vector<96x28xf32>, vector<28x14xf32>, vector<96x14xf32> -> vector<96x14xf32>
    %28 = arith.maximumf %25, %27 : vector<96x14xf32>
    %29 = vector.extract_strided_slice %28 {offsets = [0, 0], sizes = [96, 10], strides = [1, 1]} : vector<96x14xf32> to vector<96x10xf32>
    %30 = vector.extract_strided_slice %28 {offsets = [0, 1], sizes = [96, 10], strides = [1, 1]} : vector<96x14xf32> to vector<96x10xf32>
    %31 = vector.extract_strided_slice %28 {offsets = [0, 2], sizes = [96, 10], strides = [1, 1]} : vector<96x14xf32> to vector<96x10xf32>
    %32 = vector.extract_strided_slice %28 {offsets = [0, 3], sizes = [96, 10], strides = [1, 1]} : vector<96x14xf32> to vector<96x10xf32>
    %33 = vector.extract_strided_slice %28 {offsets = [0, 4], sizes = [96, 10], strides = [1, 1]} : vector<96x14xf32> to vector<96x10xf32>
    %34 = tpu.concatenate %29, %30, %31, %32, %33 in 0 : vector<96x10xf32>, vector<96x10xf32>, vector<96x10xf32>, vector<96x10xf32>, vector<96x10xf32> -> vector<480x10xf32>
    %35 = arith.truncf %34 : vector<480x10xf32> to vector<480x10xbf16>
    %c0_19 = arith.constant 0 : index
    %c0_20 = arith.constant 0 : index
    %36 = vector.load %arg7[%c0_19, %c0_20] : memref<80x480xbf16, #tpu.memory_space<vmem>>, vector<80x480xbf16>
    %cst_21 = arith.constant dense<0.000000e+00> : vector<80x10xf32>
    %37 = tpu.matmul %36, %35, %cst_21 {dimension_numbers = #tpu.dot_dimension_numbers<[1], [0], [0], [1], [0, 0, 1, 1], [], []>} : vector<80x480xbf16>, vector<480x10xbf16>, vector<80x10xf32> -> vector<80x10xf32>
    %c0_22 = arith.constant 0 : index
    %c0_23 = arith.constant 0 : index
    %38 = vector.load %arg9[%c0_22, %c0_23] : memref<80x1xf32, #tpu.memory_space<vmem>>, vector<80x1xf32>
    %39 = vector.broadcast %38 : vector<80x1xf32> to vector<80x10xf32>
    %40 = arith.addf %37, %39 : vector<80x10xf32>
    %c0_24 = arith.constant 0 : index
    %c0_25 = arith.constant 0 : index
    %41 = vector.load %arg8[%c0_24, %c0_25] : memref<80x480xbf16, #tpu.memory_space<vmem>>, vector<80x480xbf16>
    %cst_26 = arith.constant dense<0.000000e+00> : vector<80x10xf32>
    %42 = tpu.matmul %41, %35, %cst_26 {dimension_numbers = #tpu.dot_dimension_numbers<[1], [0], [0], [1], [0, 0, 1, 1], [], []>} : vector<80x480xbf16>, vector<480x10xbf16>, vector<80x10xf32> -> vector<80x10xf32>
    %c0_27 = arith.constant 0 : index
    %c0_28 = arith.constant 0 : index
    %43 = vector.load %arg9[%c0_27, %c0_28] : memref<80x1xf32, #tpu.memory_space<vmem>>, vector<80x1xf32>
    %44 = vector.broadcast %43 : vector<80x1xf32> to vector<80x10xf32>
    %45 = arith.addf %42, %44 : vector<80x10xf32>
    %cst_29 = arith.constant 0.000000e+00 : f32
    %46 = vector.broadcast %cst_29 : f32 to vector<80x10xf32>
    %47 = arith.maximumf %40, %46 : vector<80x10xf32>
    %cst_30 = arith.constant 0.000000e+00 : f32
    %48 = vector.broadcast %cst_30 : f32 to vector<80x10xf32>
    %49 = arith.maximumf %45, %48 : vector<80x10xf32>
    %50 = arith.maximumf %47, %49 : vector<80x10xf32>
    %c0_31 = arith.constant 0 : index
    %c0_32 = arith.constant 0 : index
    %51 = vector.load %arg10[%c0_31, %c0_32] : memref<10x5xf32, #tpu.memory_space<vmem>>, vector<10x5xf32>
    %cst_33 = arith.constant dense<0.000000e+00> : vector<80x5xf32>
    %52 = tpu.matmul %50, %51, %cst_33 {dimension_numbers = #tpu.dot_dimension_numbers<[1], [0], [0], [1], [0, 0, 1, 1], [], []>} : vector<80x10xf32>, vector<10x5xf32>, vector<80x5xf32> -> vector<80x5xf32>
    %c0_34 = arith.constant 0 : index
    %c0_35 = arith.constant 0 : index
    %53 = vector.load %arg11[%c0_34, %c0_35] : memref<10x5xf32, #tpu.memory_space<vmem>>, vector<10x5xf32>
    %cst_36 = arith.constant dense<0.000000e+00> : vector<80x5xf32>
    %54 = tpu.matmul %50, %53, %cst_36 {dimension_numbers = #tpu.dot_dimension_numbers<[1], [0], [0], [1], [0, 0, 1, 1], [], []>} : vector<80x10xf32>, vector<10x5xf32>, vector<80x5xf32> -> vector<80x5xf32>
    %55 = arith.maximumf %52, %54 : vector<80x5xf32>
    %cst_37 = arith.constant 0.000000e+00 : f32
    %56 = vector.broadcast %cst_37 : f32 to vector<80x120xf32>
    %57 = vector.extract_strided_slice %55 {offsets = [0, 0], sizes = [80, 1], strides = [1, 1]} : vector<80x5xf32> to vector<80x1xf32>
    %c0_38 = arith.constant 0 : index
    %c0_39 = arith.constant 0 : index
    %c0_40 = arith.constant 0 : index
    %58 = vector.load %arg12[%c0_38, %c0_39, %c0_40] : memref<5x80x120xf32, #tpu.memory_space<vmem>>, vector<1x80x120xf32>
    %59 = vector.shape_cast %58 : vector<1x80x120xf32> to vector<80x120xf32>
    %60 = vector.broadcast %57 : vector<80x1xf32> to vector<80x120xf32>
    %61 = arith.mulf %60, %59 : vector<80x120xf32>
    %62 = arith.addf %56, %61 : vector<80x120xf32>
    %63 = vector.extract_strided_slice %55 {offsets = [0, 1], sizes = [80, 1], strides = [1, 1]} : vector<80x5xf32> to vector<80x1xf32>
    %c1 = arith.constant 1 : index
    %c0_41 = arith.constant 0 : index
    %c0_42 = arith.constant 0 : index
    %64 = vector.load %arg12[%c1, %c0_41, %c0_42] : memref<5x80x120xf32, #tpu.memory_space<vmem>>, vector<1x80x120xf32>
    %65 = vector.shape_cast %64 : vector<1x80x120xf32> to vector<80x120xf32>
    %66 = vector.broadcast %63 : vector<80x1xf32> to vector<80x120xf32>
    %67 = arith.mulf %66, %65 : vector<80x120xf32>
    %68 = arith.addf %62, %67 : vector<80x120xf32>
    %69 = vector.extract_strided_slice %55 {offsets = [0, 2], sizes = [80, 1], strides = [1, 1]} : vector<80x5xf32> to vector<80x1xf32>
    %c2 = arith.constant 2 : index
    %c0_43 = arith.constant 0 : index
    %c0_44 = arith.constant 0 : index
    %70 = vector.load %arg12[%c2, %c0_43, %c0_44] : memref<5x80x120xf32, #tpu.memory_space<vmem>>, vector<1x80x120xf32>
    %71 = vector.shape_cast %70 : vector<1x80x120xf32> to vector<80x120xf32>
    %72 = vector.broadcast %69 : vector<80x1xf32> to vector<80x120xf32>
    %73 = arith.mulf %72, %71 : vector<80x120xf32>
    %74 = arith.addf %68, %73 : vector<80x120xf32>
    %75 = vector.extract_strided_slice %55 {offsets = [0, 3], sizes = [80, 1], strides = [1, 1]} : vector<80x5xf32> to vector<80x1xf32>
    %c3 = arith.constant 3 : index
    %c0_45 = arith.constant 0 : index
    %c0_46 = arith.constant 0 : index
    %76 = vector.load %arg12[%c3, %c0_45, %c0_46] : memref<5x80x120xf32, #tpu.memory_space<vmem>>, vector<1x80x120xf32>
    %77 = vector.shape_cast %76 : vector<1x80x120xf32> to vector<80x120xf32>
    %78 = vector.broadcast %75 : vector<80x1xf32> to vector<80x120xf32>
    %79 = arith.mulf %78, %77 : vector<80x120xf32>
    %80 = arith.addf %74, %79 : vector<80x120xf32>
    %81 = vector.extract_strided_slice %55 {offsets = [0, 4], sizes = [80, 1], strides = [1, 1]} : vector<80x5xf32> to vector<80x1xf32>
    %c4 = arith.constant 4 : index
    %c0_47 = arith.constant 0 : index
    %c0_48 = arith.constant 0 : index
    %82 = vector.load %arg12[%c4, %c0_47, %c0_48] : memref<5x80x120xf32, #tpu.memory_space<vmem>>, vector<1x80x120xf32>
    %83 = vector.shape_cast %82 : vector<1x80x120xf32> to vector<80x120xf32>
    %84 = vector.broadcast %81 : vector<80x1xf32> to vector<80x120xf32>
    %85 = arith.mulf %84, %83 : vector<80x120xf32>
    %86 = arith.addf %80, %85 : vector<80x120xf32>
    %cst_49 = arith.constant dense<0.000000e+00> : vector<120xf32>
    %87 = vector.multi_reduction <add>, %86, %cst_49 [0] : vector<80x120xf32> to vector<120xf32>
    %88 = vector.shape_cast %87 : vector<120xf32> to vector<1x120xf32>
    %c0_50 = arith.constant 0 : index
    %c0_51 = arith.constant 0 : index
    %89 = vector.load %arg13[%c0_50, %c0_51] : memref<1x120xf32, #tpu.memory_space<vmem>>, vector<1x120xf32>
    %90 = arith.addf %88, %89 : vector<1x120xf32>
    %cst_52 = arith.constant 0.000000e+00 : f32
    %91 = vector.broadcast %cst_52 : f32 to vector<1x120xf32>
    %92 = arith.maximumf %90, %91 : vector<1x120xf32>
    %93 = arith.truncf %92 : vector<1x120xf32> to vector<1x120xbf16>
    %c0_53 = arith.constant 0 : index
    %c0_54 = arith.constant 0 : index
    %94 = vector.load %arg14[%c0_53, %c0_54] : memref<120x84xbf16, #tpu.memory_space<vmem>>, vector<120x84xbf16>
    %cst_55 = arith.constant dense<0.000000e+00> : vector<1x84xf32>
    %95 = tpu.matmul %93, %94, %cst_55 {dimension_numbers = #tpu.dot_dimension_numbers<[1], [0], [0], [1], [0, 0, 1, 1], [], []>} : vector<1x120xbf16>, vector<120x84xbf16>, vector<1x84xf32> -> vector<1x84xf32>
    %c0_56 = arith.constant 0 : index
    %c0_57 = arith.constant 0 : index
    %96 = vector.load %arg15[%c0_56, %c0_57] : memref<1x84xf32, #tpu.memory_space<vmem>>, vector<1x84xf32>
    %97 = arith.addf %95, %96 : vector<1x84xf32>
    %cst_58 = arith.constant 0.000000e+00 : f32
    %98 = vector.broadcast %cst_58 : f32 to vector<1x84xf32>
    %99 = arith.maximumf %97, %98 : vector<1x84xf32>
    %c0_59 = arith.constant 0 : index
    %c0_60 = arith.constant 0 : index
    %c0_61 = arith.constant 0 : index
    %100 = vector.load %arg18[%c0_59, %c0_60, %c0_61] : memref<1x1x84xf32, #tpu.memory_space<vmem>>, vector<1x1x84xf32>
    %101 = vector.shape_cast %100 : vector<1x1x84xf32> to vector<1x84xf32>
    %102 = vector.shape_cast %99 : vector<1x84xf32> to vector<1x1x84xf32>
    tpu.vector_store %arg18[%c0_59, %c0_60, %c0_61], %102 {strides = array<i32>} : memref<1x1x84xf32, #tpu.memory_space<vmem>>, vector<1x1x84xf32>,
    %103 = arith.truncf %99 : vector<1x84xf32> to vector<1x84xbf16>
    %c0_62 = arith.constant 0 : index
    %c0_63 = arith.constant 0 : index
    %104 = vector.load %arg16[%c0_62, %c0_63] : memref<84x10xbf16, #tpu.memory_space<vmem>>, vector<84x10xbf16>
    %cst_64 = arith.constant dense<0.000000e+00> : vector<1x10xf32>
    %105 = tpu.matmul %103, %104, %cst_64 {dimension_numbers = #tpu.dot_dimension_numbers<[1], [0], [0], [1], [0, 0, 1, 1], [], []>} : vector<1x84xbf16>, vector<84x10xbf16>, vector<1x10xf32> -> vector<1x10xf32>
    %c0_65 = arith.constant 0 : index
    %c0_66 = arith.constant 0 : index
    %106 = vector.load %arg17[%c0_65, %c0_66] : memref<1x10xf32, #tpu.memory_space<vmem>>, vector<1x10xf32>
    %107 = arith.addf %105, %106 : vector<1x10xf32>
    %c0_67 = arith.constant 0 : index
    %c0_68 = arith.constant 0 : index
    %c0_69 = arith.constant 0 : index
    %108 = vector.load %arg19[%c0_67, %c0_68, %c0_69] : memref<1x1x10xf32, #tpu.memory_space<vmem>>, vector<1x1x10xf32>
    %109 = vector.shape_cast %108 : vector<1x1x10xf32> to vector<1x10xf32>
    %110 = vector.shape_cast %107 : vector<1x10xf32> to vector<1x1x10xf32>
    tpu.vector_store %arg19[%c0_67, %c0_68, %c0_69], %110 {strides = array<i32>} : memref<1x1x10xf32, #tpu.memory_space<vmem>>, vector<1x1x10xf32>,
    return
  }
  func.func @transform_0(%arg0: i32) -> (i32, i32, i32) {
    %c0_i32 = arith.constant 0 : i32
    %c0_i32_0 = arith.constant 0 : i32
    %c0_i32_1 = arith.constant 0 : i32
    return %arg0, %c0_i32, %c0_i32_0 : i32, i32, i32
  }
  func.func @transform_1(%arg0: i32) -> (i32, i32) {
    %c0_i32 = arith.constant 0 : i32
    %c0_i32_0 = arith.constant 0 : i32
    %c0_i32_1 = arith.constant 0 : i32
    return %c0_i32, %c0_i32_0 : i32, i32
  }
  func.func @transform_2(%arg0: i32) -> (i32, i32) {
    %c0_i32 = arith.constant 0 : i32
    %c0_i32_0 = arith.constant 0 : i32
    %c0_i32_1 = arith.constant 0 : i32
    return %c0_i32, %c0_i32_0 : i32, i32
  }
  func.func @transform_3(%arg0: i32) -> (i32, i32) {
    %c0_i32 = arith.constant 0 : i32
    %c0_i32_0 = arith.constant 0 : i32
    %c0_i32_1 = arith.constant 0 : i32
    return %c0_i32, %c0_i32_0 : i32, i32
  }
  func.func @transform_4(%arg0: i32) -> (i32, i32) {
    %c0_i32 = arith.constant 0 : i32
    %c0_i32_0 = arith.constant 0 : i32
    %c0_i32_1 = arith.constant 0 : i32
    return %c0_i32, %c0_i32_0 : i32, i32
  }
  func.func @transform_5(%arg0: i32) -> (i32, i32) {
    %c0_i32 = arith.constant 0 : i32
    %c0_i32_0 = arith.constant 0 : i32
    %c0_i32_1 = arith.constant 0 : i32
    return %c0_i32, %c0_i32_0 : i32, i32
  }
  func.func @transform_6(%arg0: i32) -> (i32, i32) {
    %c0_i32 = arith.constant 0 : i32
    %c0_i32_0 = arith.constant 0 : i32
    %c0_i32_1 = arith.constant 0 : i32
    return %c0_i32, %c0_i32_0 : i32, i32
  }
  func.func @transform_7(%arg0: i32) -> (i32, i32) {
    %c0_i32 = arith.constant 0 : i32
    %c0_i32_0 = arith.constant 0 : i32
    %c0_i32_1 = arith.constant 0 : i32
    return %c0_i32, %c0_i32_0 : i32, i32
  }
  func.func @transform_8(%arg0: i32) -> (i32, i32) {
    %c0_i32 = arith.constant 0 : i32
    %c0_i32_0 = arith.constant 0 : i32
    %c0_i32_1 = arith.constant 0 : i32
    return %c0_i32, %c0_i32_0 : i32, i32
  }
  func.func @transform_9(%arg0: i32) -> (i32, i32) {
    %c0_i32 = arith.constant 0 : i32
    %c0_i32_0 = arith.constant 0 : i32
    %c0_i32_1 = arith.constant 0 : i32
    return %c0_i32, %c0_i32_0 : i32, i32
  }
  func.func @transform_10(%arg0: i32) -> (i32, i32) {
    %c0_i32 = arith.constant 0 : i32
    %c0_i32_0 = arith.constant 0 : i32
    %c0_i32_1 = arith.constant 0 : i32
    return %c0_i32, %c0_i32_0 : i32, i32
  }
  func.func @transform_11(%arg0: i32) -> (i32, i32, i32) {
    %c0_i32 = arith.constant 0 : i32
    %c0_i32_0 = arith.constant 0 : i32
    %c0_i32_1 = arith.constant 0 : i32
    %c0_i32_2 = arith.constant 0 : i32
    return %c0_i32, %c0_i32_0, %c0_i32_1 : i32, i32, i32
  }
  func.func @transform_12(%arg0: i32) -> (i32, i32) {
    %c0_i32 = arith.constant 0 : i32
    %c0_i32_0 = arith.constant 0 : i32
    %c0_i32_1 = arith.constant 0 : i32
    return %c0_i32, %c0_i32_0 : i32, i32
  }
  func.func @transform_13(%arg0: i32) -> (i32, i32) {
    %c0_i32 = arith.constant 0 : i32
    %c0_i32_0 = arith.constant 0 : i32
    %c0_i32_1 = arith.constant 0 : i32
    return %c0_i32, %c0_i32_0 : i32, i32
  }
  func.func @transform_14(%arg0: i32) -> (i32, i32) {
    %c0_i32 = arith.constant 0 : i32
    %c0_i32_0 = arith.constant 0 : i32
    %c0_i32_1 = arith.constant 0 : i32
    return %c0_i32, %c0_i32_0 : i32, i32
  }
  func.func @transform_15(%arg0: i32) -> (i32, i32) {
    %c0_i32 = arith.constant 0 : i32
    %c0_i32_0 = arith.constant 0 : i32
    %c0_i32_1 = arith.constant 0 : i32
    return %c0_i32, %c0_i32_0 : i32, i32
  }
  func.func @transform_16(%arg0: i32) -> (i32, i32) {
    %c0_i32 = arith.constant 0 : i32
    %c0_i32_0 = arith.constant 0 : i32
    %c0_i32_1 = arith.constant 0 : i32
    return %c0_i32, %c0_i32_0 : i32, i32
  }
  func.func @transform_17(%arg0: i32) -> (i32, i32, i32) {
    %c0_i32 = arith.constant 0 : i32
    %c0_i32_0 = arith.constant 0 : i32
    %c0_i32_1 = arith.constant 0 : i32
    return %arg0, %c0_i32, %c0_i32_0 : i32, i32, i32
  }
  func.func @transform_18(%arg0: i32) -> (i32, i32, i32) {
    %c0_i32 = arith.constant 0 : i32
    %c0_i32_0 = arith.constant 0 : i32
    %c0_i32_1 = arith.constant 0 : i32
    return %arg0, %c0_i32, %c0_i32_0 : i32, i32, i32
  }
}

</mosaic_0001>

<llo_original>
// kernel: forward.1
$region0: #{forward.1}
  #allocation0 [shape = 'u32[]', space=smem, size = 0x4, offset = 0x4, fixed_abs, tag = 'smem constant byte address 0x4 - core index']
  #allocation1 [shape = 'u32[144,128]{1,0:T(1,128)}', space=vmem, size = 0x12000, scoped, tag = 'internal scratch']
  %s0 = inlined_call_operand.hbm [shape: f32[2,96,32], index: 0, kind: input, shape index: {}]
  %s1 = inlined_call_operand.hbm [shape: bf16[96,480], index: 1, kind: input, shape index: {}]
  %s2 = inlined_call_operand.hbm [shape: bf16[96,480], index: 2, kind: input, shape index: {}]
  %s3 = inlined_call_operand.vmem [shape: f32[96,1], index: 3, kind: input, shape index: {}]
  %s4 = inlined_call_operand.vmem [shape: f32[28,14], index: 4, kind: input, shape index: {}]
  %s5 = inlined_call_operand.vmem [shape: f32[28,14], index: 5, kind: input, shape index: {}]
  %s6 = inlined_call_operand.hbm [shape: bf16[80,480], index: 6, kind: input, shape index: {}]
  %s7 = inlined_call_operand.hbm [shape: bf16[80,480], index: 7, kind: input, shape index: {}]
  %s8 = inlined_call_operand.vmem [shape: f32[80,1], index: 8, kind: input, shape index: {}]
  %s9 = inlined_call_operand.vmem [shape: f32[10,5], index: 9, kind: input, shape index: {}]
  %s10 = inlined_call_operand.vmem [shape: f32[10,5], index: 10, kind: input, shape index: {}]
  %s11 = inlined_call_operand.vmem [shape: f32[5,80,120], index: 11, kind: input, shape index: {}]
  %s12 = inlined_call_operand.vmem [shape: f32[1,120], index: 12, kind: input, shape index: {}]
  %s13 = inlined_call_operand.vmem [shape: bf16[120,84], index: 13, kind: input, shape index: {}]
  %s14 = inlined_call_operand.vmem [shape: f32[1,84], index: 14, kind: input, shape index: {}]
  %s15 = inlined_call_operand.vmem [shape: bf16[84,10], index: 15, kind: input, shape index: {}]
  %s16 = inlined_call_operand.vmem [shape: f32[1,10], index: 16, kind: input, shape index: {}]
  %s17 = inlined_call_operand.vmem [shape: f32[2,1,84], index: 17, kind: output, shape index: {0}]
  %s18 = inlined_call_operand.hbm [shape: f32[2,1,10], index: 18, kind: output, shape index: {1}]
  %19 = xla_tuple %s17, %s18
  %s20 = sld [smem:[#allocation0]]
  $region129: #{forward.1} parent=0
    _
  %s22 = ssub.s32 1, %s20
  %s23 = scalar_select 0, %s22, %s20
  $region1: #{forward.1} parent=0
    #allocation2 [shape = 'u8[98304]{0}', space=vmem, size = 0x18000, scoped, tag = 'input window, operand 0']
    #allocation3 [shape = 's32[2]{0}', space=sflag, size = 0x8, scoped, tag = 'scoped memory for forward.1']
    #allocation4 [shape = 's32[2]{0}', space=sflag, size = 0x8, scoped, tag = 'scoped memory for forward.1']
    #allocation5 [shape = 'u8[98304]{0}', space=vmem, size = 0x18000, scoped, tag = 'input window, operand 1, single buffered']
    #allocation6 [shape = 's32[1]{0}', space=sflag, size = 0x4, scoped, tag = 'scoped memory for forward.1']
    #allocation7 [shape = 'u8[98304]{0}', space=vmem, size = 0x18000, scoped, tag = 'input window, operand 2, single buffered']
    #allocation8 [shape = 'u8[81920]{0}', space=vmem, size = 0x14000, scoped, tag = 'input window, operand 6, single buffered']
    #allocation9 [shape = 's32[1]{0}', space=sflag, size = 0x4, scoped, tag = 'scoped memory for forward.1']
    #allocation10 [shape = 'u8[81920]{0}', space=vmem, size = 0x14000, scoped, tag = 'input window, operand 7, single buffered']
    #allocation11 [shape = 'u8[1024]{0}', space=vmem, size = 0x400, scoped, tag = 'output window, operand 1']
    %24 = vsyncpa [#allocation3], 0
    %s25 = scalar_lea.sflag [#allocation3], 1
    %26 = vsyncpa %s25, 0
    %27 = vsyncpa [#allocation6], 0
    %28 = vsyncpa [#allocation9], 0
    %29 = vsyncpa [#allocation4], 0
    %s30 = scalar_lea.sflag [#allocation4], 1
    %31 = vsyncpa %s30, 0
    loop: start=0, step=1, limit=4
    $region2: #{forward.1} parent=1 // loop_pre_header
      _
    $region3: #{forward.1} parent=1 // loop_header
      %s33 = sphi 0, %s37
      %p34 = scmp.ge.s32.totalorder %s33, 4
      %s43 = sphi 0, %s45
      %s46 = sphi 0, %s43
      %s47 = sphi 0, %s46
      %s63 = sphi 0, %s47
      %s67 = sphi 0, %s67
      %s69 = sphi 0, %s67
      %s70 = sphi 0, %s69
      %s84 = sphi 0, %s70
      %s88 = sphi 0, %s88
      %s90 = sphi 0, %s88
      %s91 = sphi 0, %s90
      %s105 = sphi 0, %s91
      %s109 = sphi 0, %s109
      %s111 = sphi 0, %s109
      %s112 = sphi 0, %s111
      %s126 = sphi 0, %s112
      %s130 = sphi 0, %s130
      %s132 = sphi 0, %s130
      %s133 = sphi 0, %s132
      %s147 = sphi 0, %s133
      %s151 = sphi 0, %s151
      %s153 = sphi 0, %s151
      %s154 = sphi 0, %s153
      %s168 = sphi 0, %s154
      %s172 = sphi 0, %s172
      %s174 = sphi 0, %s172
      %s175 = sphi 0, %s174
      %s189 = sphi 0, %s175
      %s193 = sphi 0, %s193
      %s195 = sphi 0, %s193
      %s196 = sphi 0, %s195
      %s210 = sphi 0, %s196
      %s214 = sphi 0, %s214
      %s216 = sphi 0, %s214
      %s217 = sphi 0, %s216
      %s231 = sphi 0, %s217
      %s235 = sphi 0, %s235
      %s237 = sphi 0, %s235
      %s238 = sphi 0, %s237
      %s252 = sphi 0, %s238
      %s256 = sphi 0, %s256
      %s258 = sphi 0, %s256
      %s259 = sphi 0, %s258
      %s273 = sphi 0, %s259
      %s277 = sphi 0, %s277
      %s279 = sphi 0, %s277
      %s280 = sphi 0, %s279
      %s294 = sphi 0, %s280
      %s298 = sphi 0, %s298
      %s300 = sphi 0, %s298
      %s301 = sphi 0, %s300
      %s315 = sphi 0, %s301
      %s319 = sphi 0, %s319
      %s321 = sphi 0, %s319
      %s322 = sphi 0, %s321
      %s336 = sphi 0, %s322
      %s340 = sphi 0, %s340
      %s342 = sphi 0, %s340
      %s343 = sphi 0, %s342
      %s357 = sphi 0, %s343
      %s361 = sphi 0, %s361
      %s363 = sphi 0, %s361
      %s364 = sphi 0, %s363
      %s378 = sphi 0, %s364
      %s382 = sphi 0, %s382
      %s384 = sphi 0, %s382
      %s385 = sphi 0, %s384
      %s399 = sphi 0, %s385
      %s405 = sphi 0, %s407
      %s408 = sphi 0, %s405
      %s409 = sphi 0, %s408
      %s425 = sphi 0, %s409
      %s431 = sphi 0, %s433
      %s434 = sphi 0, %s431
      %s435 = sphi 0, %s434
      %s451 = sphi 0, %s435
    $region4: #{forward.1} parent=1 // loop_header_branch
      %36 = sbr.rel (%p34) target = $region8
    $region5: #{forward.1} parent=1 // loop_body
      %s38 = ssub.s32 %s33, 1
      %s39 = ssub.s32 %s33, 2
      %s40 = sadd.s32 %s33, 1
      %s41 = ssub.s32 %s33, %s40
      %p42 = scmp.eq.s32.totalorder %s41, 0
      %s44 = sadd.s32 %s43, 1
      %s45 = scalar_select %p42, %s43, %s44
      %p48 = pneg %p42
      %p49 = scmp.eq.s32.totalorder %s33, 1
      %p50 = por %p48, %p49
      %p51 = scmp.ne.s32.totalorder %s43, %s46
      %p52 = scmp.eq.s32.totalorder %s33, 0
      %p53 = por %p51, %p52
      %p54 = scmp.ne.s32.totalorder %s43, %s46
      %p55 = scmp.eq.s32.totalorder %s38, 1
      %p56 = por %p54, %p55
      %p57 = scmp.ne.s32.totalorder %s46, %s47
      %p58 = scmp.eq.s32.totalorder %s38, 0
      %p59 = por %p57, %p58
      %p60 = scmp.ne.s32.totalorder %s46, %s47
      %p61 = scmp.eq.s32.totalorder %s39, 1
      %p62 = por %p60, %p61
      %p64 = scmp.ne.s32.totalorder %s47, %s63
      %p65 = scmp.eq.s32.totalorder %s39, 0
      %p66 = por %p64, %p65
      %s68 = sadd.s32 %s67, 1
      %p71 = scmp.eq.s32.totalorder %s33, 1
      %p72 = scmp.ne.s32.totalorder %s67, %s69
      %p73 = scmp.eq.s32.totalorder %s33, 0
      %p74 = por %p72, %p73
      %p75 = scmp.ne.s32.totalorder %s67, %s69
      %p76 = scmp.eq.s32.totalorder %s38, 1
      %p77 = por %p75, %p76
      %p78 = scmp.ne.s32.totalorder %s69, %s70
      %p79 = scmp.eq.s32.totalorder %s38, 0
      %p80 = por %p78, %p79
      %p81 = scmp.ne.s32.totalorder %s69, %s70
      %p82 = scmp.eq.s32.totalorder %s39, 1
      %p83 = por %p81, %p82
      %p85 = scmp.ne.s32.totalorder %s70, %s84
      %p86 = scmp.eq.s32.totalorder %s39, 0
      %p87 = por %p85, %p86
      %s89 = sadd.s32 %s88, 1
      %p92 = scmp.eq.s32.totalorder %s33, 1
      %p93 = scmp.ne.s32.totalorder %s88, %s90
      %p94 = scmp.eq.s32.totalorder %s33, 0
      %p95 = por %p93, %p94
      %p96 = scmp.ne.s32.totalorder %s88, %s90
      %p97 = scmp.eq.s32.totalorder %s38, 1
      %p98 = por %p96, %p97
      %p99 = scmp.ne.s32.totalorder %s90, %s91
      %p100 = scmp.eq.s32.totalorder %s38, 0
      %p101 = por %p99, %p100
      %p102 = scmp.ne.s32.totalorder %s90, %s91
      %p103 = scmp.eq.s32.totalorder %s39, 1
      %p104 = por %p102, %p103
      %p106 = scmp.ne.s32.totalorder %s91, %s105
      %p107 = scmp.eq.s32.totalorder %s39, 0
      %p108 = por %p106, %p107
      %s110 = sadd.s32 %s109, 1
      %p113 = scmp.eq.s32.totalorder %s33, 1
      %p114 = scmp.ne.s32.totalorder %s109, %s111
      %p115 = scmp.eq.s32.totalorder %s33, 0
      %p116 = por %p114, %p115
      %p117 = scmp.ne.s32.totalorder %s109, %s111
      %p118 = scmp.eq.s32.totalorder %s38, 1
      %p119 = por %p117, %p118
      %p120 = scmp.ne.s32.totalorder %s111, %s112
      %p121 = scmp.eq.s32.totalorder %s38, 0
      %p122 = por %p120, %p121
      %p123 = scmp.ne.s32.totalorder %s111, %s112
      %p124 = scmp.eq.s32.totalorder %s39, 1
      %p125 = por %p123, %p124
      %p127 = scmp.ne.s32.totalorder %s112, %s126
      %p128 = scmp.eq.s32.totalorder %s39, 0
      %p129 = por %p127, %p128
      %s131 = sadd.s32 %s130, 1
      %p134 = scmp.eq.s32.totalorder %s33, 1
      %p135 = scmp.ne.s32.totalorder %s130, %s132
      %p136 = scmp.eq.s32.totalorder %s33, 0
      %p137 = por %p135, %p136
      %p138 = scmp.ne.s32.totalorder %s130, %s132
      %p139 = scmp.eq.s32.totalorder %s38, 1
      %p140 = por %p138, %p139
      %p141 = scmp.ne.s32.totalorder %s132, %s133
      %p142 = scmp.eq.s32.totalorder %s38, 0
      %p143 = por %p141, %p142
      %p144 = scmp.ne.s32.totalorder %s132, %s133
      %p145 = scmp.eq.s32.totalorder %s39, 1
      %p146 = por %p144, %p145
      %p148 = scmp.ne.s32.totalorder %s133, %s147
      %p149 = scmp.eq.s32.totalorder %s39, 0
      %p150 = por %p148, %p149
      %s152 = sadd.s32 %s151, 1
      %p155 = scmp.eq.s32.totalorder %s33, 1
      %p156 = scmp.ne.s32.totalorder %s151, %s153
      %p157 = scmp.eq.s32.totalorder %s33, 0
      %p158 = por %p156, %p157
      %p159 = scmp.ne.s32.totalorder %s151, %s153
      %p160 = scmp.eq.s32.totalorder %s38, 1
      %p161 = por %p159, %p160
      %p162 = scmp.ne.s32.totalorder %s153, %s154
      %p163 = scmp.eq.s32.totalorder %s38, 0
      %p164 = por %p162, %p163
      %p165 = scmp.ne.s32.totalorder %s153, %s154
      %p166 = scmp.eq.s32.totalorder %s39, 1
      %p167 = por %p165, %p166
      %p169 = scmp.ne.s32.totalorder %s154, %s168
      %p170 = scmp.eq.s32.totalorder %s39, 0
      %p171 = por %p169, %p170
      %s173 = sadd.s32 %s172, 1
      %p176 = scmp.eq.s32.totalorder %s33, 1
      %p177 = scmp.ne.s32.totalorder %s172, %s174
      %p178 = scmp.eq.s32.totalorder %s33, 0
      %p179 = por %p177, %p178
      %p180 = scmp.ne.s32.totalorder %s172, %s174
      %p181 = scmp.eq.s32.totalorder %s38, 1
      %p182 = por %p180, %p181
      %p183 = scmp.ne.s32.totalorder %s174, %s175
      %p184 = scmp.eq.s32.totalorder %s38, 0
      %p185 = por %p183, %p184
      %p186 = scmp.ne.s32.totalorder %s174, %s175
      %p187 = scmp.eq.s32.totalorder %s39, 1
      %p188 = por %p186, %p187
      %p190 = scmp.ne.s32.totalorder %s175, %s189
      %p191 = scmp.eq.s32.totalorder %s39, 0
      %p192 = por %p190, %p191
      %s194 = sadd.s32 %s193, 1
      %p197 = scmp.eq.s32.totalorder %s33, 1
      %p198 = scmp.ne.s32.totalorder %s193, %s195
      %p199 = scmp.eq.s32.totalorder %s33, 0
      %p200 = por %p198, %p199
      %p201 = scmp.ne.s32.totalorder %s193, %s195
      %p202 = scmp.eq.s32.totalorder %s38, 1
      %p203 = por %p201, %p202
      %p204 = scmp.ne.s32.totalorder %s195, %s196
      %p205 = scmp.eq.s32.totalorder %s38, 0
      %p206 = por %p204, %p205
      %p207 = scmp.ne.s32.totalorder %s195, %s196
      %p208 = scmp.eq.s32.totalorder %s39, 1
      %p209 = por %p207, %p208
      %p211 = scmp.ne.s32.totalorder %s196, %s210
      %p212 = scmp.eq.s32.totalorder %s39, 0
      %p213 = por %p211, %p212
      %s215 = sadd.s32 %s214, 1
      %p218 = scmp.eq.s32.totalorder %s33, 1
      %p219 = scmp.ne.s32.totalorder %s214, %s216
      %p220 = scmp.eq.s32.totalorder %s33, 0
      %p221 = por %p219, %p220
      %p222 = scmp.ne.s32.totalorder %s214, %s216
      %p223 = scmp.eq.s32.totalorder %s38, 1
      %p224 = por %p222, %p223
      %p225 = scmp.ne.s32.totalorder %s216, %s217
      %p226 = scmp.eq.s32.totalorder %s38, 0
      %p227 = por %p225, %p226
      %p228 = scmp.ne.s32.totalorder %s216, %s217
      %p229 = scmp.eq.s32.totalorder %s39, 1
      %p230 = por %p228, %p229
      %p232 = scmp.ne.s32.totalorder %s217, %s231
      %p233 = scmp.eq.s32.totalorder %s39, 0
      %p234 = por %p232, %p233
      %s236 = sadd.s32 %s235, 1
      %p239 = scmp.eq.s32.totalorder %s33, 1
      %p240 = scmp.ne.s32.totalorder %s235, %s237
      %p241 = scmp.eq.s32.totalorder %s33, 0
      %p242 = por %p240, %p241
      %p243 = scmp.ne.s32.totalorder %s235, %s237
      %p244 = scmp.eq.s32.totalorder %s38, 1
      %p245 = por %p243, %p244
      %p246 = scmp.ne.s32.totalorder %s237, %s238
      %p247 = scmp.eq.s32.totalorder %s38, 0
      %p248 = por %p246, %p247
      %p249 = scmp.ne.s32.totalorder %s237, %s238
      %p250 = scmp.eq.s32.totalorder %s39, 1
      %p251 = por %p249, %p250
      %p253 = scmp.ne.s32.totalorder %s238, %s252
      %p254 = scmp.eq.s32.totalorder %s39, 0
      %p255 = por %p253, %p254
      %s257 = sadd.s32 %s256, 1
      %p260 = scmp.eq.s32.totalorder %s33, 1
      %p261 = scmp.ne.s32.totalorder %s256, %s258
      %p262 = scmp.eq.s32.totalorder %s33, 0
      %p263 = por %p261, %p262
      %p264 = scmp.ne.s32.totalorder %s256, %s258
      %p265 = scmp.eq.s32.totalorder %s38, 1
      %p266 = por %p264, %p265
      %p267 = scmp.ne.s32.totalorder %s258, %s259
      %p268 = scmp.eq.s32.totalorder %s38, 0
      %p269 = por %p267, %p268
      %p270 = scmp.ne.s32.totalorder %s258, %s259
      %p271 = scmp.eq.s32.totalorder %s39, 1
      %p272 = por %p270, %p271
      %p274 = scmp.ne.s32.totalorder %s259, %s273
      %p275 = scmp.eq.s32.totalorder %s39, 0
      %p276 = por %p274, %p275
      %s278 = sadd.s32 %s277, 1
      %p281 = scmp.eq.s32.totalorder %s33, 1
      %p282 = scmp.ne.s32.totalorder %s277, %s279
      %p283 = scmp.eq.s32.totalorder %s33, 0
      %p284 = por %p282, %p283
      %p285 = scmp.ne.s32.totalorder %s277, %s279
      %p286 = scmp.eq.s32.totalorder %s38, 1
      %p287 = por %p285, %p286
      %p288 = scmp.ne.s32.totalorder %s279, %s280
      %p289 = scmp.eq.s32.totalorder %s38, 0
      %p290 = por %p288, %p289
      %p291 = scmp.ne.s32.totalorder %s279, %s280
      %p292 = scmp.eq.s32.totalorder %s39, 1
      %p293 = por %p291, %p292
      %p295 = scmp.ne.s32.totalorder %s280, %s294
      %p296 = scmp.eq.s32.totalorder %s39, 0
      %p297 = por %p295, %p296
      %s299 = sadd.s32 %s298, 1
      %p302 = scmp.eq.s32.totalorder %s33, 1
      %p303 = scmp.ne.s32.totalorder %s298, %s300
      %p304 = scmp.eq.s32.totalorder %s33, 0
      %p305 = por %p303, %p304
      %p306 = scmp.ne.s32.totalorder %s298, %s300
      %p307 = scmp.eq.s32.totalorder %s38, 1
      %p308 = por %p306, %p307
      %p309 = scmp.ne.s32.totalorder %s300, %s301
      %p310 = scmp.eq.s32.totalorder %s38, 0
      %p311 = por %p309, %p310
      %p312 = scmp.ne.s32.totalorder %s300, %s301
      %p313 = scmp.eq.s32.totalorder %s39, 1
      %p314 = por %p312, %p313
      %p316 = scmp.ne.s32.totalorder %s301, %s315
      %p317 = scmp.eq.s32.totalorder %s39, 0
      %p318 = por %p316, %p317
      %s320 = sadd.s32 %s319, 1
      %p323 = scmp.eq.s32.totalorder %s33, 1
      %p324 = scmp.ne.s32.totalorder %s319, %s321
      %p325 = scmp.eq.s32.totalorder %s33, 0
      %p326 = por %p324, %p325
      %p327 = scmp.ne.s32.totalorder %s319, %s321
      %p328 = scmp.eq.s32.totalorder %s38, 1
      %p329 = por %p327, %p328
      %p330 = scmp.ne.s32.totalorder %s321, %s322
      %p331 = scmp.eq.s32.totalorder %s38, 0
      %p332 = por %p330, %p331
      %p333 = scmp.ne.s32.totalorder %s321, %s322
      %p334 = scmp.eq.s32.totalorder %s39, 1
      %p335 = por %p333, %p334
      %p337 = scmp.ne.s32.totalorder %s322, %s336
      %p338 = scmp.eq.s32.totalorder %s39, 0
      %p339 = por %p337, %p338
      %s341 = sadd.s32 %s340, 1
      %p344 = scmp.eq.s32.totalorder %s33, 1
      %p345 = scmp.ne.s32.totalorder %s340, %s342
      %p346 = scmp.eq.s32.totalorder %s33, 0
      %p347 = por %p345, %p346
      %p348 = scmp.ne.s32.totalorder %s340, %s342
      %p349 = scmp.eq.s32.totalorder %s38, 1
      %p350 = por %p348, %p349
      %p351 = scmp.ne.s32.totalorder %s342, %s343
      %p352 = scmp.eq.s32.totalorder %s38, 0
      %p353 = por %p351, %p352
      %p354 = scmp.ne.s32.totalorder %s342, %s343
      %p355 = scmp.eq.s32.totalorder %s39, 1
      %p356 = por %p354, %p355
      %p358 = scmp.ne.s32.totalorder %s343, %s357
      %p359 = scmp.eq.s32.totalorder %s39, 0
      %p360 = por %p358, %p359
      %s362 = sadd.s32 %s361, 1
      %p365 = scmp.eq.s32.totalorder %s33, 1
      %p366 = scmp.ne.s32.totalorder %s361, %s363
      %p367 = scmp.eq.s32.totalorder %s33, 0
      %p368 = por %p366, %p367
      %p369 = scmp.ne.s32.totalorder %s361, %s363
      %p370 = scmp.eq.s32.totalorder %s38, 1
      %p371 = por %p369, %p370
      %p372 = scmp.ne.s32.totalorder %s363, %s364
      %p373 = scmp.eq.s32.totalorder %s38, 0
      %p374 = por %p372, %p373
      %p375 = scmp.ne.s32.totalorder %s363, %s364
      %p376 = scmp.eq.s32.totalorder %s39, 1
      %p377 = por %p375, %p376
      %p379 = scmp.ne.s32.totalorder %s364, %s378
      %p380 = scmp.eq.s32.totalorder %s39, 0
      %p381 = por %p379, %p380
      %s383 = sadd.s32 %s382, 1
      %p386 = scmp.eq.s32.totalorder %s33, 1
      %p387 = scmp.ne.s32.totalorder %s382, %s384
      %p388 = scmp.eq.s32.totalorder %s33, 0
      %p389 = por %p387, %p388
      %p390 = scmp.ne.s32.totalorder %s382, %s384
      %p391 = scmp.eq.s32.totalorder %s38, 1
      %p392 = por %p390, %p391
      %p393 = scmp.ne.s32.totalorder %s384, %s385
      %p394 = scmp.eq.s32.totalorder %s38, 0
      %p395 = por %p393, %p394
      %p396 = scmp.ne.s32.totalorder %s384, %s385
      %p397 = scmp.eq.s32.totalorder %s39, 1
      %p398 = por %p396, %p397
      %p400 = scmp.ne.s32.totalorder %s385, %s399
      %p401 = scmp.eq.s32.totalorder %s39, 0
      %p402 = por %p400, %p401
      %s403 = ssub.s32 %s33, %s40
      %p404 = scmp.eq.s32.totalorder %s403, 0
      %s406 = sadd.s32 %s405, 1
      %s407 = scalar_select %p404, %s405, %s406
      %p410 = pneg %p404
      %p411 = scmp.eq.s32.totalorder %s33, 1
      %p412 = por %p410, %p411
      %p413 = scmp.ne.s32.totalorder %s405, %s408
      %p414 = scmp.eq.s32.totalorder %s33, 0
      %p415 = por %p413, %p414
      %p416 = scmp.ne.s32.totalorder %s405, %s408
      %p417 = scmp.eq.s32.totalorder %s38, 1
      %p418 = por %p416, %p417
      %p419 = scmp.ne.s32.totalorder %s408, %s409
      %p420 = scmp.eq.s32.totalorder %s38, 0
      %p421 = por %p419, %p420
      %p422 = scmp.ne.s32.totalorder %s408, %s409
      %p423 = scmp.eq.s32.totalorder %s39, 1
      %p424 = por %p422, %p423
      %p426 = scmp.ne.s32.totalorder %s409, %s425
      %p427 = scmp.eq.s32.totalorder %s39, 0
      %p428 = por %p426, %p427
      %s429 = ssub.s32 %s33, %s40
      %p430 = scmp.eq.s32.totalorder %s429, 0
      %s432 = sadd.s32 %s431, 1
      %s433 = scalar_select %p430, %s431, %s432
      %p436 = pneg %p430
      %p437 = scmp.eq.s32.totalorder %s33, 1
      %p438 = por %p436, %p437
      %p439 = scmp.ne.s32.totalorder %s431, %s434
      %p440 = scmp.eq.s32.totalorder %s33, 0
      %p441 = por %p439, %p440
      %p442 = scmp.ne.s32.totalorder %s431, %s434
      %p443 = scmp.eq.s32.totalorder %s38, 1
      %p444 = por %p442, %p443
      %p445 = scmp.ne.s32.totalorder %s434, %s435
      %p446 = scmp.eq.s32.totalorder %s38, 0
      %p447 = por %p445, %p446
      %p448 = scmp.ne.s32.totalorder %s434, %s435
      %p449 = scmp.eq.s32.totalorder %s39, 1
      %p450 = por %p448, %p449
      %p452 = scmp.ne.s32.totalorder %s435, %s451
      %p453 = scmp.eq.s32.totalorder %s39, 0
      %p454 = por %p452, %p453
      %p455 = scmp.le.s32.totalorder 1, %s33
      %p456 = scmp.lt.s32.totalorder %s33, 3
      %p457 = pnand %p455, %p456
      %p458 = pneg %p457
      // Predicated region
      $region9: #{forward.1} parent=5 // pred_check
        _
      $region10: #{forward.1} parent=5 // pred_check_branch
        %460 = sbr.rel (%p457) target = $region12
      $region11: #{forward.1} parent=5 // pred_region
        %s461 = ssub.s32 %s33, 1
        // Predicated region
        $region13: #{forward.1} parent=11 // pred_check
          %p462 = pneg %p80
        $region14: #{forward.1} parent=11 // pred_check_branch
          %464 = sbr.rel (%p462) target = $region16
        $region15: #{forward.1} parent=11 // pred_region
          %s466 = ssub.s32 3072, 3072
          %467 = vsyncadd [#allocation6], %s466
          %s468 = sshll.u32 [#allocation5], 4
          %s469 = int_to_ptr.vmem [resolvable:$true] %s468
          %474 = dma.hbm_to_vmem [thread:$0]  %s1, 3072, %s469, [#allocation6], 256, 256, 16
        $region16: #{forward.1} parent=11 // pred_fallthru
          _
        // Predicated region
        $region17: #{forward.1} parent=11 // pred_check
          %p475 = pneg %p101
        $region18: #{forward.1} parent=11 // pred_check_branch
          %477 = sbr.rel (%p475) target = $region20
        $region19: #{forward.1} parent=11 // pred_region
          %s479 = ssub.s32 3072, 3072
          %480 = vsyncadd [#allocation6], %s479
          %s481 = sshll.u32 [#allocation7], 4
          %s482 = int_to_ptr.vmem [resolvable:$true] %s481
          %487 = dma.hbm_to_vmem [thread:$0]  %s2, 3072, %s482, [#allocation6], 256, 256, 16
        $region20: #{forward.1} parent=11 // pred_fallthru
          _
        // Predicated region
        $region21: #{forward.1} parent=11 // pred_check
          %p488 = pneg %p122
        $region22: #{forward.1} parent=11 // pred_check_branch
          %490 = sbr.rel (%p488) target = $region24
        $region23: #{forward.1} parent=11 // pred_region
          _
        $region24: #{forward.1} parent=11 // pred_fallthru
          _
        // Predicated region
        $region25: #{forward.1} parent=11 // pred_check
          %p491 = pneg %p143
        $region26: #{forward.1} parent=11 // pred_check_branch
          %493 = sbr.rel (%p491) target = $region28
        $region27: #{forward.1} parent=11 // pred_region
          _
        $region28: #{forward.1} parent=11 // pred_fallthru
          _
        // Predicated region
        $region29: #{forward.1} parent=11 // pred_check
          %p494 = pneg %p164
        $region30: #{forward.1} parent=11 // pred_check_branch
          %496 = sbr.rel (%p494) target = $region32
        $region31: #{forward.1} parent=11 // pred_region
          _
        $region32: #{forward.1} parent=11 // pred_fallthru
          _
        // Predicated region
        $region33: #{forward.1} parent=11 // pred_check
          %p497 = pneg %p185
        $region34: #{forward.1} parent=11 // pred_check_branch
          %499 = sbr.rel (%p497) target = $region36
        $region35: #{forward.1} parent=11 // pred_region
          %s501 = ssub.s32 2560, 2560
          %502 = vsyncadd [#allocation9], %s501
          %s503 = sshll.u32 [#allocation8], 4
          %s504 = int_to_ptr.vmem [resolvable:$true] %s503
          %509 = dma.hbm_to_vmem [thread:$0]  %s6, 2560, %s504, [#allocation9], 256, 256, 16
        $region36: #{forward.1} parent=11 // pred_fallthru
          _
        // Predicated region
        $region37: #{forward.1} parent=11 // pred_check
          %p510 = pneg %p206
        $region38: #{forward.1} parent=11 // pred_check_branch
          %512 = sbr.rel (%p510) target = $region40
        $region39: #{forward.1} parent=11 // pred_region
          %s514 = ssub.s32 2560, 2560
          %515 = vsyncadd [#allocation9], %s514
          %s516 = sshll.u32 [#allocation10], 4
          %s517 = int_to_ptr.vmem [resolvable:$true] %s516
          %522 = dma.hbm_to_vmem [thread:$0]  %s7, 2560, %s517, [#allocation9], 256, 256, 16
        $region40: #{forward.1} parent=11 // pred_fallthru
          _
        // Predicated region
        $region41: #{forward.1} parent=11 // pred_check
          %p523 = pneg %p227
        $region42: #{forward.1} parent=11 // pred_check_branch
          %525 = sbr.rel (%p523) target = $region44
        $region43: #{forward.1} parent=11 // pred_region
          _
        $region44: #{forward.1} parent=11 // pred_fallthru
          _
        // Predicated region
        $region45: #{forward.1} parent=11 // pred_check
          %p526 = pneg %p248
        $region46: #{forward.1} parent=11 // pred_check_branch
          %528 = sbr.rel (%p526) target = $region48
        $region47: #{forward.1} parent=11 // pred_region
          _
        $region48: #{forward.1} parent=11 // pred_fallthru
          _
        // Predicated region
        $region49: #{forward.1} parent=11 // pred_check
          %p529 = pneg %p269
        $region50: #{forward.1} parent=11 // pred_check_branch
          %531 = sbr.rel (%p529) target = $region52
        $region51: #{forward.1} parent=11 // pred_region
          _
        $region52: #{forward.1} parent=11 // pred_fallthru
          _
        // Predicated region
        $region53: #{forward.1} parent=11 // pred_check
          %p532 = pneg %p290
        $region54: #{forward.1} parent=11 // pred_check_branch
          %534 = sbr.rel (%p532) target = $region56
        $region55: #{forward.1} parent=11 // pred_region
          _
        $region56: #{forward.1} parent=11 // pred_fallthru
          _
        // Predicated region
        $region57: #{forward.1} parent=11 // pred_check
          %p535 = pneg %p311
        $region58: #{forward.1} parent=11 // pred_check_branch
          %537 = sbr.rel (%p535) target = $region60
        $region59: #{forward.1} parent=11 // pred_region
          _
        $region60: #{forward.1} parent=11 // pred_fallthru
          _
        // Predicated region
        $region61: #{forward.1} parent=11 // pred_check
          %p538 = pneg %p332
        $region62: #{forward.1} parent=11 // pred_check_branch
          %540 = sbr.rel (%p538) target = $region64
        $region63: #{forward.1} parent=11 // pred_region
          _
        $region64: #{forward.1} parent=11 // pred_fallthru
          _
        // Predicated region
        $region65: #{forward.1} parent=11 // pred_check
          %p541 = pneg %p353
        $region66: #{forward.1} parent=11 // pred_check_branch
          %543 = sbr.rel (%p541) target = $region68
        $region67: #{forward.1} parent=11 // pred_region
          _
        $region68: #{forward.1} parent=11 // pred_fallthru
          _
        // Predicated region
        $region69: #{forward.1} parent=11 // pred_check
          %p544 = pneg %p374
        $region70: #{forward.1} parent=11 // pred_check_branch
          %546 = sbr.rel (%p544) target = $region72
        $region71: #{forward.1} parent=11 // pred_region
          _
        $region72: #{forward.1} parent=11 // pred_fallthru
          _
        // Predicated region
        $region73: #{forward.1} parent=11 // pred_check
          %p547 = pneg %p395
        $region74: #{forward.1} parent=11 // pred_check_branch
          %549 = sbr.rel (%p547) target = $region76
        $region75: #{forward.1} parent=11 // pred_region
          _
        $region76: #{forward.1} parent=11 // pred_fallthru
          _
      $region12: #{forward.1} parent=5 // pred_fallthru
        _
      %p550 = scmp.lt.s32.totalorder %s33, 2
      // Predicated region
      $region77: #{forward.1} parent=5 // pred_check
        %p551 = pneg %p550
      $region78: #{forward.1} parent=5 // pred_check_branch
        %553 = sbr.rel (%p551) target = $region80
      $region79: #{forward.1} parent=5 // pred_region
        // Predicated region
        $region81: #{forward.1} parent=79 // pred_check
          %p554 = pneg %p53
        $region82: #{forward.1} parent=79 // pred_check_branch
          %556 = sbr.rel (%p554) target = $region84
        $region83: #{forward.1} parent=79 // pred_region
          %s557 = sand.u32 %s43, 1
          %s558 = scalar_lea.sflag [#allocation3], %s557
          %s559 = sand.u32 %s43, 1
          %s560 = smul.addr %s559, 96
          %s561 = scalar_lea.vmem [#allocation2], %s560
          %s563 = ssub.s32 1536, 1536
          %564 = vsyncadd %s558, %s563
          %s565 = smul.addr %s33, 12
          %s566 = smul.addr %s565, 128
          %s567 = scalar_lea.hbm %s0, %s566
          %s568 = sshll.u32 %s561, 4
          %s569 = int_to_ptr.vmem [resolvable:$true] %s568
          %574 = dma.hbm_to_vmem [thread:$0]  %s567, 1536, %s569, %s558, 128, 128, 8
        $region84: #{forward.1} parent=79 // pred_fallthru
          _
      $region80: #{forward.1} parent=5 // pred_fallthru
        _
      %p575 = scmp.le.s32.totalorder 1, %s33
      %p576 = scmp.lt.s32.totalorder %s33, 3
      %p577 = pnand %p575, %p576
      %p578 = pneg %p577
      // Predicated region
      $region85: #{forward.1} parent=5 // pred_check
        _
      $region86: #{forward.1} parent=5 // pred_check_branch
        %580 = sbr.rel (%p577) target = $region88
      $region87: #{forward.1} parent=5 // pred_region
        %s581 = ssub.s32 %s33, 1
        %s582 = sand.u32 %s46, 1
        %s583 = scalar_lea.sflag [#allocation3], %s582
        %s584 = sand.u32 %s46, 1
        %s585 = smul.addr %s584, 96
        %s586 = scalar_lea.vmem [#allocation2], %s585
        // Predicated region
        $region89: #{forward.1} parent=87 // pred_check
          %p587 = pneg %p59
        $region90: #{forward.1} parent=87 // pred_check_branch
          %589 = sbr.rel (%p587) target = $region92
        $region91: #{forward.1} parent=87 // pred_region
          %590 = dma.done %s583, 1536
        $region92: #{forward.1} parent=87 // pred_fallthru
          _
        // Predicated region
        $region93: #{forward.1} parent=87 // pred_check
          %p591 = pneg %p80
        $region94: #{forward.1} parent=87 // pred_check_branch
          %593 = sbr.rel (%p591) target = $region96
        $region95: #{forward.1} parent=87 // pred_region
          %594 = dma.done [#allocation6], 3072
        $region96: #{forward.1} parent=87 // pred_fallthru
          _
        // Predicated region
        $region97: #{forward.1} parent=87 // pred_check
          %p595 = pneg %p101
        $region98: #{forward.1} parent=87 // pred_check_branch
          %597 = sbr.rel (%p595) target = $region100
        $region99: #{forward.1} parent=87 // pred_region
          %598 = dma.done [#allocation6], 3072
        $region100: #{forward.1} parent=87 // pred_fallthru
          _
        // Predicated region
        $region101: #{forward.1} parent=87 // pred_check
          %p599 = pneg %p185
        $region102: #{forward.1} parent=87 // pred_check_branch
          %601 = sbr.rel (%p599) target = $region104
        $region103: #{forward.1} parent=87 // pred_region
          %602 = dma.done [#allocation9], 2560
        $region104: #{forward.1} parent=87 // pred_fallthru
          _
        // Predicated region
        $region105: #{forward.1} parent=87 // pred_check
          %p603 = pneg %p206
        $region106: #{forward.1} parent=87 // pred_check_branch
          %605 = sbr.rel (%p603) target = $region108
        $region107: #{forward.1} parent=87 // pred_region
          %606 = dma.done [#allocation9], 2560
        $region108: #{forward.1} parent=87 // pred_fallthru
          _
        %s607 = sand.u32 %s46, 1
        %s608 = scalar_lea.sflag [#allocation3], %s607
        %s609 = sand.u32 %s46, 1
        %s610 = smul.addr %s609, 96
        %s611 = scalar_lea.vmem [#allocation2], %s610
        %p612 = pneg %p59
        %p613 = pneg %p56
        %p614 = pneg %p80
        %p615 = pneg %p77
        %p616 = pneg %p101
        %p617 = pneg %p98
        %p618 = pneg %p122
        %p619 = pneg %p119
        %p620 = pneg %p143
        %p621 = pneg %p140
        %p622 = pneg %p164
        %p623 = pneg %p161
        %p624 = pneg %p185
        %p625 = pneg %p182
        %p626 = pneg %p206
        %p627 = pneg %p203
        %p628 = pneg %p227
        %p629 = pneg %p224
        %p630 = pneg %p248
        %p631 = pneg %p245
        %p632 = pneg %p269
        %p633 = pneg %p266
        %p634 = pneg %p290
        %p635 = pneg %p287
        %p636 = pneg %p311
        %p637 = pneg %p308
        %p638 = pneg %p332
        %p639 = pneg %p329
        %p640 = pneg %p353
        %p641 = pneg %p350
        %p642 = pneg %p374
        %p643 = pneg %p371
        %p644 = pneg %p395
        %p645 = pneg %p392
        %p646 = pneg %p421
        %p647 = pneg %p418
        %p648 = scmp.lt.s32.totalorder %s38, 1
        %s649 = scalar_select %p648, %s38, 1
        %s650 = scalar_lea.vmem %s17, %s649
        %p651 = pneg %p447
        %p652 = pneg %p444
        %s653 = sand.u32 %s434, 1
        %s654 = scalar_lea.sflag [#allocation4], %s653
        %s655 = sand.u32 %s434, 1
        %s656 = scalar_lea.vmem [#allocation11], %s655
        %p657 = scmp.lt.s32.totalorder %s38, 1
        %s658 = scalar_select %p657, %s38, 1
        %s659 = scalar_lea.vmem %s17, %s658
        %v661 = vld [vmem:[%s586] sm:$0xff]
        %v662 = vld [vmem:[%s586 + $0x8] sm:$0xff]
        %v663 = vld [vmem:[%s586 + $0x10] sm:$0xff]
        %v664 = vld [vmem:[%s586 + $0x18] sm:$0xff]
        %v665 = vld [vmem:[%s586 + $0x20] sm:$0xff]
        %v666 = vld [vmem:[%s586 + $0x28] sm:$0xff]
        %v667 = vld [vmem:[%s586 + $0x30] sm:$0xff]
        %v668 = vld [vmem:[%s586 + $0x38] sm:$0xff]
        %v669 = vld [vmem:[%s586 + $0x40] sm:$0xff]
        %v670 = vld [vmem:[%s586 + $0x48] sm:$0xff]
        %v671 = vld [vmem:[%s586 + $0x50] sm:$0xff]
        %v672 = vld [vmem:[%s586 + $0x58] sm:$0xff]
        %685 = vrot.lane.b32.xlu0 %v661, 127
        %v686 = vpop.permute.xlu0 %685
        %687 = vrot.lane.b32.xlu0 %v662, 127
        %v688 = vpop.permute.xlu0 %687
        %689 = vrot.lane.b32.xlu0 %v663, 127
        %v690 = vpop.permute.xlu0 %689
        %691 = vrot.lane.b32.xlu0 %v664, 127
        %v692 = vpop.permute.xlu0 %691
        %693 = vrot.lane.b32.xlu0 %v665, 127
        %v694 = vpop.permute.xlu0 %693
        %695 = vrot.lane.b32.xlu0 %v666, 127
        %v696 = vpop.permute.xlu0 %695
        %697 = vrot.lane.b32.xlu0 %v667, 127
        %v698 = vpop.permute.xlu0 %697
        %699 = vrot.lane.b32.xlu0 %v668, 127
        %v700 = vpop.permute.xlu0 %699
        %701 = vrot.lane.b32.xlu0 %v669, 127
        %v702 = vpop.permute.xlu0 %701
        %703 = vrot.lane.b32.xlu0 %v670, 127
        %v704 = vpop.permute.xlu0 %703
        %705 = vrot.lane.b32.xlu0 %v671, 127
        %v706 = vpop.permute.xlu0 %705
        %707 = vrot.lane.b32.xlu0 %v672, 127
        %v708 = vpop.permute.xlu0 %707
        %721 = vrot.lane.b32.xlu0 %v661, 126
        %v722 = vpop.permute.xlu0 %721
        %723 = vrot.lane.b32.xlu0 %v662, 126
        %v724 = vpop.permute.xlu0 %723
        %725 = vrot.lane.b32.xlu0 %v663, 126
        %v726 = vpop.permute.xlu0 %725
        %727 = vrot.lane.b32.xlu0 %v664, 126
        %v728 = vpop.permute.xlu0 %727
        %729 = vrot.lane.b32.xlu0 %v665, 126
        %v730 = vpop.permute.xlu0 %729
        %731 = vrot.lane.b32.xlu0 %v666, 126
        %v732 = vpop.permute.xlu0 %731
        %733 = vrot.lane.b32.xlu0 %v667, 126
        %v734 = vpop.permute.xlu0 %733
        %735 = vrot.lane.b32.xlu0 %v668, 126
        %v736 = vpop.permute.xlu0 %735
        %737 = vrot.lane.b32.xlu0 %v669, 126
        %v738 = vpop.permute.xlu0 %737
        %739 = vrot.lane.b32.xlu0 %v670, 126
        %v740 = vpop.permute.xlu0 %739
        %741 = vrot.lane.b32.xlu0 %v671, 126
        %v742 = vpop.permute.xlu0 %741
        %743 = vrot.lane.b32.xlu0 %v672, 126
        %v744 = vpop.permute.xlu0 %743
        %757 = vrot.lane.b32.xlu0 %v661, 125
        %v758 = vpop.permute.xlu0 %757
        %759 = vrot.lane.b32.xlu0 %v662, 125
        %v760 = vpop.permute.xlu0 %759
        %761 = vrot.lane.b32.xlu0 %v663, 125
        %v762 = vpop.permute.xlu0 %761
        %763 = vrot.lane.b32.xlu0 %v664, 125
        %v764 = vpop.permute.xlu0 %763
        %765 = vrot.lane.b32.xlu0 %v665, 125
        %v766 = vpop.permute.xlu0 %765
        %767 = vrot.lane.b32.xlu0 %v666, 125
        %v768 = vpop.permute.xlu0 %767
        %769 = vrot.lane.b32.xlu0 %v667, 125
        %v770 = vpop.permute.xlu0 %769
        %771 = vrot.lane.b32.xlu0 %v668, 125
        %v772 = vpop.permute.xlu0 %771
        %773 = vrot.lane.b32.xlu0 %v669, 125
        %v774 = vpop.permute.xlu0 %773
        %775 = vrot.lane.b32.xlu0 %v670, 125
        %v776 = vpop.permute.xlu0 %775
        %777 = vrot.lane.b32.xlu0 %v671, 125
        %v778 = vpop.permute.xlu0 %777
        %779 = vrot.lane.b32.xlu0 %v672, 125
        %v780 = vpop.permute.xlu0 %779
        %793 = vrot.lane.b32.xlu0 %v661, 124
        %v794 = vpop.permute.xlu0 %793
        %795 = vrot.lane.b32.xlu0 %v662, 124
        %v796 = vpop.permute.xlu0 %795
        %797 = vrot.lane.b32.xlu0 %v663, 124
        %v798 = vpop.permute.xlu0 %797
        %799 = vrot.lane.b32.xlu0 %v664, 124
        %v800 = vpop.permute.xlu0 %799
        %801 = vrot.lane.b32.xlu0 %v665, 124
        %v802 = vpop.permute.xlu0 %801
        %803 = vrot.lane.b32.xlu0 %v666, 124
        %v804 = vpop.permute.xlu0 %803
        %805 = vrot.lane.b32.xlu0 %v667, 124
        %v806 = vpop.permute.xlu0 %805
        %807 = vrot.lane.b32.xlu0 %v668, 124
        %v808 = vpop.permute.xlu0 %807
        %809 = vrot.lane.b32.xlu0 %v669, 124
        %v810 = vpop.permute.xlu0 %809
        %811 = vrot.lane.b32.xlu0 %v670, 124
        %v812 = vpop.permute.xlu0 %811
        %813 = vrot.lane.b32.xlu0 %v671, 124
        %v814 = vpop.permute.xlu0 %813
        %815 = vrot.lane.b32.xlu0 %v672, 124
        %v816 = vpop.permute.xlu0 %815
        %v829 = vpack.c.bf16 %v662, %v661
        %v830 = vpack.c.bf16 %v664, %v663
        %v831 = vpack.c.bf16 %v666, %v665
        %v832 = vpack.c.bf16 %v668, %v667
        %v833 = vpack.c.bf16 %v670, %v669
        %v834 = vpack.c.bf16 %v672, %v671
        %v835 = vpack.c.bf16 %v688, %v686
        %v836 = vpack.c.bf16 %v692, %v690
        %v837 = vpack.c.bf16 %v696, %v694
        %v838 = vpack.c.bf16 %v700, %v698
        %v839 = vpack.c.bf16 %v704, %v702
        %v840 = vpack.c.bf16 %v708, %v706
        %v841 = vpack.c.bf16 %v724, %v722
        %v842 = vpack.c.bf16 %v728, %v726
        %v843 = vpack.c.bf16 %v732, %v730
        %v844 = vpack.c.bf16 %v736, %v734
        %v845 = vpack.c.bf16 %v740, %v738
        %v846 = vpack.c.bf16 %v744, %v742
        %v847 = vpack.c.bf16 %v760, %v758
        %v848 = vpack.c.bf16 %v764, %v762
        %v849 = vpack.c.bf16 %v768, %v766
        %v850 = vpack.c.bf16 %v772, %v770
        %v851 = vpack.c.bf16 %v776, %v774
        %v852 = vpack.c.bf16 %v780, %v778
        %v853 = vpack.c.bf16 %v796, %v794
        %v854 = vpack.c.bf16 %v800, %v798
        %v855 = vpack.c.bf16 %v804, %v802
        %v856 = vpack.c.bf16 %v808, %v806
        %v857 = vpack.c.bf16 %v812, %v810
        %v858 = vpack.c.bf16 %v816, %v814
        %v859 = vld [vmem:[#allocation5] sm:$0xff]
        %v860 = vld [vmem:[#allocation5 + $0x8] sm:$0xff]
        %v861 = vld [vmem:[#allocation5 + $0x10] sm:$0xff]
        %v862 = vld [vmem:[#allocation5 + $0x18] sm:$0xff]
        %v863 = vld [vmem:[#allocation5 + $0x20] sm:$0xff]
        %v864 = vld [vmem:[#allocation5 + $0x28] sm:$0xff]
        %v865 = vld [vmem:[#allocation5 + $0x30] sm:$0xff]
        %v866 = vld [vmem:[#allocation5 + $0x38] sm:$0xff]
        %v867 = vld [vmem:[#allocation5 + $0x40] sm:$0xff]
        %v868 = vld [vmem:[#allocation5 + $0x48] sm:$0xff]
        %v869 = vld [vmem:[#allocation5 + $0x50] sm:$0xff]
        %v870 = vld [vmem:[#allocation5 + $0x58] sm:$0xff]
        %v871 = vld [vmem:[#allocation5 + $0x60] sm:$0xff]
        %v872 = vld [vmem:[#allocation5 + $0x68] sm:$0xff]
        %v873 = vld [vmem:[#allocation5 + $0x70] sm:$0xff]
        %v874 = vld [vmem:[#allocation5 + $0x78] sm:$0xff]
        %v875 = vld [vmem:[#allocation5 + $0x80] sm:$0xff]
        %v876 = vld [vmem:[#allocation5 + $0x88] sm:$0xff]
        %v877 = vld [vmem:[#allocation5 + $0x90] sm:$0xff]
        %v878 = vld [vmem:[#allocation5 + $0x98] sm:$0xff]
        %v879 = vld [vmem:[#allocation5 + $0xa0] sm:$0xff]
        %v880 = vld [vmem:[#allocation5 + $0xa8] sm:$0xff]
        %v881 = vld [vmem:[#allocation5 + $0xb0] sm:$0xff]
        %v882 = vld [vmem:[#allocation5 + $0xb8] sm:$0xff]
        %v883 = vld [vmem:[%s3] sm:$0xff]
        %v884 = vld [vmem:[%s3 + $0x8] sm:$0xff]
        %v885 = vld [vmem:[%s3 + $0x10] sm:$0xff]
        %v886 = vld [vmem:[%s3 + $0x18] sm:$0xff]
        %v887 = vld [vmem:[%s3 + $0x20] sm:$0xff]
        %v888 = vld [vmem:[%s3 + $0x28] sm:$0xff]
        %v889 = vld [vmem:[%s3 + $0x30] sm:$0xff]
        %v890 = vld [vmem:[%s3 + $0x38] sm:$0xff]
        %v891 = vld [vmem:[%s3 + $0x40] sm:$0xff]
        %v892 = vld [vmem:[%s3 + $0x48] sm:$0xff]
        %v893 = vld [vmem:[%s3 + $0x50] sm:$0xff]
        %v894 = vld [vmem:[%s3 + $0x58] sm:$0xff]
        %896 = vset.pattern.permute.xlu0 0
        %897 = vperm.xlu0 %896, %v883
        %v898 = vpop.permute.xlu0 %897
        %901 = vset.pattern.permute.xlu0 0
        %902 = vperm.xlu0 %901, %v884
        %v903 = vpop.permute.xlu0 %902
        %906 = vset.pattern.permute.xlu0 0
        %907 = vperm.xlu0 %906, %v885
        %v908 = vpop.permute.xlu0 %907
        %911 = vset.pattern.permute.xlu0 0
        %912 = vperm.xlu0 %911, %v886
        %v913 = vpop.permute.xlu0 %912
        %916 = vset.pattern.permute.xlu0 0
        %917 = vperm.xlu0 %916, %v887
        %v918 = vpop.permute.xlu0 %917
        %921 = vset.pattern.permute.xlu0 0
        %922 = vperm.xlu0 %921, %v888
        %v923 = vpop.permute.xlu0 %922
        %926 = vset.pattern.permute.xlu0 0
        %927 = vperm.xlu0 %926, %v889
        %v928 = vpop.permute.xlu0 %927
        %931 = vset.pattern.permute.xlu0 0
        %932 = vperm.xlu0 %931, %v890
        %v933 = vpop.permute.xlu0 %932
        %936 = vset.pattern.permute.xlu0 0
        %937 = vperm.xlu0 %936, %v891
        %v938 = vpop.permute.xlu0 %937
        %941 = vset.pattern.permute.xlu0 0
        %942 = vperm.xlu0 %941, %v892
        %v943 = vpop.permute.xlu0 %942
        %946 = vset.pattern.permute.xlu0 0
        %947 = vperm.xlu0 %946, %v893
        %v948 = vpop.permute.xlu0 %947
        %951 = vset.pattern.permute.xlu0 0
        %952 = vperm.xlu0 %951, %v894
        %v953 = vpop.permute.xlu0 %952
        %v979 = vunpack.c.l.b16 %v859
        %v980 = vunpack.c.h.b16 %v859
        %v981 = vunpack.c.l.b16 %v860
        %v982 = vunpack.c.h.b16 %v860
        %v983 = vunpack.c.l.b16 %v861
        %v984 = vunpack.c.h.b16 %v861
        %v985 = vunpack.c.l.b16 %v862
        %v986 = vunpack.c.h.b16 %v862
        %v987 = vunpack.c.l.b16 %v863
        %v988 = vunpack.c.h.b16 %v863
        %v989 = vunpack.c.l.b16 %v864
        %v990 = vunpack.c.h.b16 %v864
        %v991 = vunpack.c.l.b16 %v865
        %v992 = vunpack.c.h.b16 %v865
        %v993 = vunpack.c.l.b16 %v866
        %v994 = vunpack.c.h.b16 %v866
        %v995 = vunpack.c.l.b16 %v867
        %v996 = vunpack.c.h.b16 %v867
        %v997 = vunpack.c.l.b16 %v868
        %v998 = vunpack.c.h.b16 %v868
        %v999 = vunpack.c.l.b16 %v869
        %v1000 = vunpack.c.h.b16 %v869
        %v1001 = vunpack.c.l.b16 %v870
        %v1002 = vunpack.c.h.b16 %v870
        %v1003 = vunpack.c.l.b16 %v871
        %v1004 = vunpack.c.h.b16 %v871
        %v1005 = vunpack.c.l.b16 %v872
        %v1006 = vunpack.c.h.b16 %v872
        %v1007 = vunpack.c.l.b16 %v873
        %v1008 = vunpack.c.h.b16 %v873
        %v1009 = vunpack.c.l.b16 %v874
        %v1010 = vunpack.c.h.b16 %v874
        %v1011 = vunpack.c.l.b16 %v875
        %v1012 = vunpack.c.h.b16 %v875
        %v1013 = vunpack.c.l.b16 %v876
        %v1014 = vunpack.c.h.b16 %v876
        %v1015 = vunpack.c.l.b16 %v877
        %v1016 = vunpack.c.h.b16 %v877
        %v1017 = vunpack.c.l.b16 %v878
        %v1018 = vunpack.c.h.b16 %v878
        %v1019 = vunpack.c.l.b16 %v879
        %v1020 = vunpack.c.h.b16 %v879
        %v1021 = vunpack.c.l.b16 %v880
        %v1022 = vunpack.c.h.b16 %v880
        %v1023 = vunpack.c.l.b16 %v881
        %v1024 = vunpack.c.h.b16 %v881
        %v1025 = vunpack.c.l.b16 %v882
        %v1026 = vunpack.c.h.b16 %v882
        %v1027 = vpack.c.b16 %v983, %v979
        %v1028 = vpack.c.b16 %v984, %v980
        %v1029 = vpack.c.b16 %v985, %v981
        %v1030 = vpack.c.b16 %v986, %v982
        %v1031 = vpack.c.b16 %v991, %v987
        %v1032 = vpack.c.b16 %v992, %v988
        %v1033 = vpack.c.b16 %v993, %v989
        %v1034 = vpack.c.b16 %v994, %v990
        %v1035 = vpack.c.b16 %v999, %v995
        %v1036 = vpack.c.b16 %v1000, %v996
        %v1037 = vpack.c.b16 %v1001, %v997
        %v1038 = vpack.c.b16 %v1002, %v998
        %v1039 = vpack.c.b16 %v1007, %v1003
        %v1040 = vpack.c.b16 %v1008, %v1004
        %v1041 = vpack.c.b16 %v1009, %v1005
        %v1042 = vpack.c.b16 %v1010, %v1006
        %v1043 = vpack.c.b16 %v1015, %v1011
        %v1044 = vpack.c.b16 %v1016, %v1012
        %v1045 = vpack.c.b16 %v1017, %v1013
        %v1046 = vpack.c.b16 %v1018, %v1014
        %v1047 = vpack.c.b16 %v1023, %v1019
        %v1048 = vpack.c.b16 %v1024, %v1020
        %v1049 = vpack.c.b16 %v1025, %v1021
        %v1050 = vpack.c.b16 %v1026, %v1022
        %vm1069 = vcmask 785408
        %v1071 = vsel %vm1069, %v1030, 0
        %v1074 = vsel %vm1069, %v1034, 0
        %v1077 = vsel %vm1069, %v1038, 0
        %v1080 = vsel %vm1069, %v1042, 0
        %v1083 = vsel %vm1069, %v1046, 0
        %v1086 = vsel %vm1069, %v1050, 0
        %1088 = vmatprep.subr.bf16.mxu0 0
        %1089 = vmatpush1.bf16.msra.mxu0 %v829
        %1090 = vmatprep.subr.bf16.mxu0 0
        %1091 = vmatpush1.bf16.msra.mxu0 %v830
        %1092 = vmatprep.subr.bf16.mxu0 0
        %1093 = vmatpush1.bf16.msra.mxu0 %v831
        %1094 = vmatprep.subr.bf16.mxu0 0
        %1095 = vmatpush1.bf16.msra.mxu0 %v832
        %1096 = vmatprep.subr.bf16.mxu0 0
        %1097 = vmatpush1.bf16.msra.mxu0 %v833
        %1098 = vmatprep.subr.bf16.mxu0 0
        %1099 = vmatpush1.bf16.msra.mxu0 %v834
        %1100 = vmatprep.subr.bf16.mxu0 0
        %1101 = vmatpush1.bf16.msra.mxu0 %v835
        %1102 = vmatprep.subr.bf16.mxu0 0
        %1103 = vmatpush1.bf16.msra.mxu0 %v836
        %1104 = vmatprep.subr.bf16.mxu0 0
        %1105 = vmatpush1.bf16.msra.mxu0 %v837
        %1106 = vmatprep.subr.bf16.mxu0 0
        %1107 = vmatpush1.bf16.msra.mxu0 %v838
        %1108 = vmatprep.subr.bf16.mxu0 0
        %1109 = vmatpush1.bf16.msra.mxu0 %v839
        %1110 = vmatprep.subr.bf16.mxu0 0
        %1111 = vmatpush1.bf16.msra.mxu0 %v840
        %1112 = vmatprep.subr.bf16.mxu0 0
        %1113 = vmatpush1.bf16.msra.mxu0 %v841
        %1114 = vmatprep.subr.bf16.mxu0 0
        %1115 = vmatpush1.bf16.msra.mxu0 %v842
        %1116 = vmatprep.subr.bf16.mxu0 0
        %1117 = vmatpush1.bf16.msra.mxu0 %v843
        %1118 = vmatprep.subr.bf16.mxu0 0
        %1119 = vmatpush1.bf16.msra.mxu0 %v844
        %1120 = vmatprep.mubr.bf16.mxu0 %v1028
        %1121 = vmatmul.mubr.bf16.gmra.mrb[0].mxu0 %v1027
        %v1122 = vpop.f32.mrb[0].mxu0
        %v1123 = vadd.f32 %v898, %v1122
        %v1124 = vpop.f32.mrb[0].mxu0
        %v1125 = vpop.f32.mrb[0].mxu0
        %v1126 = vadd.f32 %v903, %v1125
        %v1127 = vpop.f32.mrb[0].mxu0
        %1128 = vmatprep.mubr.bf16.mxu0 %v1032
        %1129 = vmatmul.mubr.bf16.gmra.mrb[0].mxu0 %v1031
        %v1130 = vpop.f32.mrb[0].mxu0
        %v1131 = vadd.f32 %v908, %v1130
        %v1132 = vpop.f32.mrb[0].mxu0
        %v1133 = vpop.f32.mrb[0].mxu0
        %v1134 = vadd.f32 %v913, %v1133
        %v1135 = vpop.f32.mrb[0].mxu0
        %1136 = vmatprep.mubr.bf16.mxu0 %v1036
        %1137 = vmatmul.mubr.bf16.gmra.mrb[0].mxu0 %v1035
        %v1138 = vpop.f32.mrb[0].mxu0
        %v1139 = vadd.f32 %v918, %v1138
        %v1140 = vpop.f32.mrb[0].mxu0
        %v1141 = vpop.f32.mrb[0].mxu0
        %v1142 = vadd.f32 %v923, %v1141
        %v1143 = vpop.f32.mrb[0].mxu0
        %1144 = vmatprep.mubr.bf16.mxu0 %v1040
        %1145 = vmatmul.mubr.bf16.gmra.mrb[0].mxu0 %v1039
        %v1146 = vpop.f32.mrb[0].mxu0
        %v1147 = vadd.f32 %v928, %v1146
        %v1148 = vpop.f32.mrb[0].mxu0
        %v1149 = vpop.f32.mrb[0].mxu0
        %v1150 = vadd.f32 %v933, %v1149
        %v1151 = vpop.f32.mrb[0].mxu0
        %1152 = vmatprep.mubr.bf16.mxu0 %v1044
        %1153 = vmatmul.mubr.bf16.gmra.mrb[0].mxu0 %v1043
        %v1154 = vpop.f32.mrb[0].mxu0
        %v1155 = vadd.f32 %v938, %v1154
        %v1156 = vpop.f32.mrb[0].mxu0
        %v1157 = vpop.f32.mrb[0].mxu0
        %v1158 = vadd.f32 %v943, %v1157
        %v1159 = vpop.f32.mrb[0].mxu0
        %1160 = vmatprep.mubr.bf16.mxu0 %v1048
        %1161 = vmatmul.mubr.bf16.gmra.mrb[0].mxu0 %v1047
        %v1162 = vpop.f32.mrb[0].mxu0
        %v1163 = vadd.f32 %v948, %v1162
        %v1164 = vpop.f32.mrb[0].mxu0
        %v1165 = vpop.f32.mrb[0].mxu0
        %v1166 = vadd.f32 %v953, %v1165
        %v1167 = vpop.f32.mrb[0].mxu0
        %1168 = vdwg.mxu0
        %1169 = vmatprep.subr.bf16.mxu0 0
        %1170 = vmatpush1.bf16.msra.mxu0 %v845
        %1171 = vmatprep.subr.bf16.mxu0 0
        %1172 = vmatpush1.bf16.msra.mxu0 %v846
        %1173 = vmatprep.subr.bf16.mxu0 0
        %1174 = vmatpush1.bf16.msra.mxu0 %v847
        %1175 = vmatprep.subr.bf16.mxu0 0
        %1176 = vmatpush1.bf16.msra.mxu0 %v848
        %1177 = vmatprep.subr.bf16.mxu0 0
        %1178 = vmatpush1.bf16.msra.mxu0 %v849
        %1179 = vmatprep.subr.bf16.mxu0 0
        %1180 = vmatpush1.bf16.msra.mxu0 %v850
        %1181 = vmatprep.subr.bf16.mxu0 0
        %1182 = vmatpush1.bf16.msra.mxu0 %v851
        %1183 = vmatprep.subr.bf16.mxu0 0
        %1184 = vmatpush1.bf16.msra.mxu0 %v852
        %1185 = vmatprep.subr.bf16.mxu0 0
        %1186 = vmatpush1.bf16.msra.mxu0 %v853
        %1187 = vmatprep.subr.bf16.mxu0 0
        %1188 = vmatpush1.bf16.msra.mxu0 %v854
        %1189 = vmatprep.subr.bf16.mxu0 0
        %1190 = vmatpush1.bf16.msra.mxu0 %v855
        %1191 = vmatprep.subr.bf16.mxu0 0
        %1192 = vmatpush1.bf16.msra.mxu0 %v856
        %1193 = vmatprep.subr.bf16.mxu0 0
        %1194 = vmatpush1.bf16.msra.mxu0 %v857
        %1195 = vmatprep.subr.bf16.mxu0 0
        %1196 = vmatpush1.bf16.msra.mxu0 %v858
        %1197 = vmatprep.subr.bf16.mxu0 0
        %1198 = vmatpush1.bf16.msra.mxu0 0
        %1199 = vmatprep.subr.bf16.mxu0 0
        %1200 = vmatpush1.bf16.msra.mxu0 0
        %1201 = vmatprep.mubr.bf16.mxu0 %v1071
        %1202 = vmatmul.mubr.bf16.gmra.mrb[0].mxu0 %v1029
        %v1203 = vpop.f32.mrb[0].mxu0
        %v1204 = vadd.f32 %v1123, %v1203
        %v1205 = vpop.f32.mrb[0].mxu0
        %v1206 = vpop.f32.mrb[0].mxu0
        %v1207 = vadd.f32 %v1126, %v1206
        %v1208 = vpop.f32.mrb[0].mxu0
        %1209 = vmatprep.mubr.bf16.mxu0 %v1074
        %1210 = vmatmul.mubr.bf16.gmra.mrb[0].mxu0 %v1033
        %v1211 = vpop.f32.mrb[0].mxu0
        %v1212 = vadd.f32 %v1131, %v1211
        %v1213 = vpop.f32.mrb[0].mxu0
        %v1214 = vpop.f32.mrb[0].mxu0
        %v1215 = vadd.f32 %v1134, %v1214
        %v1216 = vpop.f32.mrb[0].mxu0
        %1217 = vmatprep.mubr.bf16.mxu0 %v1077
        %1218 = vmatmul.mubr.bf16.gmra.mrb[0].mxu0 %v1037
        %v1219 = vpop.f32.mrb[0].mxu0
        %v1220 = vadd.f32 %v1139, %v1219
        %v1221 = vpop.f32.mrb[0].mxu0
        %v1222 = vpop.f32.mrb[0].mxu0
        %v1223 = vadd.f32 %v1142, %v1222
        %v1224 = vpop.f32.mrb[0].mxu0
        %1225 = vmatprep.mubr.bf16.mxu0 %v1080
        %1226 = vmatmul.mubr.bf16.gmra.mrb[0].mxu0 %v1041
        %v1227 = vpop.f32.mrb[0].mxu0
        %v1228 = vadd.f32 %v1147, %v1227
        %v1229 = vpop.f32.mrb[0].mxu0
        %v1230 = vpop.f32.mrb[0].mxu0
        %v1231 = vadd.f32 %v1150, %v1230
        %v1232 = vpop.f32.mrb[0].mxu0
        %1233 = vmatprep.mubr.bf16.mxu0 %v1083
        %1234 = vmatmul.mubr.bf16.gmra.mrb[0].mxu0 %v1045
        %v1235 = vpop.f32.mrb[0].mxu0
        %v1236 = vadd.f32 %v1155, %v1235
        %v1237 = vpop.f32.mrb[0].mxu0
        %v1238 = vpop.f32.mrb[0].mxu0
        %v1239 = vadd.f32 %v1158, %v1238
        %v1240 = vpop.f32.mrb[0].mxu0
        %1241 = vmatprep.mubr.bf16.mxu0 %v1086
        %1242 = vmatmul.mubr.bf16.gmra.mrb[0].mxu0 %v1049
        %v1243 = vpop.f32.mrb[0].mxu0
        %v1244 = vadd.f32 %v1163, %v1243
        %v1245 = vpop.f32.mrb[0].mxu0
        %v1246 = vpop.f32.mrb[0].mxu0
        %v1247 = vadd.f32 %v1166, %v1246
        %v1248 = vpop.f32.mrb[0].mxu0
        %1249 = vdwg.mxu0
        %v1250 = vld [vmem:[#allocation7] sm:$0xff]
        %v1251 = vld [vmem:[#allocation7 + $0x8] sm:$0xff]
        %v1252 = vld [vmem:[#allocation7 + $0x10] sm:$0xff]
        %v1253 = vld [vmem:[#allocation7 + $0x18] sm:$0xff]
        %v1254 = vld [vmem:[#allocation7 + $0x20] sm:$0xff]
        %v1255 = vld [vmem:[#allocation7 + $0x28] sm:$0xff]
        %v1256 = vld [vmem:[#allocation7 + $0x30] sm:$0xff]
        %v1257 = vld [vmem:[#allocation7 + $0x38] sm:$0xff]
        %v1258 = vld [vmem:[#allocation7 + $0x40] sm:$0xff]
        %v1259 = vld [vmem:[#allocation7 + $0x48] sm:$0xff]
        %v1260 = vld [vmem:[#allocation7 + $0x50] sm:$0xff]
        %v1261 = vld [vmem:[#allocation7 + $0x58] sm:$0xff]
        %v1262 = vld [vmem:[#allocation7 + $0x60] sm:$0xff]
        %v1263 = vld [vmem:[#allocation7 + $0x68] sm:$0xff]
        %v1264 = vld [vmem:[#allocation7 + $0x70] sm:$0xff]
        %v1265 = vld [vmem:[#allocation7 + $0x78] sm:$0xff]
        %v1266 = vld [vmem:[#allocation7 + $0x80] sm:$0xff]
        %v1267 = vld [vmem:[#allocation7 + $0x88] sm:$0xff]
        %v1268 = vld [vmem:[#allocation7 + $0x90] sm:$0xff]
        %v1269 = vld [vmem:[#allocation7 + $0x98] sm:$0xff]
        %v1270 = vld [vmem:[#allocation7 + $0xa0] sm:$0xff]
        %v1271 = vld [vmem:[#allocation7 + $0xa8] sm:$0xff]
        %v1272 = vld [vmem:[#allocation7 + $0xb0] sm:$0xff]
        %v1273 = vld [vmem:[#allocation7 + $0xb8] sm:$0xff]
        %v1298 = vunpack.c.l.b16 %v1250
        %v1299 = vunpack.c.h.b16 %v1250
        %v1300 = vunpack.c.l.b16 %v1251
        %v1301 = vunpack.c.h.b16 %v1251
        %v1302 = vunpack.c.l.b16 %v1252
        %v1303 = vunpack.c.h.b16 %v1252
        %v1304 = vunpack.c.l.b16 %v1253
        %v1305 = vunpack.c.h.b16 %v1253
        %v1306 = vunpack.c.l.b16 %v1254
        %v1307 = vunpack.c.h.b16 %v1254
        %v1308 = vunpack.c.l.b16 %v1255
        %v1309 = vunpack.c.h.b16 %v1255
        %v1310 = vunpack.c.l.b16 %v1256
        %v1311 = vunpack.c.h.b16 %v1256
        %v1312 = vunpack.c.l.b16 %v1257
        %v1313 = vunpack.c.h.b16 %v1257
        %v1314 = vunpack.c.l.b16 %v1258
        %v1315 = vunpack.c.h.b16 %v1258
        %v1316 = vunpack.c.l.b16 %v1259
        %v1317 = vunpack.c.h.b16 %v1259
        %v1318 = vunpack.c.l.b16 %v1260
        %v1319 = vunpack.c.h.b16 %v1260
        %v1320 = vunpack.c.l.b16 %v1261
        %v1321 = vunpack.c.h.b16 %v1261
        %v1322 = vunpack.c.l.b16 %v1262
        %v1323 = vunpack.c.h.b16 %v1262
        %v1324 = vunpack.c.l.b16 %v1263
        %v1325 = vunpack.c.h.b16 %v1263
        %v1326 = vunpack.c.l.b16 %v1264
        %v1327 = vunpack.c.h.b16 %v1264
        %v1328 = vunpack.c.l.b16 %v1265
        %v1329 = vunpack.c.h.b16 %v1265
        %v1330 = vunpack.c.l.b16 %v1266
        %v1331 = vunpack.c.h.b16 %v1266
        %v1332 = vunpack.c.l.b16 %v1267
        %v1333 = vunpack.c.h.b16 %v1267
        %v1334 = vunpack.c.l.b16 %v1268
        %v1335 = vunpack.c.h.b16 %v1268
        %v1336 = vunpack.c.l.b16 %v1269
        %v1337 = vunpack.c.h.b16 %v1269
        %v1338 = vunpack.c.l.b16 %v1270
        %v1339 = vunpack.c.h.b16 %v1270
        %v1340 = vunpack.c.l.b16 %v1271
        %v1341 = vunpack.c.h.b16 %v1271
        %v1342 = vunpack.c.l.b16 %v1272
        %v1343 = vunpack.c.h.b16 %v1272
        %v1344 = vunpack.c.l.b16 %v1273
        %v1345 = vunpack.c.h.b16 %v1273
        %v1346 = vpack.c.b16 %v1302, %v1298
        %v1347 = vpack.c.b16 %v1303, %v1299
        %v1348 = vpack.c.b16 %v1304, %v1300
        %v1349 = vpack.c.b16 %v1305, %v1301
        %v1350 = vpack.c.b16 %v1310, %v1306
        %v1351 = vpack.c.b16 %v1311, %v1307
        %v1352 = vpack.c.b16 %v1312, %v1308
        %v1353 = vpack.c.b16 %v1313, %v1309
        %v1354 = vpack.c.b16 %v1318, %v1314
        %v1355 = vpack.c.b16 %v1319, %v1315
        %v1356 = vpack.c.b16 %v1320, %v1316
        %v1357 = vpack.c.b16 %v1321, %v1317
        %v1358 = vpack.c.b16 %v1326, %v1322
        %v1359 = vpack.c.b16 %v1327, %v1323
        %v1360 = vpack.c.b16 %v1328, %v1324
        %v1361 = vpack.c.b16 %v1329, %v1325
        %v1362 = vpack.c.b16 %v1334, %v1330
        %v1363 = vpack.c.b16 %v1335, %v1331
        %v1364 = vpack.c.b16 %v1336, %v1332
        %v1365 = vpack.c.b16 %v1337, %v1333
        %v1366 = vpack.c.b16 %v1342, %v1338
        %v1367 = vpack.c.b16 %v1343, %v1339
        %v1368 = vpack.c.b16 %v1344, %v1340
        %v1369 = vpack.c.b16 %v1345, %v1341
        %v1389 = vsel %vm1069, %v1349, 0
        %v1392 = vsel %vm1069, %v1353, 0
        %v1395 = vsel %vm1069, %v1357, 0
        %v1398 = vsel %vm1069, %v1361, 0
        %v1401 = vsel %vm1069, %v1365, 0
        %v1404 = vsel %vm1069, %v1369, 0
        %1406 = vmatprep.subr.bf16.mxu0 0
        %1407 = vmatpush1.bf16.msra.mxu0 %v829
        %1408 = vmatprep.subr.bf16.mxu0 0
        %1409 = vmatpush1.bf16.msra.mxu0 %v830
        %1410 = vmatprep.subr.bf16.mxu0 0
        %1411 = vmatpush1.bf16.msra.mxu0 %v831
        %1412 = vmatprep.subr.bf16.mxu0 0
        %1413 = vmatpush1.bf16.msra.mxu0 %v832
        %1414 = vmatprep.subr.bf16.mxu0 0
        %1415 = vmatpush1.bf16.msra.mxu0 %v833
        %1416 = vmatprep.subr.bf16.mxu0 0
        %1417 = vmatpush1.bf16.msra.mxu0 %v834
        %1418 = vmatprep.subr.bf16.mxu0 0
        %1419 = vmatpush1.bf16.msra.mxu0 %v835
        %1420 = vmatprep.subr.bf16.mxu0 0
        %1421 = vmatpush1.bf16.msra.mxu0 %v836
        %1422 = vmatprep.subr.bf16.mxu0 0
        %1423 = vmatpush1.bf16.msra.mxu0 %v837
        %1424 = vmatprep.subr.bf16.mxu0 0
        %1425 = vmatpush1.bf16.msra.mxu0 %v838
        %1426 = vmatprep.subr.bf16.mxu0 0
        %1427 = vmatpush1.bf16.msra.mxu0 %v839
        %1428 = vmatprep.subr.bf16.mxu0 0
        %1429 = vmatpush1.bf16.msra.mxu0 %v840
        %1430 = vmatprep.subr.bf16.mxu0 0
        %1431 = vmatpush1.bf16.msra.mxu0 %v841
        %1432 = vmatprep.subr.bf16.mxu0 0
        %1433 = vmatpush1.bf16.msra.mxu0 %v842
        %1434 = vmatprep.subr.bf16.mxu0 0
        %1435 = vmatpush1.bf16.msra.mxu0 %v843
        %1436 = vmatprep.subr.bf16.mxu0 0
        %1437 = vmatpush1.bf16.msra.mxu0 %v844
        %1438 = vmatprep.mubr.bf16.mxu0 %v1347
        %1439 = vmatmul.mubr.bf16.gmra.mrb[0].mxu0 %v1346
        %v1440 = vpop.f32.mrb[0].mxu0
        %v1441 = vadd.f32 %v898, %v1440
        %v1442 = vpop.f32.mrb[0].mxu0
        %v1443 = vpop.f32.mrb[0].mxu0
        %v1444 = vadd.f32 %v903, %v1443
        %v1445 = vpop.f32.mrb[0].mxu0
        %1446 = vmatprep.mubr.bf16.mxu0 %v1351
        %1447 = vmatmul.mubr.bf16.gmra.mrb[0].mxu0 %v1350
        %v1448 = vpop.f32.mrb[0].mxu0
        %v1449 = vadd.f32 %v908, %v1448
        %v1450 = vpop.f32.mrb[0].mxu0
        %v1451 = vpop.f32.mrb[0].mxu0
        %v1452 = vadd.f32 %v913, %v1451
        %v1453 = vpop.f32.mrb[0].mxu0
        %1454 = vmatprep.mubr.bf16.mxu0 %v1355
        %1455 = vmatmul.mubr.bf16.gmra.mrb[0].mxu0 %v1354
        %v1456 = vpop.f32.mrb[0].mxu0
        %v1457 = vadd.f32 %v918, %v1456
        %v1458 = vpop.f32.mrb[0].mxu0
        %v1459 = vpop.f32.mrb[0].mxu0
        %v1460 = vadd.f32 %v923, %v1459
        %v1461 = vpop.f32.mrb[0].mxu0
        %1462 = vmatprep.mubr.bf16.mxu0 %v1359
        %1463 = vmatmul.mubr.bf16.gmra.mrb[0].mxu0 %v1358
        %v1464 = vpop.f32.mrb[0].mxu0
        %v1465 = vadd.f32 %v928, %v1464
        %v1466 = vpop.f32.mrb[0].mxu0
        %v1467 = vpop.f32.mrb[0].mxu0
        %v1468 = vadd.f32 %v933, %v1467
        %v1469 = vpop.f32.mrb[0].mxu0
        %1470 = vmatprep.mubr.bf16.mxu0 %v1363
        %1471 = vmatmul.mubr.bf16.gmra.mrb[0].mxu0 %v1362
        %v1472 = vpop.f32.mrb[0].mxu0
        %v1473 = vadd.f32 %v938, %v1472
        %v1474 = vpop.f32.mrb[0].mxu0
        %v1475 = vpop.f32.mrb[0].mxu0
        %v1476 = vadd.f32 %v943, %v1475
        %v1477 = vpop.f32.mrb[0].mxu0
        %1478 = vmatprep.mubr.bf16.mxu0 %v1367
        %1479 = vmatmul.mubr.bf16.gmra.mrb[0].mxu0 %v1366
        %v1480 = vpop.f32.mrb[0].mxu0
        %v1481 = vadd.f32 %v948, %v1480
        %v1482 = vpop.f32.mrb[0].mxu0
        %v1483 = vpop.f32.mrb[0].mxu0
        %v1484 = vadd.f32 %v953, %v1483
        %v1485 = vpop.f32.mrb[0].mxu0
        %1486 = vdwg.mxu0
        %1487 = vmatprep.subr.bf16.mxu0 0
        %1488 = vmatpush1.bf16.msra.mxu0 %v845
        %1489 = vmatprep.subr.bf16.mxu0 0
        %1490 = vmatpush1.bf16.msra.mxu0 %v846
        %1491 = vmatprep.subr.bf16.mxu0 0
        %1492 = vmatpush1.bf16.msra.mxu0 %v847
        %1493 = vmatprep.subr.bf16.mxu0 0
        %1494 = vmatpush1.bf16.msra.mxu0 %v848
        %1495 = vmatprep.subr.bf16.mxu0 0
        %1496 = vmatpush1.bf16.msra.mxu0 %v849
        %1497 = vmatprep.subr.bf16.mxu0 0
        %1498 = vmatpush1.bf16.msra.mxu0 %v850
        %1499 = vmatprep.subr.bf16.mxu0 0
        %1500 = vmatpush1.bf16.msra.mxu0 %v851
        %1501 = vmatprep.subr.bf16.mxu0 0
        %1502 = vmatpush1.bf16.msra.mxu0 %v852
        %1503 = vmatprep.subr.bf16.mxu0 0
        %1504 = vmatpush1.bf16.msra.mxu0 %v853
        %1505 = vmatprep.subr.bf16.mxu0 0
        %1506 = vmatpush1.bf16.msra.mxu0 %v854
        %1507 = vmatprep.subr.bf16.mxu0 0
        %1508 = vmatpush1.bf16.msra.mxu0 %v855
        %1509 = vmatprep.subr.bf16.mxu0 0
        %1510 = vmatpush1.bf16.msra.mxu0 %v856
        %1511 = vmatprep.subr.bf16.mxu0 0
        %1512 = vmatpush1.bf16.msra.mxu0 %v857
        %1513 = vmatprep.subr.bf16.mxu0 0
        %1514 = vmatpush1.bf16.msra.mxu0 %v858
        %1515 = vmatprep.subr.bf16.mxu0 0
        %1516 = vmatpush1.bf16.msra.mxu0 0
        %1517 = vmatprep.subr.bf16.mxu0 0
        %1518 = vmatpush1.bf16.msra.mxu0 0
        %1519 = vmatprep.mubr.bf16.mxu0 %v1389
        %1520 = vmatmul.mubr.bf16.gmra.mrb[0].mxu0 %v1348
        %v1521 = vpop.f32.mrb[0].mxu0
        %v1522 = vadd.f32 %v1441, %v1521
        %v1523 = vpop.f32.mrb[0].mxu0
        %v1524 = vpop.f32.mrb[0].mxu0
        %v1525 = vadd.f32 %v1444, %v1524
        %v1526 = vpop.f32.mrb[0].mxu0
        %1527 = vmatprep.mubr.bf16.mxu0 %v1392
        %1528 = vmatmul.mubr.bf16.gmra.mrb[0].mxu0 %v1352
        %v1529 = vpop.f32.mrb[0].mxu0
        %v1530 = vadd.f32 %v1449, %v1529
        %v1531 = vpop.f32.mrb[0].mxu0
        %v1532 = vpop.f32.mrb[0].mxu0
        %v1533 = vadd.f32 %v1452, %v1532
        %v1534 = vpop.f32.mrb[0].mxu0
        %1535 = vmatprep.mubr.bf16.mxu0 %v1395
        %1536 = vmatmul.mubr.bf16.gmra.mrb[0].mxu0 %v1356
        %v1537 = vpop.f32.mrb[0].mxu0
        %v1538 = vadd.f32 %v1457, %v1537
        %v1539 = vpop.f32.mrb[0].mxu0
        %v1540 = vpop.f32.mrb[0].mxu0
        %v1541 = vadd.f32 %v1460, %v1540
        %v1542 = vpop.f32.mrb[0].mxu0
        %1543 = vmatprep.mubr.bf16.mxu0 %v1398
        %1544 = vmatmul.mubr.bf16.gmra.mrb[0].mxu0 %v1360
        %v1545 = vpop.f32.mrb[0].mxu0
        %v1546 = vadd.f32 %v1465, %v1545
        %v1547 = vpop.f32.mrb[0].mxu0
        %v1548 = vpop.f32.mrb[0].mxu0
        %v1549 = vadd.f32 %v1468, %v1548
        %v1550 = vpop.f32.mrb[0].mxu0
        %1551 = vmatprep.mubr.bf16.mxu0 %v1401
        %1552 = vmatmul.mubr.bf16.gmra.mrb[0].mxu0 %v1364
        %v1553 = vpop.f32.mrb[0].mxu0
        %v1554 = vadd.f32 %v1473, %v1553
        %v1555 = vpop.f32.mrb[0].mxu0
        %v1556 = vpop.f32.mrb[0].mxu0
        %v1557 = vadd.f32 %v1476, %v1556
        %v1558 = vpop.f32.mrb[0].mxu0
        %1559 = vmatprep.mubr.bf16.mxu0 %v1404
        %1560 = vmatmul.mubr.bf16.gmra.mrb[0].mxu0 %v1368
        %v1561 = vpop.f32.mrb[0].mxu0
        %v1562 = vadd.f32 %v1481, %v1561
        %v1563 = vpop.f32.mrb[0].mxu0
        %v1564 = vpop.f32.mrb[0].mxu0
        %v1565 = vadd.f32 %v1484, %v1564
        %v1566 = vpop.f32.mrb[0].mxu0
        %1567 = vdwg.mxu0
        %v1568 = vmax.f32 %v1204, 0.0
        %v1569 = vmax.f32 %v1207, 0.0
        %v1570 = vmax.f32 %v1212, 0.0
        %v1571 = vmax.f32 %v1215, 0.0
        %v1572 = vmax.f32 %v1220, 0.0
        %v1573 = vmax.f32 %v1223, 0.0
        %v1574 = vmax.f32 %v1228, 0.0
        %v1575 = vmax.f32 %v1231, 0.0
        %v1576 = vmax.f32 %v1236, 0.0
        %v1577 = vmax.f32 %v1239, 0.0
        %v1578 = vmax.f32 %v1244, 0.0
        %v1579 = vmax.f32 %v1247, 0.0
        %v1580 = vmax.f32 %v1522, 0.0
        %v1581 = vmax.f32 %v1525, 0.0
        %v1582 = vmax.f32 %v1530, 0.0
        %v1583 = vmax.f32 %v1533, 0.0
        %v1584 = vmax.f32 %v1538, 0.0
        %v1585 = vmax.f32 %v1541, 0.0
        %v1586 = vmax.f32 %v1546, 0.0
        %v1587 = vmax.f32 %v1549, 0.0
        %v1588 = vmax.f32 %v1554, 0.0
        %v1589 = vmax.f32 %v1557, 0.0
        %v1590 = vmax.f32 %v1562, 0.0
        %v1591 = vmax.f32 %v1565, 0.0
        %v1592 = vmax.f32 %v1568, %v1580
        %v1593 = vmax.f32 %v1569, %v1581
        %v1594 = vmax.f32 %v1570, %v1582
        %v1595 = vmax.f32 %v1571, %v1583
        %v1596 = vmax.f32 %v1572, %v1584
        %v1597 = vmax.f32 %v1573, %v1585
        %v1598 = vmax.f32 %v1574, %v1586
        %v1599 = vmax.f32 %v1575, %v1587
        %v1600 = vmax.f32 %v1576, %v1588
        %v1601 = vmax.f32 %v1577, %v1589
        %v1602 = vmax.f32 %v1578, %v1590
        %v1603 = vmax.f32 %v1579, %v1591
        %v1604 = vld [vmem:[%s4] sm:$0xff]
        %v1605 = vld [vmem:[%s4 + $0x8] sm:$0xff]
        %v1606 = vld [vmem:[%s4 + $0x10] sm:$0xff]
        %v1607 = vld [vmem:[%s4 + $0x18] sm:$0xf]
        %vm1608 = vcmask 228352
        %v1610 = vsel %vm1608, %v1592, 0
        %v1613 = vsel %vm1608, %v1593, 0
        %v1616 = vsel %vm1608, %v1594, 0
        %v1619 = vsel %vm1608, %v1595, 0
        %v1622 = vsel %vm1608, %v1596, 0
        %v1625 = vsel %vm1608, %v1597, 0
        %v1628 = vsel %vm1608, %v1598, 0
        %v1631 = vsel %vm1608, %v1599, 0
        %v1634 = vsel %vm1608, %v1600, 0
        %v1637 = vsel %vm1608, %v1601, 0
        %v1640 = vsel %vm1608, %v1602, 0
        %v1643 = vsel %vm1608, %v1603, 0
        %vm1645 = vcmask 1043456
        %v1647 = vsel %vm1645, %v1607, 0
        %1649 = vmatprep.subr.mxu0 0.0
        %1650 = vmatpush1.msra.mxu0 %v1604
        %1651 = vmatprep.subr.mxu0 0.0
        %1652 = vmatpush1.msra.mxu0 %v1605
        %1653 = vmatprep.subr.mxu0 0.0
        %1654 = vmatpush1.msra.mxu0 %v1606
        %1655 = vmatprep.subr.mxu0 0.0
        %1656 = vmatpush1.msra.mxu0 %v1647
        %1657 = vmatprep.subr.mxu0 0.0
        %1658 = vmatpush1.msra.mxu0 0.0
        %1659 = vmatprep.subr.mxu0 0.0
        %1660 = vmatpush1.msra.mxu0 0.0
        %1661 = vmatprep.subr.mxu0 0.0
        %1662 = vmatpush1.msra.mxu0 0.0
        %1663 = vmatprep.subr.mxu0 0.0
        %1664 = vmatpush1.msra.mxu0 0.0
        %1665 = vmatprep.subr.mxu0 0.0
        %1666 = vmatpush1.msra.mxu0 0.0
        %1667 = vmatprep.subr.mxu0 0.0
        %1668 = vmatpush1.msra.mxu0 0.0
        %1669 = vmatprep.subr.mxu0 0.0
        %1670 = vmatpush1.msra.mxu0 0.0
        %1671 = vmatprep.subr.mxu0 0.0
        %1672 = vmatpush1.msra.mxu0 0.0
        %1673 = vmatprep.subr.mxu0 0.0
        %1674 = vmatpush1.msra.mxu0 0.0
        %1675 = vmatprep.subr.mxu0 0.0
        %1676 = vmatpush1.msra.mxu0 0.0
        %1677 = vmatprep.subr.mxu0 0.0
        %1678 = vmatpush1.msra.mxu0 0.0
        %1679 = vmatprep.subr.mxu0 0.0
        %1680 = vmatpush1.msra.mxu0 0.0
        %1681 = vmatprep.subr.mxu0 0.0
        %1682 = vmatpush1.msra.mxu0 0.0
        %1683 = vmatprep.subr.mxu0 0.0
        %1684 = vmatpush1.msra.mxu0 0.0
        %1685 = vmatprep.subr.mxu0 0.0
        %1686 = vmatpush1.msra.mxu0 0.0
        %1687 = vmatprep.subr.mxu0 0.0
        %1688 = vmatpush1.msra.mxu0 0.0
        %1689 = vmatprep.subr.mxu0 0.0
        %1690 = vmatpush1.msra.mxu0 0.0
        %1691 = vmatprep.subr.mxu0 0.0
        %1692 = vmatpush1.msra.mxu0 0.0
        %1693 = vmatprep.subr.mxu0 0.0
        %1694 = vmatpush1.msra.mxu0 0.0
        %1695 = vmatprep.subr.mxu0 0.0
        %1696 = vmatpush1.msra.mxu0 0.0
        %1697 = vmatprep.subr.mxu0 0.0
        %1698 = vmatpush1.msra.mxu0 0.0
        %1699 = vmatprep.subr.mxu0 0.0
        %1700 = vmatpush1.msra.mxu0 0.0
        %1701 = vmatprep.subr.mxu0 0.0
        %1702 = vmatpush1.msra.mxu0 0.0
        %1703 = vmatprep.subr.mxu0 0.0
        %1704 = vmatpush1.msra.mxu0 0.0
        %1705 = vmatprep.subr.mxu0 0.0
        %1706 = vmatpush1.msra.mxu0 0.0
        %1707 = vmatprep.subr.mxu0 0.0
        %1708 = vmatpush1.msra.mxu0 0.0
        %1709 = vmatprep.subr.mxu0 0.0
        %1710 = vmatpush1.msra.mxu0 0.0
        %1711 = vmatprep.subr.mxu0 0.0
        %1712 = vmatpush1.msra.mxu0 0.0
        %1713 = vmatprep.mubr.f32.mxu0 0.0
        %1714 = vmatmul.mubr.f32.gmra.mrb[0].mxu0 %v1610
        %v1715 = vpop.f32.mrb[0].mxu0
        %v1716 = vadd.f32 0.0, %v1715
        %v1717 = vpop.f32.mrb[0].mxu0
        %1718 = vmatprep.mubr.f32.mxu0 0.0
        %1719 = vmatmul.mubr.f32.gmra.mrb[0].mxu0 %v1613
        %v1720 = vpop.f32.mrb[0].mxu0
        %v1721 = vadd.f32 0.0, %v1720
        %v1722 = vpop.f32.mrb[0].mxu0
        %1723 = vmatprep.mubr.f32.mxu0 0.0
        %1724 = vmatmul.mubr.f32.gmra.mrb[0].mxu0 %v1616
        %v1725 = vpop.f32.mrb[0].mxu0
        %v1726 = vadd.f32 0.0, %v1725
        %v1727 = vpop.f32.mrb[0].mxu0
        %1728 = vmatprep.mubr.f32.mxu0 0.0
        %1729 = vmatmul.mubr.f32.gmra.mrb[0].mxu0 %v1619
        %v1730 = vpop.f32.mrb[0].mxu0
        %v1731 = vadd.f32 0.0, %v1730
        %v1732 = vpop.f32.mrb[0].mxu0
        %1733 = vmatprep.mubr.f32.mxu0 0.0
        %1734 = vmatmul.mubr.f32.gmra.mrb[0].mxu0 %v1622
        %v1735 = vpop.f32.mrb[0].mxu0
        %v1736 = vadd.f32 0.0, %v1735
        %v1737 = vpop.f32.mrb[0].mxu0
        %1738 = vmatprep.mubr.f32.mxu0 0.0
        %1739 = vmatmul.mubr.f32.gmra.mrb[0].mxu0 %v1625
        %v1740 = vpop.f32.mrb[0].mxu0
        %v1741 = vadd.f32 0.0, %v1740
        %v1742 = vpop.f32.mrb[0].mxu0
        %1743 = vmatprep.mubr.f32.mxu0 0.0
        %1744 = vmatmul.mubr.f32.gmra.mrb[0].mxu0 %v1628
        %v1745 = vpop.f32.mrb[0].mxu0
        %v1746 = vadd.f32 0.0, %v1745
        %v1747 = vpop.f32.mrb[0].mxu0
        %1748 = vmatprep.mubr.f32.mxu0 0.0
        %1749 = vmatmul.mubr.f32.gmra.mrb[0].mxu0 %v1631
        %v1750 = vpop.f32.mrb[0].mxu0
        %v1751 = vadd.f32 0.0, %v1750
        %v1752 = vpop.f32.mrb[0].mxu0
        %1753 = vmatprep.mubr.f32.mxu0 0.0
        %1754 = vmatmul.mubr.f32.gmra.mrb[0].mxu0 %v1634
        %v1755 = vpop.f32.mrb[0].mxu0
        %v1756 = vadd.f32 0.0, %v1755
        %v1757 = vpop.f32.mrb[0].mxu0
        %1758 = vmatprep.mubr.f32.mxu0 0.0
        %1759 = vmatmul.mubr.f32.gmra.mrb[0].mxu0 %v1637
        %v1760 = vpop.f32.mrb[0].mxu0
        %v1761 = vadd.f32 0.0, %v1760
        %v1762 = vpop.f32.mrb[0].mxu0
        %1763 = vmatprep.mubr.f32.mxu0 0.0
        %1764 = vmatmul.mubr.f32.gmra.mrb[0].mxu0 %v1640
        %v1765 = vpop.f32.mrb[0].mxu0
        %v1766 = vadd.f32 0.0, %v1765
        %v1767 = vpop.f32.mrb[0].mxu0
        %1768 = vmatprep.mubr.f32.mxu0 0.0
        %1769 = vmatmul.mubr.f32.gmra.mrb[0].mxu0 %v1643
        %v1770 = vpop.f32.mrb[0].mxu0
        %v1771 = vadd.f32 0.0, %v1770
        %v1772 = vpop.f32.mrb[0].mxu0
        %1773 = vdwg.mxu0
        %v1774 = vld [vmem:[%s5] sm:$0xff]
        %v1775 = vld [vmem:[%s5 + $0x8] sm:$0xff]
        %v1776 = vld [vmem:[%s5 + $0x10] sm:$0xff]
        %v1777 = vld [vmem:[%s5 + $0x18] sm:$0xf]
        %v1779 = vsel %vm1645, %v1777, 0
        %1781 = vmatprep.subr.mxu0 0.0
        %1782 = vmatpush1.msra.mxu0 %v1774
        %1783 = vmatprep.subr.mxu0 0.0
        %1784 = vmatpush1.msra.mxu0 %v1775
        %1785 = vmatprep.subr.mxu0 0.0
        %1786 = vmatpush1.msra.mxu0 %v1776
        %1787 = vmatprep.subr.mxu0 0.0
        %1788 = vmatpush1.msra.mxu0 %v1779
        %1789 = vmatprep.subr.mxu0 0.0
        %1790 = vmatpush1.msra.mxu0 0.0
        %1791 = vmatprep.subr.mxu0 0.0
        %1792 = vmatpush1.msra.mxu0 0.0
        %1793 = vmatprep.subr.mxu0 0.0
        %1794 = vmatpush1.msra.mxu0 0.0
        %1795 = vmatprep.subr.mxu0 0.0
        %1796 = vmatpush1.msra.mxu0 0.0
        %1797 = vmatprep.subr.mxu0 0.0
        %1798 = vmatpush1.msra.mxu0 0.0
        %1799 = vmatprep.subr.mxu0 0.0
        %1800 = vmatpush1.msra.mxu0 0.0
        %1801 = vmatprep.subr.mxu0 0.0
        %1802 = vmatpush1.msra.mxu0 0.0
        %1803 = vmatprep.subr.mxu0 0.0
        %1804 = vmatpush1.msra.mxu0 0.0
        %1805 = vmatprep.subr.mxu0 0.0
        %1806 = vmatpush1.msra.mxu0 0.0
        %1807 = vmatprep.subr.mxu0 0.0
        %1808 = vmatpush1.msra.mxu0 0.0
        %1809 = vmatprep.subr.mxu0 0.0
        %1810 = vmatpush1.msra.mxu0 0.0
        %1811 = vmatprep.subr.mxu0 0.0
        %1812 = vmatpush1.msra.mxu0 0.0
        %1813 = vmatprep.subr.mxu0 0.0
        %1814 = vmatpush1.msra.mxu0 0.0
        %1815 = vmatprep.subr.mxu0 0.0
        %1816 = vmatpush1.msra.mxu0 0.0
        %1817 = vmatprep.subr.mxu0 0.0
        %1818 = vmatpush1.msra.mxu0 0.0
        %1819 = vmatprep.subr.mxu0 0.0
        %1820 = vmatpush1.msra.mxu0 0.0
        %1821 = vmatprep.subr.mxu0 0.0
        %1822 = vmatpush1.msra.mxu0 0.0
        %1823 = vmatprep.subr.mxu0 0.0
        %1824 = vmatpush1.msra.mxu0 0.0
        %1825 = vmatprep.subr.mxu0 0.0
        %1826 = vmatpush1.msra.mxu0 0.0
        %1827 = vmatprep.subr.mxu0 0.0
        %1828 = vmatpush1.msra.mxu0 0.0
        %1829 = vmatprep.subr.mxu0 0.0
        %1830 = vmatpush1.msra.mxu0 0.0
        %1831 = vmatprep.subr.mxu0 0.0
        %1832 = vmatpush1.msra.mxu0 0.0
        %1833 = vmatprep.subr.mxu0 0.0
        %1834 = vmatpush1.msra.mxu0 0.0
        %1835 = vmatprep.subr.mxu0 0.0
        %1836 = vmatpush1.msra.mxu0 0.0
        %1837 = vmatprep.subr.mxu0 0.0
        %1838 = vmatpush1.msra.mxu0 0.0
        %1839 = vmatprep.subr.mxu0 0.0
        %1840 = vmatpush1.msra.mxu0 0.0
        %1841 = vmatprep.subr.mxu0 0.0
        %1842 = vmatpush1.msra.mxu0 0.0
        %1843 = vmatprep.subr.mxu0 0.0
        %1844 = vmatpush1.msra.mxu0 0.0
        %1845 = vmatprep.mubr.f32.mxu0 0.0
        %1846 = vmatmul.mubr.f32.gmra.mrb[0].mxu0 %v1610
        %v1847 = vpop.f32.mrb[0].mxu0
        %v1848 = vadd.f32 0.0, %v1847
        %v1849 = vpop.f32.mrb[0].mxu0
        %1850 = vmatprep.mubr.f32.mxu0 0.0
        %1851 = vmatmul.mubr.f32.gmra.mrb[0].mxu0 %v1613
        %v1852 = vpop.f32.mrb[0].mxu0
        %v1853 = vadd.f32 0.0, %v1852
        %v1854 = vpop.f32.mrb[0].mxu0
        %1855 = vmatprep.mubr.f32.mxu0 0.0
        %1856 = vmatmul.mubr.f32.gmra.mrb[0].mxu0 %v1616
        %v1857 = vpop.f32.mrb[0].mxu0
        %v1858 = vadd.f32 0.0, %v1857
        %v1859 = vpop.f32.mrb[0].mxu0
        %1860 = vmatprep.mubr.f32.mxu0 0.0
        %1861 = vmatmul.mubr.f32.gmra.mrb[0].mxu0 %v1619
        %v1862 = vpop.f32.mrb[0].mxu0
        %v1863 = vadd.f32 0.0, %v1862
        %v1864 = vpop.f32.mrb[0].mxu0
        %1865 = vmatprep.mubr.f32.mxu0 0.0
        %1866 = vmatmul.mubr.f32.gmra.mrb[0].mxu0 %v1622
        %v1867 = vpop.f32.mrb[0].mxu0
        %v1868 = vadd.f32 0.0, %v1867
        %v1869 = vpop.f32.mrb[0].mxu0
        %1870 = vmatprep.mubr.f32.mxu0 0.0
        %1871 = vmatmul.mubr.f32.gmra.mrb[0].mxu0 %v1625
        %v1872 = vpop.f32.mrb[0].mxu0
        %v1873 = vadd.f32 0.0, %v1872
        %v1874 = vpop.f32.mrb[0].mxu0
        %1875 = vmatprep.mubr.f32.mxu0 0.0
        %1876 = vmatmul.mubr.f32.gmra.mrb[0].mxu0 %v1628
        %v1877 = vpop.f32.mrb[0].mxu0
        %v1878 = vadd.f32 0.0, %v1877
        %v1879 = vpop.f32.mrb[0].mxu0
        %1880 = vmatprep.mubr.f32.mxu0 0.0
        %1881 = vmatmul.mubr.f32.gmra.mrb[0].mxu0 %v1631
        %v1882 = vpop.f32.mrb[0].mxu0
        %v1883 = vadd.f32 0.0, %v1882
        %v1884 = vpop.f32.mrb[0].mxu0
        %1885 = vmatprep.mubr.f32.mxu0 0.0
        %1886 = vmatmul.mubr.f32.gmra.mrb[0].mxu0 %v1634
        %v1887 = vpop.f32.mrb[0].mxu0
        %v1888 = vadd.f32 0.0, %v1887
        %v1889 = vpop.f32.mrb[0].mxu0
        %1890 = vmatprep.mubr.f32.mxu0 0.0
        %1891 = vmatmul.mubr.f32.gmra.mrb[0].mxu0 %v1637
        %v1892 = vpop.f32.mrb[0].mxu0
        %v1893 = vadd.f32 0.0, %v1892
        %v1894 = vpop.f32.mrb[0].mxu0
        %1895 = vmatprep.mubr.f32.mxu0 0.0
        %1896 = vmatmul.mubr.f32.gmra.mrb[0].mxu0 %v1640
        %v1897 = vpop.f32.mrb[0].mxu0
        %v1898 = vadd.f32 0.0, %v1897
        %v1899 = vpop.f32.mrb[0].mxu0
        %1900 = vmatprep.mubr.f32.mxu0 0.0
        %1901 = vmatmul.mubr.f32.gmra.mrb[0].mxu0 %v1643
        %v1902 = vpop.f32.mrb[0].mxu0
        %v1903 = vadd.f32 0.0, %v1902
        %v1904 = vpop.f32.mrb[0].mxu0
        %1905 = vdwg.mxu0
        %v1906 = vmax.f32 %v1716, %v1848
        %v1907 = vmax.f32 %v1721, %v1853
        %v1908 = vmax.f32 %v1726, %v1858
        %v1909 = vmax.f32 %v1731, %v1863
        %v1910 = vmax.f32 %v1736, %v1868
        %v1911 = vmax.f32 %v1741, %v1873
        %v1912 = vmax.f32 %v1746, %v1878
        %v1913 = vmax.f32 %v1751, %v1883
        %v1914 = vmax.f32 %v1756, %v1888
        %v1915 = vmax.f32 %v1761, %v1893
        %v1916 = vmax.f32 %v1766, %v1898
        %v1917 = vmax.f32 %v1771, %v1903
        %1930 = vrot.lane.b32.xlu0 %v1906, 127
        %v1931 = vpop.permute.xlu0 %1930
        %1932 = vrot.lane.b32.xlu0 %v1907, 127
        %v1933 = vpop.permute.xlu0 %1932
        %1934 = vrot.lane.b32.xlu0 %v1908, 127
        %v1935 = vpop.permute.xlu0 %1934
        %1936 = vrot.lane.b32.xlu0 %v1909, 127
        %v1937 = vpop.permute.xlu0 %1936
        %1938 = vrot.lane.b32.xlu0 %v1910, 127
        %v1939 = vpop.permute.xlu0 %1938
        %1940 = vrot.lane.b32.xlu0 %v1911, 127
        %v1941 = vpop.permute.xlu0 %1940
        %1942 = vrot.lane.b32.xlu0 %v1912, 127
        %v1943 = vpop.permute.xlu0 %1942
        %1944 = vrot.lane.b32.xlu0 %v1913, 127
        %v1945 = vpop.permute.xlu0 %1944
        %1946 = vrot.lane.b32.xlu0 %v1914, 127
        %v1947 = vpop.permute.xlu0 %1946
        %1948 = vrot.lane.b32.xlu0 %v1915, 127
        %v1949 = vpop.permute.xlu0 %1948
        %1950 = vrot.lane.b32.xlu0 %v1916, 127
        %v1951 = vpop.permute.xlu0 %1950
        %1952 = vrot.lane.b32.xlu0 %v1917, 127
        %v1953 = vpop.permute.xlu0 %1952
        %1966 = vrot.lane.b32.xlu0 %v1906, 126
        %v1967 = vpop.permute.xlu0 %1966
        %1968 = vrot.lane.b32.xlu0 %v1907, 126
        %v1969 = vpop.permute.xlu0 %1968
        %1970 = vrot.lane.b32.xlu0 %v1908, 126
        %v1971 = vpop.permute.xlu0 %1970
        %1972 = vrot.lane.b32.xlu0 %v1909, 126
        %v1973 = vpop.permute.xlu0 %1972
        %1974 = vrot.lane.b32.xlu0 %v1910, 126
        %v1975 = vpop.permute.xlu0 %1974
        %1976 = vrot.lane.b32.xlu0 %v1911, 126
        %v1977 = vpop.permute.xlu0 %1976
        %1978 = vrot.lane.b32.xlu0 %v1912, 126
        %v1979 = vpop.permute.xlu0 %1978
        %1980 = vrot.lane.b32.xlu0 %v1913, 126
        %v1981 = vpop.permute.xlu0 %1980
        %1982 = vrot.lane.b32.xlu0 %v1914, 126
        %v1983 = vpop.permute.xlu0 %1982
        %1984 = vrot.lane.b32.xlu0 %v1915, 126
        %v1985 = vpop.permute.xlu0 %1984
        %1986 = vrot.lane.b32.xlu0 %v1916, 126
        %v1987 = vpop.permute.xlu0 %1986
        %1988 = vrot.lane.b32.xlu0 %v1917, 126
        %v1989 = vpop.permute.xlu0 %1988
        %2002 = vrot.lane.b32.xlu0 %v1906, 125
        %v2003 = vpop.permute.xlu0 %2002
        %2004 = vrot.lane.b32.xlu0 %v1907, 125
        %v2005 = vpop.permute.xlu0 %2004
        %2006 = vrot.lane.b32.xlu0 %v1908, 125
        %v2007 = vpop.permute.xlu0 %2006
        %2008 = vrot.lane.b32.xlu0 %v1909, 125
        %v2009 = vpop.permute.xlu0 %2008
        %2010 = vrot.lane.b32.xlu0 %v1910, 125
        %v2011 = vpop.permute.xlu0 %2010
        %2012 = vrot.lane.b32.xlu0 %v1911, 125
        %v2013 = vpop.permute.xlu0 %2012
        %2014 = vrot.lane.b32.xlu0 %v1912, 125
        %v2015 = vpop.permute.xlu0 %2014
        %2016 = vrot.lane.b32.xlu0 %v1913, 125
        %v2017 = vpop.permute.xlu0 %2016
        %2018 = vrot.lane.b32.xlu0 %v1914, 125
        %v2019 = vpop.permute.xlu0 %2018
        %2020 = vrot.lane.b32.xlu0 %v1915, 125
        %v2021 = vpop.permute.xlu0 %2020
        %2022 = vrot.lane.b32.xlu0 %v1916, 125
        %v2023 = vpop.permute.xlu0 %2022
        %2024 = vrot.lane.b32.xlu0 %v1917, 125
        %v2025 = vpop.permute.xlu0 %2024
        %2038 = vrot.lane.b32.xlu0 %v1906, 124
        %v2039 = vpop.permute.xlu0 %2038
        %2040 = vrot.lane.b32.xlu0 %v1907, 124
        %v2041 = vpop.permute.xlu0 %2040
        %2042 = vrot.lane.b32.xlu0 %v1908, 124
        %v2043 = vpop.permute.xlu0 %2042
        %2044 = vrot.lane.b32.xlu0 %v1909, 124
        %v2045 = vpop.permute.xlu0 %2044
        %2046 = vrot.lane.b32.xlu0 %v1910, 124
        %v2047 = vpop.permute.xlu0 %2046
        %2048 = vrot.lane.b32.xlu0 %v1911, 124
        %v2049 = vpop.permute.xlu0 %2048
        %2050 = vrot.lane.b32.xlu0 %v1912, 124
        %v2051 = vpop.permute.xlu0 %2050
        %2052 = vrot.lane.b32.xlu0 %v1913, 124
        %v2053 = vpop.permute.xlu0 %2052
        %2054 = vrot.lane.b32.xlu0 %v1914, 124
        %v2055 = vpop.permute.xlu0 %2054
        %2056 = vrot.lane.b32.xlu0 %v1915, 124
        %v2057 = vpop.permute.xlu0 %2056
        %2058 = vrot.lane.b32.xlu0 %v1916, 124
        %v2059 = vpop.permute.xlu0 %2058
        %2060 = vrot.lane.b32.xlu0 %v1917, 124
        %v2061 = vpop.permute.xlu0 %2060
        %v2074 = vpack.c.bf16 %v1907, %v1906
        %v2075 = vpack.c.bf16 %v1909, %v1908
        %v2076 = vpack.c.bf16 %v1911, %v1910
        %v2077 = vpack.c.bf16 %v1913, %v1912
        %v2078 = vpack.c.bf16 %v1915, %v1914
        %v2079 = vpack.c.bf16 %v1917, %v1916
        %v2080 = vpack.c.bf16 %v1933, %v1931
        %v2081 = vpack.c.bf16 %v1937, %v1935
        %v2082 = vpack.c.bf16 %v1941, %v1939
        %v2083 = vpack.c.bf16 %v1945, %v1943
        %v2084 = vpack.c.bf16 %v1949, %v1947
        %v2085 = vpack.c.bf16 %v1953, %v1951
        %v2086 = vpack.c.bf16 %v1969, %v1967
        %v2087 = vpack.c.bf16 %v1973, %v1971
        %v2088 = vpack.c.bf16 %v1977, %v1975
        %v2089 = vpack.c.bf16 %v1981, %v1979
        %v2090 = vpack.c.bf16 %v1985, %v1983
        %v2091 = vpack.c.bf16 %v1989, %v1987
        %v2092 = vpack.c.bf16 %v2005, %v2003
        %v2093 = vpack.c.bf16 %v2009, %v2007
        %v2094 = vpack.c.bf16 %v2013, %v2011
        %v2095 = vpack.c.bf16 %v2017, %v2015
        %v2096 = vpack.c.bf16 %v2021, %v2019
        %v2097 = vpack.c.bf16 %v2025, %v2023
        %v2098 = vpack.c.bf16 %v2041, %v2039
        %v2099 = vpack.c.bf16 %v2045, %v2043
        %v2100 = vpack.c.bf16 %v2049, %v2047
        %v2101 = vpack.c.bf16 %v2053, %v2051
        %v2102 = vpack.c.bf16 %v2057, %v2055
        %v2103 = vpack.c.bf16 %v2061, %v2059
        %v2104 = vld [vmem:[#allocation8] sm:$0xff]
        %v2105 = vld [vmem:[#allocation8 + $0x8] sm:$0xff]
        %v2106 = vld [vmem:[#allocation8 + $0x10] sm:$0xff]
        %v2107 = vld [vmem:[#allocation8 + $0x18] sm:$0xff]
        %v2108 = vld [vmem:[#allocation8 + $0x20] sm:$0xff]
        %v2109 = vld [vmem:[#allocation8 + $0x28] sm:$0xff]
        %v2110 = vld [vmem:[#allocation8 + $0x30] sm:$0xff]
        %v2111 = vld [vmem:[#allocation8 + $0x38] sm:$0xff]
        %v2112 = vld [vmem:[#allocation8 + $0x40] sm:$0xff]
        %v2113 = vld [vmem:[#allocation8 + $0x48] sm:$0xff]
        %v2114 = vld [vmem:[#allocation8 + $0x50] sm:$0xff]
        %v2115 = vld [vmem:[#allocation8 + $0x58] sm:$0xff]
        %v2116 = vld [vmem:[#allocation8 + $0x60] sm:$0xff]
        %v2117 = vld [vmem:[#allocation8 + $0x68] sm:$0xff]
        %v2118 = vld [vmem:[#allocation8 + $0x70] sm:$0xff]
        %v2119 = vld [vmem:[#allocation8 + $0x78] sm:$0xff]
        %v2120 = vld [vmem:[#allocation8 + $0x80] sm:$0xff]
        %v2121 = vld [vmem:[#allocation8 + $0x88] sm:$0xff]
        %v2122 = vld [vmem:[#allocation8 + $0x90] sm:$0xff]
        %v2123 = vld [vmem:[#allocation8 + $0x98] sm:$0xff]
        %v2124 = vld [vmem:[%s8] sm:$0xff]
        %v2125 = vld [vmem:[%s8 + $0x8] sm:$0xff]
        %v2126 = vld [vmem:[%s8 + $0x10] sm:$0xff]
        %v2127 = vld [vmem:[%s8 + $0x18] sm:$0xff]
        %v2128 = vld [vmem:[%s8 + $0x20] sm:$0xff]
        %v2129 = vld [vmem:[%s8 + $0x28] sm:$0xff]
        %v2130 = vld [vmem:[%s8 + $0x30] sm:$0xff]
        %v2131 = vld [vmem:[%s8 + $0x38] sm:$0xff]
        %v2132 = vld [vmem:[%s8 + $0x40] sm:$0xff]
        %v2133 = vld [vmem:[%s8 + $0x48] sm:$0xff]
        %2135 = vset.pattern.permute.xlu0 0
        %2136 = vperm.xlu0 %2135, %v2124
        %v2137 = vpop.permute.xlu0 %2136
        %2140 = vset.pattern.permute.xlu0 0
        %2141 = vperm.xlu0 %2140, %v2125
        %v2142 = vpop.permute.xlu0 %2141
        %2145 = vset.pattern.permute.xlu0 0
        %2146 = vperm.xlu0 %2145, %v2126
        %v2147 = vpop.permute.xlu0 %2146
        %2150 = vset.pattern.permute.xlu0 0
        %2151 = vperm.xlu0 %2150, %v2127
        %v2152 = vpop.permute.xlu0 %2151
        %2155 = vset.pattern.permute.xlu0 0
        %2156 = vperm.xlu0 %2155, %v2128
        %v2157 = vpop.permute.xlu0 %2156
        %2160 = vset.pattern.permute.xlu0 0
        %2161 = vperm.xlu0 %2160, %v2129
        %v2162 = vpop.permute.xlu0 %2161
        %2165 = vset.pattern.permute.xlu0 0
        %2166 = vperm.xlu0 %2165, %v2130
        %v2167 = vpop.permute.xlu0 %2166
        %2170 = vset.pattern.permute.xlu0 0
        %2171 = vperm.xlu0 %2170, %v2131
        %v2172 = vpop.permute.xlu0 %2171
        %2175 = vset.pattern.permute.xlu0 0
        %2176 = vperm.xlu0 %2175, %v2132
        %v2177 = vpop.permute.xlu0 %2176
        %2180 = vset.pattern.permute.xlu0 0
        %2181 = vperm.xlu0 %2180, %v2133
        %v2182 = vpop.permute.xlu0 %2181
        %v2204 = vunpack.c.l.b16 %v2104
        %v2205 = vunpack.c.h.b16 %v2104
        %v2206 = vunpack.c.l.b16 %v2105
        %v2207 = vunpack.c.h.b16 %v2105
        %v2208 = vunpack.c.l.b16 %v2106
        %v2209 = vunpack.c.h.b16 %v2106
        %v2210 = vunpack.c.l.b16 %v2107
        %v2211 = vunpack.c.h.b16 %v2107
        %v2212 = vunpack.c.l.b16 %v2108
        %v2213 = vunpack.c.h.b16 %v2108
        %v2214 = vunpack.c.l.b16 %v2109
        %v2215 = vunpack.c.h.b16 %v2109
        %v2216 = vunpack.c.l.b16 %v2110
        %v2217 = vunpack.c.h.b16 %v2110
        %v2218 = vunpack.c.l.b16 %v2111
        %v2219 = vunpack.c.h.b16 %v2111
        %v2220 = vunpack.c.l.b16 %v2112
        %v2221 = vunpack.c.h.b16 %v2112
        %v2222 = vunpack.c.l.b16 %v2113
        %v2223 = vunpack.c.h.b16 %v2113
        %v2224 = vunpack.c.l.b16 %v2114
        %v2225 = vunpack.c.h.b16 %v2114
        %v2226 = vunpack.c.l.b16 %v2115
        %v2227 = vunpack.c.h.b16 %v2115
        %v2228 = vunpack.c.l.b16 %v2116
        %v2229 = vunpack.c.h.b16 %v2116
        %v2230 = vunpack.c.l.b16 %v2117
        %v2231 = vunpack.c.h.b16 %v2117
        %v2232 = vunpack.c.l.b16 %v2118
        %v2233 = vunpack.c.h.b16 %v2118
        %v2234 = vunpack.c.l.b16 %v2119
        %v2235 = vunpack.c.h.b16 %v2119
        %v2236 = vunpack.c.l.b16 %v2120
        %v2237 = vunpack.c.h.b16 %v2120
        %v2238 = vunpack.c.l.b16 %v2121
        %v2239 = vunpack.c.h.b16 %v2121
        %v2240 = vunpack.c.l.b16 %v2122
        %v2241 = vunpack.c.h.b16 %v2122
        %v2242 = vunpack.c.l.b16 %v2123
        %v2243 = vunpack.c.h.b16 %v2123
        %v2244 = vpack.c.b16 %v2208, %v2204
        %v2245 = vpack.c.b16 %v2209, %v2205
        %v2246 = vpack.c.b16 %v2210, %v2206
        %v2247 = vpack.c.b16 %v2211, %v2207
        %v2248 = vpack.c.b16 %v2216, %v2212
        %v2249 = vpack.c.b16 %v2217, %v2213
        %v2250 = vpack.c.b16 %v2218, %v2214
        %v2251 = vpack.c.b16 %v2219, %v2215
        %v2252 = vpack.c.b16 %v2224, %v2220
        %v2253 = vpack.c.b16 %v2225, %v2221
        %v2254 = vpack.c.b16 %v2226, %v2222
        %v2255 = vpack.c.b16 %v2227, %v2223
        %v2256 = vpack.c.b16 %v2232, %v2228
        %v2257 = vpack.c.b16 %v2233, %v2229
        %v2258 = vpack.c.b16 %v2234, %v2230
        %v2259 = vpack.c.b16 %v2235, %v2231
        %v2260 = vpack.c.b16 %v2240, %v2236
        %v2261 = vpack.c.b16 %v2241, %v2237
        %v2262 = vpack.c.b16 %v2242, %v2238
        %v2263 = vpack.c.b16 %v2243, %v2239
        %v2280 = vsel %vm1069, %v2247, 0
        %v2283 = vsel %vm1069, %v2251, 0
        %v2286 = vsel %vm1069, %v2255, 0
        %v2289 = vsel %vm1069, %v2259, 0
        %v2292 = vsel %vm1069, %v2263, 0
        %2294 = vmatprep.subr.bf16.mxu0 0
        %2295 = vmatpush1.bf16.msra.mxu0 %v2074
        %2296 = vmatprep.subr.bf16.mxu0 0
        %2297 = vmatpush1.bf16.msra.mxu0 %v2075
        %2298 = vmatprep.subr.bf16.mxu0 0
        %2299 = vmatpush1.bf16.msra.mxu0 %v2076
        %2300 = vmatprep.subr.bf16.mxu0 0
        %2301 = vmatpush1.bf16.msra.mxu0 %v2077
        %2302 = vmatprep.subr.bf16.mxu0 0
        %2303 = vmatpush1.bf16.msra.mxu0 %v2078
        %2304 = vmatprep.subr.bf16.mxu0 0
        %2305 = vmatpush1.bf16.msra.mxu0 %v2079
        %2306 = vmatprep.subr.bf16.mxu0 0
        %2307 = vmatpush1.bf16.msra.mxu0 %v2080
        %2308 = vmatprep.subr.bf16.mxu0 0
        %2309 = vmatpush1.bf16.msra.mxu0 %v2081
        %2310 = vmatprep.subr.bf16.mxu0 0
        %2311 = vmatpush1.bf16.msra.mxu0 %v2082
        %2312 = vmatprep.subr.bf16.mxu0 0
        %2313 = vmatpush1.bf16.msra.mxu0 %v2083
        %2314 = vmatprep.subr.bf16.mxu0 0
        %2315 = vmatpush1.bf16.msra.mxu0 %v2084
        %2316 = vmatprep.subr.bf16.mxu0 0
        %2317 = vmatpush1.bf16.msra.mxu0 %v2085
        %2318 = vmatprep.subr.bf16.mxu0 0
        %2319 = vmatpush1.bf16.msra.mxu0 %v2086
        %2320 = vmatprep.subr.bf16.mxu0 0
        %2321 = vmatpush1.bf16.msra.mxu0 %v2087
        %2322 = vmatprep.subr.bf16.mxu0 0
        %2323 = vmatpush1.bf16.msra.mxu0 %v2088
        %2324 = vmatprep.subr.bf16.mxu0 0
        %2325 = vmatpush1.bf16.msra.mxu0 %v2089
        %2326 = vmatprep.mubr.bf16.mxu0 %v2245
        %2327 = vmatmul.mubr.bf16.gmra.mrb[0].mxu0 %v2244
        %v2328 = vpop.f32.mrb[0].mxu0
        %v2329 = vadd.f32 %v2137, %v2328
        %v2330 = vpop.f32.mrb[0].mxu0
        %v2331 = vpop.f32.mrb[0].mxu0
        %v2332 = vadd.f32 %v2142, %v2331
        %v2333 = vpop.f32.mrb[0].mxu0
        %2334 = vmatprep.mubr.bf16.mxu0 %v2249
        %2335 = vmatmul.mubr.bf16.gmra.mrb[0].mxu0 %v2248
        %v2336 = vpop.f32.mrb[0].mxu0
        %v2337 = vadd.f32 %v2147, %v2336
        %v2338 = vpop.f32.mrb[0].mxu0
        %v2339 = vpop.f32.mrb[0].mxu0
        %v2340 = vadd.f32 %v2152, %v2339
        %v2341 = vpop.f32.mrb[0].mxu0
        %2342 = vmatprep.mubr.bf16.mxu0 %v2253
        %2343 = vmatmul.mubr.bf16.gmra.mrb[0].mxu0 %v2252
        %v2344 = vpop.f32.mrb[0].mxu0
        %v2345 = vadd.f32 %v2157, %v2344
        %v2346 = vpop.f32.mrb[0].mxu0
        %v2347 = vpop.f32.mrb[0].mxu0
        %v2348 = vadd.f32 %v2162, %v2347
        %v2349 = vpop.f32.mrb[0].mxu0
        %2350 = vmatprep.mubr.bf16.mxu0 %v2257
        %2351 = vmatmul.mubr.bf16.gmra.mrb[0].mxu0 %v2256
        %v2352 = vpop.f32.mrb[0].mxu0
        %v2353 = vadd.f32 %v2167, %v2352
        %v2354 = vpop.f32.mrb[0].mxu0
        %v2355 = vpop.f32.mrb[0].mxu0
        %v2356 = vadd.f32 %v2172, %v2355
        %v2357 = vpop.f32.mrb[0].mxu0
        %2358 = vmatprep.mubr.bf16.mxu0 %v2261
        %2359 = vmatmul.mubr.bf16.gmra.mrb[0].mxu0 %v2260
        %v2360 = vpop.f32.mrb[0].mxu0
        %v2361 = vadd.f32 %v2177, %v2360
        %v2362 = vpop.f32.mrb[0].mxu0
        %v2363 = vpop.f32.mrb[0].mxu0
        %v2364 = vadd.f32 %v2182, %v2363
        %v2365 = vpop.f32.mrb[0].mxu0
        %2366 = vdwg.mxu0
        %2367 = vmatprep.subr.bf16.mxu0 0
        %2368 = vmatpush1.bf16.msra.mxu0 %v2090
        %2369 = vmatprep.subr.bf16.mxu0 0
        %2370 = vmatpush1.bf16.msra.mxu0 %v2091
        %2371 = vmatprep.subr.bf16.mxu0 0
        %2372 = vmatpush1.bf16.msra.mxu0 %v2092
        %2373 = vmatprep.subr.bf16.mxu0 0
        %2374 = vmatpush1.bf16.msra.mxu0 %v2093
        %2375 = vmatprep.subr.bf16.mxu0 0
        %2376 = vmatpush1.bf16.msra.mxu0 %v2094
        %2377 = vmatprep.subr.bf16.mxu0 0
        %2378 = vmatpush1.bf16.msra.mxu0 %v2095
        %2379 = vmatprep.subr.bf16.mxu0 0
        %2380 = vmatpush1.bf16.msra.mxu0 %v2096
        %2381 = vmatprep.subr.bf16.mxu0 0
        %2382 = vmatpush1.bf16.msra.mxu0 %v2097
        %2383 = vmatprep.subr.bf16.mxu0 0
        %2384 = vmatpush1.bf16.msra.mxu0 %v2098
        %2385 = vmatprep.subr.bf16.mxu0 0
        %2386 = vmatpush1.bf16.msra.mxu0 %v2099
        %2387 = vmatprep.subr.bf16.mxu0 0
        %2388 = vmatpush1.bf16.msra.mxu0 %v2100
        %2389 = vmatprep.subr.bf16.mxu0 0
        %2390 = vmatpush1.bf16.msra.mxu0 %v2101
        %2391 = vmatprep.subr.bf16.mxu0 0
        %2392 = vmatpush1.bf16.msra.mxu0 %v2102
        %2393 = vmatprep.subr.bf16.mxu0 0
        %2394 = vmatpush1.bf16.msra.mxu0 %v2103
        %2395 = vmatprep.subr.bf16.mxu0 0
        %2396 = vmatpush1.bf16.msra.mxu0 0
        %2397 = vmatprep.subr.bf16.mxu0 0
        %2398 = vmatpush1.bf16.msra.mxu0 0
        %2399 = vmatprep.mubr.bf16.mxu0 %v2280
        %2400 = vmatmul.mubr.bf16.gmra.mrb[0].mxu0 %v2246
        %v2401 = vpop.f32.mrb[0].mxu0
        %v2402 = vadd.f32 %v2329, %v2401
        %v2403 = vpop.f32.mrb[0].mxu0
        %v2404 = vpop.f32.mrb[0].mxu0
        %v2405 = vadd.f32 %v2332, %v2404
        %v2406 = vpop.f32.mrb[0].mxu0
        %2407 = vmatprep.mubr.bf16.mxu0 %v2283
        %2408 = vmatmul.mubr.bf16.gmra.mrb[0].mxu0 %v2250
        %v2409 = vpop.f32.mrb[0].mxu0
        %v2410 = vadd.f32 %v2337, %v2409
        %v2411 = vpop.f32.mrb[0].mxu0
        %v2412 = vpop.f32.mrb[0].mxu0
        %v2413 = vadd.f32 %v2340, %v2412
        %v2414 = vpop.f32.mrb[0].mxu0
        %2415 = vmatprep.mubr.bf16.mxu0 %v2286
        %2416 = vmatmul.mubr.bf16.gmra.mrb[0].mxu0 %v2254
        %v2417 = vpop.f32.mrb[0].mxu0
        %v2418 = vadd.f32 %v2345, %v2417
        %v2419 = vpop.f32.mrb[0].mxu0
        %v2420 = vpop.f32.mrb[0].mxu0
        %v2421 = vadd.f32 %v2348, %v2420
        %v2422 = vpop.f32.mrb[0].mxu0
        %2423 = vmatprep.mubr.bf16.mxu0 %v2289
        %2424 = vmatmul.mubr.bf16.gmra.mrb[0].mxu0 %v2258
        %v2425 = vpop.f32.mrb[0].mxu0
        %v2426 = vadd.f32 %v2353, %v2425
        %v2427 = vpop.f32.mrb[0].mxu0
        %v2428 = vpop.f32.mrb[0].mxu0
        %v2429 = vadd.f32 %v2356, %v2428
        %v2430 = vpop.f32.mrb[0].mxu0
        %2431 = vmatprep.mubr.bf16.mxu0 %v2292
        %2432 = vmatmul.mubr.bf16.gmra.mrb[0].mxu0 %v2262
        %v2433 = vpop.f32.mrb[0].mxu0
        %v2434 = vadd.f32 %v2361, %v2433
        %v2435 = vpop.f32.mrb[0].mxu0
        %v2436 = vpop.f32.mrb[0].mxu0
        %v2437 = vadd.f32 %v2364, %v2436
        %v2438 = vpop.f32.mrb[0].mxu0
        %2439 = vdwg.mxu0
        %v2440 = vld [vmem:[#allocation10] sm:$0xff]
        %v2441 = vld [vmem:[#allocation10 + $0x8] sm:$0xff]
        %v2442 = vld [vmem:[#allocation10 + $0x10] sm:$0xff]
        %v2443 = vld [vmem:[#allocation10 + $0x18] sm:$0xff]
        %v2444 = vld [vmem:[#allocation10 + $0x20] sm:$0xff]
        %v2445 = vld [vmem:[#allocation10 + $0x28] sm:$0xff]
        %v2446 = vld [vmem:[#allocation10 + $0x30] sm:$0xff]
        %v2447 = vld [vmem:[#allocation10 + $0x38] sm:$0xff]
        %v2448 = vld [vmem:[#allocation10 + $0x40] sm:$0xff]
        %v2449 = vld [vmem:[#allocation10 + $0x48] sm:$0xff]
        %v2450 = vld [vmem:[#allocation10 + $0x50] sm:$0xff]
        %v2451 = vld [vmem:[#allocation10 + $0x58] sm:$0xff]
        %v2452 = vld [vmem:[#allocation10 + $0x60] sm:$0xff]
        %v2453 = vld [vmem:[#allocation10 + $0x68] sm:$0xff]
        %v2454 = vld [vmem:[#allocation10 + $0x70] sm:$0xff]
        %v2455 = vld [vmem:[#allocation10 + $0x78] sm:$0xff]
        %v2456 = vld [vmem:[#allocation10 + $0x80] sm:$0xff]
        %v2457 = vld [vmem:[#allocation10 + $0x88] sm:$0xff]
        %v2458 = vld [vmem:[#allocation10 + $0x90] sm:$0xff]
        %v2459 = vld [vmem:[#allocation10 + $0x98] sm:$0xff]
        %v2480 = vunpack.c.l.b16 %v2440
        %v2481 = vunpack.c.h.b16 %v2440
        %v2482 = vunpack.c.l.b16 %v2441
        %v2483 = vunpack.c.h.b16 %v2441
        %v2484 = vunpack.c.l.b16 %v2442
        %v2485 = vunpack.c.h.b16 %v2442
        %v2486 = vunpack.c.l.b16 %v2443
        %v2487 = vunpack.c.h.b16 %v2443
        %v2488 = vunpack.c.l.b16 %v2444
        %v2489 = vunpack.c.h.b16 %v2444
        %v2490 = vunpack.c.l.b16 %v2445
        %v2491 = vunpack.c.h.b16 %v2445
        %v2492 = vunpack.c.l.b16 %v2446
        %v2493 = vunpack.c.h.b16 %v2446
        %v2494 = vunpack.c.l.b16 %v2447
        %v2495 = vunpack.c.h.b16 %v2447
        %v2496 = vunpack.c.l.b16 %v2448
        %v2497 = vunpack.c.h.b16 %v2448
        %v2498 = vunpack.c.l.b16 %v2449
        %v2499 = vunpack.c.h.b16 %v2449
        %v2500 = vunpack.c.l.b16 %v2450
        %v2501 = vunpack.c.h.b16 %v2450
        %v2502 = vunpack.c.l.b16 %v2451
        %v2503 = vunpack.c.h.b16 %v2451
        %v2504 = vunpack.c.l.b16 %v2452
        %v2505 = vunpack.c.h.b16 %v2452
        %v2506 = vunpack.c.l.b16 %v2453
        %v2507 = vunpack.c.h.b16 %v2453
        %v2508 = vunpack.c.l.b16 %v2454
        %v2509 = vunpack.c.h.b16 %v2454
        %v2510 = vunpack.c.l.b16 %v2455
        %v2511 = vunpack.c.h.b16 %v2455
        %v2512 = vunpack.c.l.b16 %v2456
        %v2513 = vunpack.c.h.b16 %v2456
        %v2514 = vunpack.c.l.b16 %v2457
        %v2515 = vunpack.c.h.b16 %v2457
        %v2516 = vunpack.c.l.b16 %v2458
        %v2517 = vunpack.c.h.b16 %v2458
        %v2518 = vunpack.c.l.b16 %v2459
        %v2519 = vunpack.c.h.b16 %v2459
        %v2520 = vpack.c.b16 %v2484, %v2480
        %v2521 = vpack.c.b16 %v2485, %v2481
        %v2522 = vpack.c.b16 %v2486, %v2482
        %v2523 = vpack.c.b16 %v2487, %v2483
        %v2524 = vpack.c.b16 %v2492, %v2488
        %v2525 = vpack.c.b16 %v2493, %v2489
        %v2526 = vpack.c.b16 %v2494, %v2490
        %v2527 = vpack.c.b16 %v2495, %v2491
        %v2528 = vpack.c.b16 %v2500, %v2496
        %v2529 = vpack.c.b16 %v2501, %v2497
        %v2530 = vpack.c.b16 %v2502, %v2498
        %v2531 = vpack.c.b16 %v2503, %v2499
        %v2532 = vpack.c.b16 %v2508, %v2504
        %v2533 = vpack.c.b16 %v2509, %v2505
        %v2534 = vpack.c.b16 %v2510, %v2506
        %v2535 = vpack.c.b16 %v2511, %v2507
        %v2536 = vpack.c.b16 %v2516, %v2512
        %v2537 = vpack.c.b16 %v2517, %v2513
        %v2538 = vpack.c.b16 %v2518, %v2514
        %v2539 = vpack.c.b16 %v2519, %v2515
        %v2556 = vsel %vm1069, %v2523, 0
        %v2559 = vsel %vm1069, %v2527, 0
        %v2562 = vsel %vm1069, %v2531, 0
        %v2565 = vsel %vm1069, %v2535, 0
        %v2568 = vsel %vm1069, %v2539, 0
        %2570 = vmatprep.subr.bf16.mxu0 0
        %2571 = vmatpush1.bf16.msra.mxu0 %v2074
        %2572 = vmatprep.subr.bf16.mxu0 0
        %2573 = vmatpush1.bf16.msra.mxu0 %v2075
        %2574 = vmatprep.subr.bf16.mxu0 0
        %2575 = vmatpush1.bf16.msra.mxu0 %v2076
        %2576 = vmatprep.subr.bf16.mxu0 0
        %2577 = vmatpush1.bf16.msra.mxu0 %v2077
        %2578 = vmatprep.subr.bf16.mxu0 0
        %2579 = vmatpush1.bf16.msra.mxu0 %v2078
        %2580 = vmatprep.subr.bf16.mxu0 0
        %2581 = vmatpush1.bf16.msra.mxu0 %v2079
        %2582 = vmatprep.subr.bf16.mxu0 0
        %2583 = vmatpush1.bf16.msra.mxu0 %v2080
        %2584 = vmatprep.subr.bf16.mxu0 0
        %2585 = vmatpush1.bf16.msra.mxu0 %v2081
        %2586 = vmatprep.subr.bf16.mxu0 0
        %2587 = vmatpush1.bf16.msra.mxu0 %v2082
        %2588 = vmatprep.subr.bf16.mxu0 0
        %2589 = vmatpush1.bf16.msra.mxu0 %v2083
        %2590 = vmatprep.subr.bf16.mxu0 0
        %2591 = vmatpush1.bf16.msra.mxu0 %v2084
        %2592 = vmatprep.subr.bf16.mxu0 0
        %2593 = vmatpush1.bf16.msra.mxu0 %v2085
        %2594 = vmatprep.subr.bf16.mxu0 0
        %2595 = vmatpush1.bf16.msra.mxu0 %v2086
        %2596 = vmatprep.subr.bf16.mxu0 0
        %2597 = vmatpush1.bf16.msra.mxu0 %v2087
        %2598 = vmatprep.subr.bf16.mxu0 0
        %2599 = vmatpush1.bf16.msra.mxu0 %v2088
        %2600 = vmatprep.subr.bf16.mxu0 0
        %2601 = vmatpush1.bf16.msra.mxu0 %v2089
        %2602 = vmatprep.mubr.bf16.mxu0 %v2521
        %2603 = vmatmul.mubr.bf16.gmra.mrb[0].mxu0 %v2520
        %v2604 = vpop.f32.mrb[0].mxu0
        %v2605 = vadd.f32 %v2137, %v2604
        %v2606 = vpop.f32.mrb[0].mxu0
        %v2607 = vpop.f32.mrb[0].mxu0
        %v2608 = vadd.f32 %v2142, %v2607
        %v2609 = vpop.f32.mrb[0].mxu0
        %2610 = vmatprep.mubr.bf16.mxu0 %v2525
        %2611 = vmatmul.mubr.bf16.gmra.mrb[0].mxu0 %v2524
        %v2612 = vpop.f32.mrb[0].mxu0
        %v2613 = vadd.f32 %v2147, %v2612
        %v2614 = vpop.f32.mrb[0].mxu0
        %v2615 = vpop.f32.mrb[0].mxu0
        %v2616 = vadd.f32 %v2152, %v2615
        %v2617 = vpop.f32.mrb[0].mxu0
        %2618 = vmatprep.mubr.bf16.mxu0 %v2529
        %2619 = vmatmul.mubr.bf16.gmra.mrb[0].mxu0 %v2528
        %v2620 = vpop.f32.mrb[0].mxu0
        %v2621 = vadd.f32 %v2157, %v2620
        %v2622 = vpop.f32.mrb[0].mxu0
        %v2623 = vpop.f32.mrb[0].mxu0
        %v2624 = vadd.f32 %v2162, %v2623
        %v2625 = vpop.f32.mrb[0].mxu0
        %2626 = vmatprep.mubr.bf16.mxu0 %v2533
        %2627 = vmatmul.mubr.bf16.gmra.mrb[0].mxu0 %v2532
        %v2628 = vpop.f32.mrb[0].mxu0
        %v2629 = vadd.f32 %v2167, %v2628
        %v2630 = vpop.f32.mrb[0].mxu0
        %v2631 = vpop.f32.mrb[0].mxu0
        %v2632 = vadd.f32 %v2172, %v2631
        %v2633 = vpop.f32.mrb[0].mxu0
        %2634 = vmatprep.mubr.bf16.mxu0 %v2537
        %2635 = vmatmul.mubr.bf16.gmra.mrb[0].mxu0 %v2536
        %v2636 = vpop.f32.mrb[0].mxu0
        %v2637 = vadd.f32 %v2177, %v2636
        %v2638 = vpop.f32.mrb[0].mxu0
        %v2639 = vpop.f32.mrb[0].mxu0
        %v2640 = vadd.f32 %v2182, %v2639
        %v2641 = vpop.f32.mrb[0].mxu0
        %2642 = vdwg.mxu0
        %2643 = vmatprep.subr.bf16.mxu0 0
        %2644 = vmatpush1.bf16.msra.mxu0 %v2090
        %2645 = vmatprep.subr.bf16.mxu0 0
        %2646 = vmatpush1.bf16.msra.mxu0 %v2091
        %2647 = vmatprep.subr.bf16.mxu0 0
        %2648 = vmatpush1.bf16.msra.mxu0 %v2092
        %2649 = vmatprep.subr.bf16.mxu0 0
        %2650 = vmatpush1.bf16.msra.mxu0 %v2093
        %2651 = vmatprep.subr.bf16.mxu0 0
        %2652 = vmatpush1.bf16.msra.mxu0 %v2094
        %2653 = vmatprep.subr.bf16.mxu0 0
        %2654 = vmatpush1.bf16.msra.mxu0 %v2095
        %2655 = vmatprep.subr.bf16.mxu0 0
        %2656 = vmatpush1.bf16.msra.mxu0 %v2096
        %2657 = vmatprep.subr.bf16.mxu0 0
        %2658 = vmatpush1.bf16.msra.mxu0 %v2097
        %2659 = vmatprep.subr.bf16.mxu0 0
        %2660 = vmatpush1.bf16.msra.mxu0 %v2098
        %2661 = vmatprep.subr.bf16.mxu0 0
        %2662 = vmatpush1.bf16.msra.mxu0 %v2099
        %2663 = vmatprep.subr.bf16.mxu0 0
        %2664 = vmatpush1.bf16.msra.mxu0 %v2100
        %2665 = vmatprep.subr.bf16.mxu0 0
        %2666 = vmatpush1.bf16.msra.mxu0 %v2101
        %2667 = vmatprep.subr.bf16.mxu0 0
        %2668 = vmatpush1.bf16.msra.mxu0 %v2102
        %2669 = vmatprep.subr.bf16.mxu0 0
        %2670 = vmatpush1.bf16.msra.mxu0 %v2103
        %2671 = vmatprep.subr.bf16.mxu0 0
        %2672 = vmatpush1.bf16.msra.mxu0 0
        %2673 = vmatprep.subr.bf16.mxu0 0
        %2674 = vmatpush1.bf16.msra.mxu0 0
        %2675 = vmatprep.mubr.bf16.mxu0 %v2556
        %2676 = vmatmul.mubr.bf16.gmra.mrb[0].mxu0 %v2522
        %v2677 = vpop.f32.mrb[0].mxu0
        %v2678 = vadd.f32 %v2605, %v2677
        %v2679 = vpop.f32.mrb[0].mxu0
        %v2680 = vpop.f32.mrb[0].mxu0
        %v2681 = vadd.f32 %v2608, %v2680
        %v2682 = vpop.f32.mrb[0].mxu0
        %2683 = vmatprep.mubr.bf16.mxu0 %v2559
        %2684 = vmatmul.mubr.bf16.gmra.mrb[0].mxu0 %v2526
        %v2685 = vpop.f32.mrb[0].mxu0
        %v2686 = vadd.f32 %v2613, %v2685
        %v2687 = vpop.f32.mrb[0].mxu0
        %v2688 = vpop.f32.mrb[0].mxu0
        %v2689 = vadd.f32 %v2616, %v2688
        %v2690 = vpop.f32.mrb[0].mxu0
        %2691 = vmatprep.mubr.bf16.mxu0 %v2562
        %2692 = vmatmul.mubr.bf16.gmra.mrb[0].mxu0 %v2530
        %v2693 = vpop.f32.mrb[0].mxu0
        %v2694 = vadd.f32 %v2621, %v2693
        %v2695 = vpop.f32.mrb[0].mxu0
        %v2696 = vpop.f32.mrb[0].mxu0
        %v2697 = vadd.f32 %v2624, %v2696
        %v2698 = vpop.f32.mrb[0].mxu0
        %2699 = vmatprep.mubr.bf16.mxu0 %v2565
        %2700 = vmatmul.mubr.bf16.gmra.mrb[0].mxu0 %v2534
        %v2701 = vpop.f32.mrb[0].mxu0
        %v2702 = vadd.f32 %v2629, %v2701
        %v2703 = vpop.f32.mrb[0].mxu0
        %v2704 = vpop.f32.mrb[0].mxu0
        %v2705 = vadd.f32 %v2632, %v2704
        %v2706 = vpop.f32.mrb[0].mxu0
        %2707 = vmatprep.mubr.bf16.mxu0 %v2568
        %2708 = vmatmul.mubr.bf16.gmra.mrb[0].mxu0 %v2538
        %v2709 = vpop.f32.mrb[0].mxu0
        %v2710 = vadd.f32 %v2637, %v2709
        %v2711 = vpop.f32.mrb[0].mxu0
        %v2712 = vpop.f32.mrb[0].mxu0
        %v2713 = vadd.f32 %v2640, %v2712
        %v2714 = vpop.f32.mrb[0].mxu0
        %2715 = vdwg.mxu0
        %v2716 = vmax.f32 %v2402, 0.0
        %v2717 = vmax.f32 %v2405, 0.0
        %v2718 = vmax.f32 %v2410, 0.0
        %v2719 = vmax.f32 %v2413, 0.0
        %v2720 = vmax.f32 %v2418, 0.0
        %v2721 = vmax.f32 %v2421, 0.0
        %v2722 = vmax.f32 %v2426, 0.0
        %v2723 = vmax.f32 %v2429, 0.0
        %v2724 = vmax.f32 %v2434, 0.0
        %v2725 = vmax.f32 %v2437, 0.0
        %v2726 = vmax.f32 %v2678, 0.0
        %v2727 = vmax.f32 %v2681, 0.0
        %v2728 = vmax.f32 %v2686, 0.0
        %v2729 = vmax.f32 %v2689, 0.0
        %v2730 = vmax.f32 %v2694, 0.0
        %v2731 = vmax.f32 %v2697, 0.0
        %v2732 = vmax.f32 %v2702, 0.0
        %v2733 = vmax.f32 %v2705, 0.0
        %v2734 = vmax.f32 %v2710, 0.0
        %v2735 = vmax.f32 %v2713, 0.0
        %v2736 = vmax.f32 %v2716, %v2726
        %v2737 = vmax.f32 %v2717, %v2727
        %v2738 = vmax.f32 %v2718, %v2728
        %v2739 = vmax.f32 %v2719, %v2729
        %v2740 = vmax.f32 %v2720, %v2730
        %v2741 = vmax.f32 %v2721, %v2731
        %v2742 = vmax.f32 %v2722, %v2732
        %v2743 = vmax.f32 %v2723, %v2733
        %v2744 = vmax.f32 %v2724, %v2734
        %v2745 = vmax.f32 %v2725, %v2735
        %v2746 = vld [vmem:[%s9] sm:$0xff]
        %v2747 = vld [vmem:[%s9 + $0x8] sm:$0x3]
        %vm2748 = vcmask 80896
        %v2750 = vsel %vm2748, %v2736, 0
        %v2753 = vsel %vm2748, %v2737, 0
        %v2756 = vsel %vm2748, %v2738, 0
        %v2759 = vsel %vm2748, %v2739, 0
        %v2762 = vsel %vm2748, %v2740, 0
        %v2765 = vsel %vm2748, %v2741, 0
        %v2768 = vsel %vm2748, %v2742, 0
        %v2771 = vsel %vm2748, %v2743, 0
        %v2774 = vsel %vm2748, %v2744, 0
        %v2777 = vsel %vm2748, %v2745, 0
        %vm2779 = vcmask 1041408
        %v2781 = vsel %vm2779, %v2747, 0
        %2783 = vmatprep.subr.mxu0 0.0
        %2784 = vmatpush1.msra.mxu0 %v2746
        %2785 = vmatprep.subr.mxu0 0.0
        %2786 = vmatpush1.msra.mxu0 %v2781
        %2787 = vmatprep.subr.mxu0 0.0
        %2788 = vmatpush1.msra.mxu0 0.0
        %2789 = vmatprep.subr.mxu0 0.0
        %2790 = vmatpush1.msra.mxu0 0.0
        %2791 = vmatprep.subr.mxu0 0.0
        %2792 = vmatpush1.msra.mxu0 0.0
        %2793 = vmatprep.subr.mxu0 0.0
        %2794 = vmatpush1.msra.mxu0 0.0
        %2795 = vmatprep.subr.mxu0 0.0
        %2796 = vmatpush1.msra.mxu0 0.0
        %2797 = vmatprep.subr.mxu0 0.0
        %2798 = vmatpush1.msra.mxu0 0.0
        %2799 = vmatprep.subr.mxu0 0.0
        %2800 = vmatpush1.msra.mxu0 0.0
        %2801 = vmatprep.subr.mxu0 0.0
        %2802 = vmatpush1.msra.mxu0 0.0
        %2803 = vmatprep.subr.mxu0 0.0
        %2804 = vmatpush1.msra.mxu0 0.0
        %2805 = vmatprep.subr.mxu0 0.0
        %2806 = vmatpush1.msra.mxu0 0.0
        %2807 = vmatprep.subr.mxu0 0.0
        %2808 = vmatpush1.msra.mxu0 0.0
        %2809 = vmatprep.subr.mxu0 0.0
        %2810 = vmatpush1.msra.mxu0 0.0
        %2811 = vmatprep.subr.mxu0 0.0
        %2812 = vmatpush1.msra.mxu0 0.0
        %2813 = vmatprep.subr.mxu0 0.0
        %2814 = vmatpush1.msra.mxu0 0.0
        %2815 = vmatprep.subr.mxu0 0.0
        %2816 = vmatpush1.msra.mxu0 0.0
        %2817 = vmatprep.subr.mxu0 0.0
        %2818 = vmatpush1.msra.mxu0 0.0
        %2819 = vmatprep.subr.mxu0 0.0
        %2820 = vmatpush1.msra.mxu0 0.0
        %2821 = vmatprep.subr.mxu0 0.0
        %2822 = vmatpush1.msra.mxu0 0.0
        %2823 = vmatprep.subr.mxu0 0.0
        %2824 = vmatpush1.msra.mxu0 0.0
        %2825 = vmatprep.subr.mxu0 0.0
        %2826 = vmatpush1.msra.mxu0 0.0
        %2827 = vmatprep.subr.mxu0 0.0
        %2828 = vmatpush1.msra.mxu0 0.0
        %2829 = vmatprep.subr.mxu0 0.0
        %2830 = vmatpush1.msra.mxu0 0.0
        %2831 = vmatprep.subr.mxu0 0.0
        %2832 = vmatpush1.msra.mxu0 0.0
        %2833 = vmatprep.subr.mxu0 0.0
        %2834 = vmatpush1.msra.mxu0 0.0
        %2835 = vmatprep.subr.mxu0 0.0
        %2836 = vmatpush1.msra.mxu0 0.0
        %2837 = vmatprep.subr.mxu0 0.0
        %2838 = vmatpush1.msra.mxu0 0.0
        %2839 = vmatprep.subr.mxu0 0.0
        %2840 = vmatpush1.msra.mxu0 0.0
        %2841 = vmatprep.subr.mxu0 0.0
        %2842 = vmatpush1.msra.mxu0 0.0
        %2843 = vmatprep.subr.mxu0 0.0
        %2844 = vmatpush1.msra.mxu0 0.0
        %2845 = vmatprep.subr.mxu0 0.0
        %2846 = vmatpush1.msra.mxu0 0.0
        %2847 = vmatprep.mubr.f32.mxu0 0.0
        %2848 = vmatmul.mubr.f32.gmra.mrb[0].mxu0 %v2750
        %v2849 = vpop.f32.mrb[0].mxu0
        %v2850 = vadd.f32 0.0, %v2849
        %v2851 = vpop.f32.mrb[0].mxu0
        %2852 = vmatprep.mubr.f32.mxu0 0.0
        %2853 = vmatmul.mubr.f32.gmra.mrb[0].mxu0 %v2753
        %v2854 = vpop.f32.mrb[0].mxu0
        %v2855 = vadd.f32 0.0, %v2854
        %v2856 = vpop.f32.mrb[0].mxu0
        %2857 = vmatprep.mubr.f32.mxu0 0.0
        %2858 = vmatmul.mubr.f32.gmra.mrb[0].mxu0 %v2756
        %v2859 = vpop.f32.mrb[0].mxu0
        %v2860 = vadd.f32 0.0, %v2859
        %v2861 = vpop.f32.mrb[0].mxu0
        %2862 = vmatprep.mubr.f32.mxu0 0.0
        %2863 = vmatmul.mubr.f32.gmra.mrb[0].mxu0 %v2759
        %v2864 = vpop.f32.mrb[0].mxu0
        %v2865 = vadd.f32 0.0, %v2864
        %v2866 = vpop.f32.mrb[0].mxu0
        %2867 = vmatprep.mubr.f32.mxu0 0.0
        %2868 = vmatmul.mubr.f32.gmra.mrb[0].mxu0 %v2762
        %v2869 = vpop.f32.mrb[0].mxu0
        %v2870 = vadd.f32 0.0, %v2869
        %v2871 = vpop.f32.mrb[0].mxu0
        %2872 = vmatprep.mubr.f32.mxu0 0.0
        %2873 = vmatmul.mubr.f32.gmra.mrb[0].mxu0 %v2765
        %v2874 = vpop.f32.mrb[0].mxu0
        %v2875 = vadd.f32 0.0, %v2874
        %v2876 = vpop.f32.mrb[0].mxu0
        %2877 = vmatprep.mubr.f32.mxu0 0.0
        %2878 = vmatmul.mubr.f32.gmra.mrb[0].mxu0 %v2768
        %v2879 = vpop.f32.mrb[0].mxu0
        %v2880 = vadd.f32 0.0, %v2879
        %v2881 = vpop.f32.mrb[0].mxu0
        %2882 = vmatprep.mubr.f32.mxu0 0.0
        %2883 = vmatmul.mubr.f32.gmra.mrb[0].mxu0 %v2771
        %v2884 = vpop.f32.mrb[0].mxu0
        %v2885 = vadd.f32 0.0, %v2884
        %v2886 = vpop.f32.mrb[0].mxu0
        %2887 = vmatprep.mubr.f32.mxu0 0.0
        %2888 = vmatmul.mubr.f32.gmra.mrb[0].mxu0 %v2774
        %v2889 = vpop.f32.mrb[0].mxu0
        %v2890 = vadd.f32 0.0, %v2889
        %v2891 = vpop.f32.mrb[0].mxu0
        %2892 = vmatprep.mubr.f32.mxu0 0.0
        %2893 = vmatmul.mubr.f32.gmra.mrb[0].mxu0 %v2777
        %v2894 = vpop.f32.mrb[0].mxu0
        %v2895 = vadd.f32 0.0, %v2894
        %v2896 = vpop.f32.mrb[0].mxu0
        %2897 = vdwg.mxu0
        %v2898 = vld [vmem:[%s10] sm:$0xff]
        %v2899 = vld [vmem:[%s10 + $0x8] sm:$0x3]
        %v2901 = vsel %vm2779, %v2899, 0
        %2903 = vmatprep.subr.mxu0 0.0
        %2904 = vmatpush1.msra.mxu0 %v2898
        %2905 = vmatprep.subr.mxu0 0.0
        %2906 = vmatpush1.msra.mxu0 %v2901
        %2907 = vmatprep.subr.mxu0 0.0
        %2908 = vmatpush1.msra.mxu0 0.0
        %2909 = vmatprep.subr.mxu0 0.0
        %2910 = vmatpush1.msra.mxu0 0.0
        %2911 = vmatprep.subr.mxu0 0.0
        %2912 = vmatpush1.msra.mxu0 0.0
        %2913 = vmatprep.subr.mxu0 0.0
        %2914 = vmatpush1.msra.mxu0 0.0
        %2915 = vmatprep.subr.mxu0 0.0
        %2916 = vmatpush1.msra.mxu0 0.0
        %2917 = vmatprep.subr.mxu0 0.0
        %2918 = vmatpush1.msra.mxu0 0.0
        %2919 = vmatprep.subr.mxu0 0.0
        %2920 = vmatpush1.msra.mxu0 0.0
        %2921 = vmatprep.subr.mxu0 0.0
        %2922 = vmatpush1.msra.mxu0 0.0
        %2923 = vmatprep.subr.mxu0 0.0
        %2924 = vmatpush1.msra.mxu0 0.0
        %2925 = vmatprep.subr.mxu0 0.0
        %2926 = vmatpush1.msra.mxu0 0.0
        %2927 = vmatprep.subr.mxu0 0.0
        %2928 = vmatpush1.msra.mxu0 0.0
        %2929 = vmatprep.subr.mxu0 0.0
        %2930 = vmatpush1.msra.mxu0 0.0
        %2931 = vmatprep.subr.mxu0 0.0
        %2932 = vmatpush1.msra.mxu0 0.0
        %2933 = vmatprep.subr.mxu0 0.0
        %2934 = vmatpush1.msra.mxu0 0.0
        %2935 = vmatprep.subr.mxu0 0.0
        %2936 = vmatpush1.msra.mxu0 0.0
        %2937 = vmatprep.subr.mxu0 0.0
        %2938 = vmatpush1.msra.mxu0 0.0
        %2939 = vmatprep.subr.mxu0 0.0
        %2940 = vmatpush1.msra.mxu0 0.0
        %2941 = vmatprep.subr.mxu0 0.0
        %2942 = vmatpush1.msra.mxu0 0.0
        %2943 = vmatprep.subr.mxu0 0.0
        %2944 = vmatpush1.msra.mxu0 0.0
        %2945 = vmatprep.subr.mxu0 0.0
        %2946 = vmatpush1.msra.mxu0 0.0
        %2947 = vmatprep.subr.mxu0 0.0
        %2948 = vmatpush1.msra.mxu0 0.0
        %2949 = vmatprep.subr.mxu0 0.0
        %2950 = vmatpush1.msra.mxu0 0.0
        %2951 = vmatprep.subr.mxu0 0.0
        %2952 = vmatpush1.msra.mxu0 0.0
        %2953 = vmatprep.subr.mxu0 0.0
        %2954 = vmatpush1.msra.mxu0 0.0
        %2955 = vmatprep.subr.mxu0 0.0
        %2956 = vmatpush1.msra.mxu0 0.0
        %2957 = vmatprep.subr.mxu0 0.0
        %2958 = vmatpush1.msra.mxu0 0.0
        %2959 = vmatprep.subr.mxu0 0.0
        %2960 = vmatpush1.msra.mxu0 0.0
        %2961 = vmatprep.subr.mxu0 0.0
        %2962 = vmatpush1.msra.mxu0 0.0
        %2963 = vmatprep.subr.mxu0 0.0
        %2964 = vmatpush1.msra.mxu0 0.0
        %2965 = vmatprep.subr.mxu0 0.0
        %2966 = vmatpush1.msra.mxu0 0.0
        %2967 = vmatprep.mubr.f32.mxu0 0.0
        %2968 = vmatmul.mubr.f32.gmra.mrb[0].mxu0 %v2750
        %v2969 = vpop.f32.mrb[0].mxu0
        %v2970 = vadd.f32 0.0, %v2969
        %v2971 = vpop.f32.mrb[0].mxu0
        %2972 = vmatprep.mubr.f32.mxu0 0.0
        %2973 = vmatmul.mubr.f32.gmra.mrb[0].mxu0 %v2753
        %v2974 = vpop.f32.mrb[0].mxu0
        %v2975 = vadd.f32 0.0, %v2974
        %v2976 = vpop.f32.mrb[0].mxu0
        %2977 = vmatprep.mubr.f32.mxu0 0.0
        %2978 = vmatmul.mubr.f32.gmra.mrb[0].mxu0 %v2756
        %v2979 = vpop.f32.mrb[0].mxu0
        %v2980 = vadd.f32 0.0, %v2979
        %v2981 = vpop.f32.mrb[0].mxu0
        %2982 = vmatprep.mubr.f32.mxu0 0.0
        %2983 = vmatmul.mubr.f32.gmra.mrb[0].mxu0 %v2759
        %v2984 = vpop.f32.mrb[0].mxu0
        %v2985 = vadd.f32 0.0, %v2984
        %v2986 = vpop.f32.mrb[0].mxu0
        %2987 = vmatprep.mubr.f32.mxu0 0.0
        %2988 = vmatmul.mubr.f32.gmra.mrb[0].mxu0 %v2762
        %v2989 = vpop.f32.mrb[0].mxu0
        %v2990 = vadd.f32 0.0, %v2989
        %v2991 = vpop.f32.mrb[0].mxu0
        %2992 = vmatprep.mubr.f32.mxu0 0.0
        %2993 = vmatmul.mubr.f32.gmra.mrb[0].mxu0 %v2765
        %v2994 = vpop.f32.mrb[0].mxu0
        %v2995 = vadd.f32 0.0, %v2994
        %v2996 = vpop.f32.mrb[0].mxu0
        %2997 = vmatprep.mubr.f32.mxu0 0.0
        %2998 = vmatmul.mubr.f32.gmra.mrb[0].mxu0 %v2768
        %v2999 = vpop.f32.mrb[0].mxu0
        %v3000 = vadd.f32 0.0, %v2999
        %v3001 = vpop.f32.mrb[0].mxu0
        %3002 = vmatprep.mubr.f32.mxu0 0.0
        %3003 = vmatmul.mubr.f32.gmra.mrb[0].mxu0 %v2771
        %v3004 = vpop.f32.mrb[0].mxu0
        %v3005 = vadd.f32 0.0, %v3004
        %v3006 = vpop.f32.mrb[0].mxu0
        %3007 = vmatprep.mubr.f32.mxu0 0.0
        %3008 = vmatmul.mubr.f32.gmra.mrb[0].mxu0 %v2774
        %v3009 = vpop.f32.mrb[0].mxu0
        %v3010 = vadd.f32 0.0, %v3009
        %v3011 = vpop.f32.mrb[0].mxu0
        %3012 = vmatprep.mubr.f32.mxu0 0.0
        %3013 = vmatmul.mubr.f32.gmra.mrb[0].mxu0 %v2777
        %v3014 = vpop.f32.mrb[0].mxu0
        %v3015 = vadd.f32 0.0, %v3014
        %v3016 = vpop.f32.mrb[0].mxu0
        %3017 = vdwg.mxu0
        %v3018 = vmax.f32 %v2850, %v2970
        %v3019 = vmax.f32 %v2855, %v2975
        %v3020 = vmax.f32 %v2860, %v2980
        %v3021 = vmax.f32 %v2865, %v2985
        %v3022 = vmax.f32 %v2870, %v2990
        %v3023 = vmax.f32 %v2875, %v2995
        %v3024 = vmax.f32 %v2880, %v3000
        %v3025 = vmax.f32 %v2885, %v3005
        %v3026 = vmax.f32 %v2890, %v3010
        %v3027 = vmax.f32 %v2895, %v3015
        %v3028 = vld [vmem:[%s11] sm:$0xff]
        %v3029 = vld [vmem:[%s11 + $0x8] sm:$0xff]
        %v3030 = vld [vmem:[%s11 + $0x10] sm:$0xff]
        %v3031 = vld [vmem:[%s11 + $0x18] sm:$0xff]
        %v3032 = vld [vmem:[%s11 + $0x20] sm:$0xff]
        %v3033 = vld [vmem:[%s11 + $0x28] sm:$0xff]
        %v3034 = vld [vmem:[%s11 + $0x30] sm:$0xff]
        %v3035 = vld [vmem:[%s11 + $0x38] sm:$0xff]
        %v3036 = vld [vmem:[%s11 + $0x40] sm:$0xff]
        %v3037 = vld [vmem:[%s11 + $0x48] sm:$0xff]
        %3039 = vset.pattern.permute.xlu0 0
        %3040 = vperm.xlu0 %3039, %v3018
        %v3041 = vpop.permute.xlu0 %3040
        %3044 = vset.pattern.permute.xlu0 0
        %3045 = vperm.xlu0 %3044, %v3019
        %v3046 = vpop.permute.xlu0 %3045
        %3049 = vset.pattern.permute.xlu0 0
        %3050 = vperm.xlu0 %3049, %v3020
        %v3051 = vpop.permute.xlu0 %3050
        %3054 = vset.pattern.permute.xlu0 0
        %3055 = vperm.xlu0 %3054, %v3021
        %v3056 = vpop.permute.xlu0 %3055
        %3059 = vset.pattern.permute.xlu0 0
        %3060 = vperm.xlu0 %3059, %v3022
        %v3061 = vpop.permute.xlu0 %3060
        %3064 = vset.pattern.permute.xlu0 0
        %3065 = vperm.xlu0 %3064, %v3023
        %v3066 = vpop.permute.xlu0 %3065
        %3069 = vset.pattern.permute.xlu0 0
        %3070 = vperm.xlu0 %3069, %v3024
        %v3071 = vpop.permute.xlu0 %3070
        %3074 = vset.pattern.permute.xlu0 0
        %3075 = vperm.xlu0 %3074, %v3025
        %v3076 = vpop.permute.xlu0 %3075
        %3079 = vset.pattern.permute.xlu0 0
        %3080 = vperm.xlu0 %3079, %v3026
        %v3081 = vpop.permute.xlu0 %3080
        %3084 = vset.pattern.permute.xlu0 0
        %3085 = vperm.xlu0 %3084, %v3027
        %v3086 = vpop.permute.xlu0 %3085
        %v3088 = vmul.f32 %v3041, %v3028
        %v3089 = vmul.f32 %v3046, %v3029
        %v3090 = vmul.f32 %v3051, %v3030
        %v3091 = vmul.f32 %v3056, %v3031
        %v3092 = vmul.f32 %v3061, %v3032
        %v3093 = vmul.f32 %v3066, %v3033
        %v3094 = vmul.f32 %v3071, %v3034
        %v3095 = vmul.f32 %v3076, %v3035
        %v3096 = vmul.f32 %v3081, %v3036
        %v3097 = vmul.f32 %v3086, %v3037
        %v3098 = vadd.f32 %v3088, 0.0
        %v3099 = vadd.f32 %v3089, 0.0
        %v3100 = vadd.f32 %v3090, 0.0
        %v3101 = vadd.f32 %v3091, 0.0
        %v3102 = vadd.f32 %v3092, 0.0
        %v3103 = vadd.f32 %v3093, 0.0
        %v3104 = vadd.f32 %v3094, 0.0
        %v3105 = vadd.f32 %v3095, 0.0
        %v3106 = vadd.f32 %v3096, 0.0
        %v3107 = vadd.f32 %v3097, 0.0
        %s3108 = scalar_lea.vmem %s11, 80
        %v3109 = vld [vmem:[%s3108] sm:$0xff]
        %v3110 = vld [vmem:[%s3108 + $0x8] sm:$0xff]
        %v3111 = vld [vmem:[%s3108 + $0x10] sm:$0xff]
        %v3112 = vld [vmem:[%s3108 + $0x18] sm:$0xff]
        %v3113 = vld [vmem:[%s3108 + $0x20] sm:$0xff]
        %v3114 = vld [vmem:[%s3108 + $0x28] sm:$0xff]
        %v3115 = vld [vmem:[%s3108 + $0x30] sm:$0xff]
        %v3116 = vld [vmem:[%s3108 + $0x38] sm:$0xff]
        %v3117 = vld [vmem:[%s3108 + $0x40] sm:$0xff]
        %v3118 = vld [vmem:[%s3108 + $0x48] sm:$0xff]
        %3119 = vset.pattern.permute.xlu0 1
        %3120 = vperm.xlu0 %3119, %v3018
        %v3121 = vpop.permute.xlu0 %3120
        %3123 = vset.pattern.permute.xlu0 1
        %3124 = vperm.xlu0 %3123, %v3019
        %v3125 = vpop.permute.xlu0 %3124
        %3127 = vset.pattern.permute.xlu0 1
        %3128 = vperm.xlu0 %3127, %v3020
        %v3129 = vpop.permute.xlu0 %3128
        %3131 = vset.pattern.permute.xlu0 1
        %3132 = vperm.xlu0 %3131, %v3021
        %v3133 = vpop.permute.xlu0 %3132
        %3135 = vset.pattern.permute.xlu0 1
        %3136 = vperm.xlu0 %3135, %v3022
        %v3137 = vpop.permute.xlu0 %3136
        %3139 = vset.pattern.permute.xlu0 1
        %3140 = vperm.xlu0 %3139, %v3023
        %v3141 = vpop.permute.xlu0 %3140
        %3143 = vset.pattern.permute.xlu0 1
        %3144 = vperm.xlu0 %3143, %v3024
        %v3145 = vpop.permute.xlu0 %3144
        %3147 = vset.pattern.permute.xlu0 1
        %3148 = vperm.xlu0 %3147, %v3025
        %v3149 = vpop.permute.xlu0 %3148
        %3151 = vset.pattern.permute.xlu0 1
        %3152 = vperm.xlu0 %3151, %v3026
        %v3153 = vpop.permute.xlu0 %3152
        %3155 = vset.pattern.permute.xlu0 1
        %3156 = vperm.xlu0 %3155, %v3027
        %v3157 = vpop.permute.xlu0 %3156
        %v3159 = vmul.f32 %v3121, %v3109
        %v3160 = vmul.f32 %v3125, %v3110
        %v3161 = vmul.f32 %v3129, %v3111
        %v3162 = vmul.f32 %v3133, %v3112
        %v3163 = vmul.f32 %v3137, %v3113
        %v3164 = vmul.f32 %v3141, %v3114
        %v3165 = vmul.f32 %v3145, %v3115
        %v3166 = vmul.f32 %v3149, %v3116
        %v3167 = vmul.f32 %v3153, %v3117
        %v3168 = vmul.f32 %v3157, %v3118
        %v3169 = vadd.f32 %v3098, %v3159
        %v3170 = vadd.f32 %v3099, %v3160
        %v3171 = vadd.f32 %v3100, %v3161
        %v3172 = vadd.f32 %v3101, %v3162
        %v3173 = vadd.f32 %v3102, %v3163
        %v3174 = vadd.f32 %v3103, %v3164
        %v3175 = vadd.f32 %v3104, %v3165
        %v3176 = vadd.f32 %v3105, %v3166
        %v3177 = vadd.f32 %v3106, %v3167
        %v3178 = vadd.f32 %v3107, %v3168
        %s3179 = scalar_lea.vmem %s11, 160
        %v3180 = vld [vmem:[%s3179] sm:$0xff]
        %v3181 = vld [vmem:[%s3179 + $0x8] sm:$0xff]
        %v3182 = vld [vmem:[%s3179 + $0x10] sm:$0xff]
        %v3183 = vld [vmem:[%s3179 + $0x18] sm:$0xff]
        %v3184 = vld [vmem:[%s3179 + $0x20] sm:$0xff]
        %v3185 = vld [vmem:[%s3179 + $0x28] sm:$0xff]
        %v3186 = vld [vmem:[%s3179 + $0x30] sm:$0xff]
        %v3187 = vld [vmem:[%s3179 + $0x38] sm:$0xff]
        %v3188 = vld [vmem:[%s3179 + $0x40] sm:$0xff]
        %v3189 = vld [vmem:[%s3179 + $0x48] sm:$0xff]
        %3190 = vset.pattern.permute.xlu0 2
        %3191 = vperm.xlu0 %3190, %v3018
        %v3192 = vpop.permute.xlu0 %3191
        %3194 = vset.pattern.permute.xlu0 2
        %3195 = vperm.xlu0 %3194, %v3019
        %v3196 = vpop.permute.xlu0 %3195
        %3198 = vset.pattern.permute.xlu0 2
        %3199 = vperm.xlu0 %3198, %v3020
        %v3200 = vpop.permute.xlu0 %3199
        %3202 = vset.pattern.permute.xlu0 2
        %3203 = vperm.xlu0 %3202, %v3021
        %v3204 = vpop.permute.xlu0 %3203
        %3206 = vset.pattern.permute.xlu0 2
        %3207 = vperm.xlu0 %3206, %v3022
        %v3208 = vpop.permute.xlu0 %3207
        %3210 = vset.pattern.permute.xlu0 2
        %3211 = vperm.xlu0 %3210, %v3023
        %v3212 = vpop.permute.xlu0 %3211
        %3214 = vset.pattern.permute.xlu0 2
        %3215 = vperm.xlu0 %3214, %v3024
        %v3216 = vpop.permute.xlu0 %3215
        %3218 = vset.pattern.permute.xlu0 2
        %3219 = vperm.xlu0 %3218, %v3025
        %v3220 = vpop.permute.xlu0 %3219
        %3222 = vset.pattern.permute.xlu0 2
        %3223 = vperm.xlu0 %3222, %v3026
        %v3224 = vpop.permute.xlu0 %3223
        %3226 = vset.pattern.permute.xlu0 2
        %3227 = vperm.xlu0 %3226, %v3027
        %v3228 = vpop.permute.xlu0 %3227
        %v3230 = vmul.f32 %v3192, %v3180
        %v3231 = vmul.f32 %v3196, %v3181
        %v3232 = vmul.f32 %v3200, %v3182
        %v3233 = vmul.f32 %v3204, %v3183
        %v3234 = vmul.f32 %v3208, %v3184
        %v3235 = vmul.f32 %v3212, %v3185
        %v3236 = vmul.f32 %v3216, %v3186
        %v3237 = vmul.f32 %v3220, %v3187
        %v3238 = vmul.f32 %v3224, %v3188
        %v3239 = vmul.f32 %v3228, %v3189
        %v3240 = vadd.f32 %v3169, %v3230
        %v3241 = vadd.f32 %v3170, %v3231
        %v3242 = vadd.f32 %v3171, %v3232
        %v3243 = vadd.f32 %v3172, %v3233
        %v3244 = vadd.f32 %v3173, %v3234
        %v3245 = vadd.f32 %v3174, %v3235
        %v3246 = vadd.f32 %v3175, %v3236
        %v3247 = vadd.f32 %v3176, %v3237
        %v3248 = vadd.f32 %v3177, %v3238
        %v3249 = vadd.f32 %v3178, %v3239
        %s3250 = scalar_lea.vmem %s11, 240
        %v3251 = vld [vmem:[%s3250] sm:$0xff]
        %v3252 = vld [vmem:[%s3250 + $0x8] sm:$0xff]
        %v3253 = vld [vmem:[%s3250 + $0x10] sm:$0xff]
        %v3254 = vld [vmem:[%s3250 + $0x18] sm:$0xff]
        %v3255 = vld [vmem:[%s3250 + $0x20] sm:$0xff]
        %v3256 = vld [vmem:[%s3250 + $0x28] sm:$0xff]
        %v3257 = vld [vmem:[%s3250 + $0x30] sm:$0xff]
        %v3258 = vld [vmem:[%s3250 + $0x38] sm:$0xff]
        %v3259 = vld [vmem:[%s3250 + $0x40] sm:$0xff]
        %v3260 = vld [vmem:[%s3250 + $0x48] sm:$0xff]
        %3261 = vset.pattern.permute.xlu0 3
        %3262 = vperm.xlu0 %3261, %v3018
        %v3263 = vpop.permute.xlu0 %3262
        %3265 = vset.pattern.permute.xlu0 3
        %3266 = vperm.xlu0 %3265, %v3019
        %v3267 = vpop.permute.xlu0 %3266
        %3269 = vset.pattern.permute.xlu0 3
        %3270 = vperm.xlu0 %3269, %v3020
        %v3271 = vpop.permute.xlu0 %3270
        %3273 = vset.pattern.permute.xlu0 3
        %3274 = vperm.xlu0 %3273, %v3021
        %v3275 = vpop.permute.xlu0 %3274
        %3277 = vset.pattern.permute.xlu0 3
        %3278 = vperm.xlu0 %3277, %v3022
        %v3279 = vpop.permute.xlu0 %3278
        %3281 = vset.pattern.permute.xlu0 3
        %3282 = vperm.xlu0 %3281, %v3023
        %v3283 = vpop.permute.xlu0 %3282
        %3285 = vset.pattern.permute.xlu0 3
        %3286 = vperm.xlu0 %3285, %v3024
        %v3287 = vpop.permute.xlu0 %3286
        %3289 = vset.pattern.permute.xlu0 3
        %3290 = vperm.xlu0 %3289, %v3025
        %v3291 = vpop.permute.xlu0 %3290
        %3293 = vset.pattern.permute.xlu0 3
        %3294 = vperm.xlu0 %3293, %v3026
        %v3295 = vpop.permute.xlu0 %3294
        %3297 = vset.pattern.permute.xlu0 3
        %3298 = vperm.xlu0 %3297, %v3027
        %v3299 = vpop.permute.xlu0 %3298
        %v3301 = vmul.f32 %v3263, %v3251
        %v3302 = vmul.f32 %v3267, %v3252
        %v3303 = vmul.f32 %v3271, %v3253
        %v3304 = vmul.f32 %v3275, %v3254
        %v3305 = vmul.f32 %v3279, %v3255
        %v3306 = vmul.f32 %v3283, %v3256
        %v3307 = vmul.f32 %v3287, %v3257
        %v3308 = vmul.f32 %v3291, %v3258
        %v3309 = vmul.f32 %v3295, %v3259
        %v3310 = vmul.f32 %v3299, %v3260
        %v3311 = vadd.f32 %v3240, %v3301
        %v3312 = vadd.f32 %v3241, %v3302
        %v3313 = vadd.f32 %v3242, %v3303
        %v3314 = vadd.f32 %v3243, %v3304
        %v3315 = vadd.f32 %v3244, %v3305
        %v3316 = vadd.f32 %v3245, %v3306
        %v3317 = vadd.f32 %v3246, %v3307
        %v3318 = vadd.f32 %v3247, %v3308
        %v3319 = vadd.f32 %v3248, %v3309
        %v3320 = vadd.f32 %v3249, %v3310
        %s3321 = scalar_lea.vmem %s11, 320
        %v3322 = vld [vmem:[%s3321] sm:$0xff]
        %v3323 = vld [vmem:[%s3321 + $0x8] sm:$0xff]
        %v3324 = vld [vmem:[%s3321 + $0x10] sm:$0xff]
        %v3325 = vld [vmem:[%s3321 + $0x18] sm:$0xff]
        %v3326 = vld [vmem:[%s3321 + $0x20] sm:$0xff]
        %v3327 = vld [vmem:[%s3321 + $0x28] sm:$0xff]
        %v3328 = vld [vmem:[%s3321 + $0x30] sm:$0xff]
        %v3329 = vld [vmem:[%s3321 + $0x38] sm:$0xff]
        %v3330 = vld [vmem:[%s3321 + $0x40] sm:$0xff]
        %v3331 = vld [vmem:[%s3321 + $0x48] sm:$0xff]
        %3332 = vset.pattern.permute.xlu0 4
        %3333 = vperm.xlu0 %3332, %v3018
        %v3334 = vpop.permute.xlu0 %3333
        %3336 = vset.pattern.permute.xlu0 4
        %3337 = vperm.xlu0 %3336, %v3019
        %v3338 = vpop.permute.xlu0 %3337
        %3340 = vset.pattern.permute.xlu0 4
        %3341 = vperm.xlu0 %3340, %v3020
        %v3342 = vpop.permute.xlu0 %3341
        %3344 = vset.pattern.permute.xlu0 4
        %3345 = vperm.xlu0 %3344, %v3021
        %v3346 = vpop.permute.xlu0 %3345
        %3348 = vset.pattern.permute.xlu0 4
        %3349 = vperm.xlu0 %3348, %v3022
        %v3350 = vpop.permute.xlu0 %3349
        %3352 = vset.pattern.permute.xlu0 4
        %3353 = vperm.xlu0 %3352, %v3023
        %v3354 = vpop.permute.xlu0 %3353
        %3356 = vset.pattern.permute.xlu0 4
        %3357 = vperm.xlu0 %3356, %v3024
        %v3358 = vpop.permute.xlu0 %3357
        %3360 = vset.pattern.permute.xlu0 4
        %3361 = vperm.xlu0 %3360, %v3025
        %v3362 = vpop.permute.xlu0 %3361
        %3364 = vset.pattern.permute.xlu0 4
        %3365 = vperm.xlu0 %3364, %v3026
        %v3366 = vpop.permute.xlu0 %3365
        %3368 = vset.pattern.permute.xlu0 4
        %3369 = vperm.xlu0 %3368, %v3027
        %v3370 = vpop.permute.xlu0 %3369
        %v3372 = vmul.f32 %v3334, %v3322
        %v3373 = vmul.f32 %v3338, %v3323
        %v3374 = vmul.f32 %v3342, %v3324
        %v3375 = vmul.f32 %v3346, %v3325
        %v3376 = vmul.f32 %v3350, %v3326
        %v3377 = vmul.f32 %v3354, %v3327
        %v3378 = vmul.f32 %v3358, %v3328
        %v3379 = vmul.f32 %v3362, %v3329
        %v3380 = vmul.f32 %v3366, %v3330
        %v3381 = vmul.f32 %v3370, %v3331
        %v3382 = vadd.f32 %v3311, %v3372
        %v3383 = vadd.f32 %v3312, %v3373
        %v3384 = vadd.f32 %v3313, %v3374
        %v3385 = vadd.f32 %v3314, %v3375
        %v3386 = vadd.f32 %v3315, %v3376
        %v3387 = vadd.f32 %v3316, %v3377
        %v3388 = vadd.f32 %v3317, %v3378
        %v3389 = vadd.f32 %v3318, %v3379
        %v3390 = vadd.f32 %v3319, %v3380
        %v3391 = vadd.f32 %v3320, %v3381
        %vm3392 = vcmask 982016
        %v3393 = vsel %vm3392, %v3382, 0.0
        %v3394 = vsel %vm3392, %v3383, 0.0
        %v3395 = vadd.f32 %v3393, %v3394
        %v3396 = vsel %vm3392, %v3384, 0.0
        %v3397 = vadd.f32 %v3395, %v3396
        %v3398 = vsel %vm3392, %v3385, 0.0
        %v3399 = vadd.f32 %v3397, %v3398
        %v3400 = vsel %vm3392, %v3386, 0.0
        %v3401 = vadd.f32 %v3399, %v3400
        %v3402 = vsel %vm3392, %v3387, 0.0
        %v3403 = vadd.f32 %v3401, %v3402
        %v3404 = vsel %vm3392, %v3388, 0.0
        %v3405 = vadd.f32 %v3403, %v3404
        %v3406 = vsel %vm3392, %v3389, 0.0
        %v3407 = vadd.f32 %v3405, %v3406
        %v3408 = vsel %vm3392, %v3390, 0.0
        %v3409 = vadd.f32 %v3407, %v3408
        %v3410 = vsel %vm3392, %v3391, 0.0
        %v3411 = vadd.f32 %v3409, %v3410
        %v3412 = vrot.slane %v3411, 4
        %v3413 = vadd.f32 %v3411, %v3412
        %v3414 = vrot.slane %v3413, 2
        %v3415 = vadd.f32 %v3413, %v3414
        %v3416 = vrot.slane %v3415, 1
        %v3417 = vadd.f32 %v3415, %v3416
        %v3418 = vld [vmem:[%s12] sm:$0x1]
        %v3419 = vadd.f32 %v3417, %v3418
        %v3420 = vmax.f32 %v3419, 0.0
        %v3421 = vpack.c.bf16 %v3420, %v3420
        %v3422 = vld [vmem:[%s13] sm:$0xf]
        %v3423 = vld [vmem:[%s13 + $0x4] sm:$0xf]
        %v3424 = vld [vmem:[%s13 + $0x8] sm:$0xf]
        %v3425 = vld [vmem:[%s13 + $0xc] sm:$0xf]
        %v3426 = vld [vmem:[%s13 + $0x10] sm:$0xf]
        %v3427 = vld [vmem:[%s13 + $0x14] sm:$0xf]
        %v3428 = vld [vmem:[%s13 + $0x18] sm:$0xf]
        %v3429 = vld [vmem:[%s13 + $0x1c] sm:$0xf]
        %v3430 = vld [vmem:[%s13 + $0x20] sm:$0xf]
        %v3431 = vld [vmem:[%s13 + $0x24] sm:$0xf]
        %v3432 = vld [vmem:[%s13 + $0x28] sm:$0xf]
        %v3433 = vld [vmem:[%s13 + $0x2c] sm:$0xf]
        %v3434 = vld [vmem:[%s13 + $0x30] sm:$0xf]
        %v3435 = vld [vmem:[%s13 + $0x34] sm:$0xf]
        %v3436 = vld [vmem:[%s13 + $0x38] sm:$0xf]
        %v3437 = vld [vmem:[%s14] sm:$0x1]
        %v3453 = vunpack.c.l.b16 %v3422
        %v3454 = vunpack.c.l.b16 %v3423
        %v3455 = vunpack.c.l.b16 %v3424
        %v3456 = vunpack.c.l.b16 %v3425
        %v3457 = vunpack.c.l.b16 %v3426
        %v3458 = vunpack.c.l.b16 %v3427
        %v3459 = vunpack.c.l.b16 %v3428
        %v3460 = vunpack.c.l.b16 %v3429
        %v3461 = vunpack.c.l.b16 %v3430
        %v3462 = vunpack.c.l.b16 %v3431
        %v3463 = vunpack.c.l.b16 %v3432
        %v3464 = vunpack.c.l.b16 %v3433
        %v3465 = vunpack.c.l.b16 %v3434
        %v3466 = vunpack.c.l.b16 %v3435
        %v3467 = vunpack.c.l.b16 %v3436
        %v3468 = vpack.c.b16 %v3454, %v3453
        %v3469 = vpack.c.b16 %v3456, %v3455
        %v3470 = vpack.c.b16 %v3458, %v3457
        %v3471 = vpack.c.b16 %v3460, %v3459
        %v3472 = vpack.c.b16 %v3462, %v3461
        %v3473 = vpack.c.b16 %v3464, %v3463
        %v3474 = vpack.c.b16 %v3466, %v3465
        %v3475 = vpack.c.b16 %v3467, %v3467
        %v3484 = vsel %vm3392, %v3421, 0
        %v3487 = vsel %vm1645, %v3475, 0
        %3489 = vmatprep.subr.bf16.mxu0 0
        %3490 = vmatpush1.bf16.msra.mxu0 %v3468
        %3491 = vmatprep.subr.bf16.mxu0 0
        %3492 = vmatpush1.bf16.msra.mxu0 %v3469
        %3493 = vmatprep.subr.bf16.mxu0 0
        %3494 = vmatpush1.bf16.msra.mxu0 %v3470
        %3495 = vmatprep.subr.bf16.mxu0 0
        %3496 = vmatpush1.bf16.msra.mxu0 %v3471
        %3497 = vmatprep.subr.bf16.mxu0 0
        %3498 = vmatpush1.bf16.msra.mxu0 %v3472
        %3499 = vmatprep.subr.bf16.mxu0 0
        %3500 = vmatpush1.bf16.msra.mxu0 %v3473
        %3501 = vmatprep.subr.bf16.mxu0 0
        %3502 = vmatpush1.bf16.msra.mxu0 %v3474
        %3503 = vmatprep.subr.bf16.mxu0 0
        %3504 = vmatpush1.bf16.msra.mxu0 %v3487
        %3505 = vmatprep.subr.bf16.mxu0 0
        %3506 = vmatpush1.bf16.msra.mxu0 0
        %3507 = vmatprep.subr.bf16.mxu0 0
        %3508 = vmatpush1.bf16.msra.mxu0 0
        %3509 = vmatprep.subr.bf16.mxu0 0
        %3510 = vmatpush1.bf16.msra.mxu0 0
        %3511 = vmatprep.subr.bf16.mxu0 0
        %3512 = vmatpush1.bf16.msra.mxu0 0
        %3513 = vmatprep.subr.bf16.mxu0 0
        %3514 = vmatpush1.bf16.msra.mxu0 0
        %3515 = vmatprep.subr.bf16.mxu0 0
        %3516 = vmatpush1.bf16.msra.mxu0 0
        %3517 = vmatprep.subr.bf16.mxu0 0
        %3518 = vmatpush1.bf16.msra.mxu0 0
        %3519 = vmatprep.subr.bf16.mxu0 0
        %3520 = vmatpush1.bf16.msra.mxu0 0
        %3521 = vmatprep.mubr.bf16.mxu0 0
        %3522 = vmatmul.mubr.bf16.gmra.mrb[0].mxu0 %v3484
        %v3523 = vpop.f32.mrb[0].mxu0
        %v3524 = vadd.f32 %v3437, %v3523
        %v3525 = vpop.f32.mrb[0].mxu0
        %v3526 = vpop.f32.mrb[0].mxu0
        %v3527 = vpop.f32.mrb[0].mxu0
        %3528 = vdwg.mxu0
        %v3529 = vmax.f32 %v3524, 0.0
        %vm3530 = vcmask 679936
        %3531 = vst.msk [vmem:[%s659] sm:$0x1] %vm3530, %v3529
        %v3532 = vpack.c.bf16 %v3529, %v3529
        %v3533 = vld [vmem:[%s15] sm:$0xf]
        %v3534 = vld [vmem:[%s15 + $0x4] sm:$0xf]
        %v3535 = vld [vmem:[%s15 + $0x8] sm:$0xf]
        %v3536 = vld [vmem:[%s15 + $0xc] sm:$0xf]
        %v3537 = vld [vmem:[%s15 + $0x10] sm:$0xf]
        %v3538 = vld [vmem:[%s15 + $0x14] sm:$0xf]
        %v3539 = vld [vmem:[%s15 + $0x18] sm:$0xf]
        %v3540 = vld [vmem:[%s15 + $0x1c] sm:$0xf]
        %v3541 = vld [vmem:[%s15 + $0x20] sm:$0xf]
        %v3542 = vld [vmem:[%s15 + $0x24] sm:$0xf]
        %v3543 = vld [vmem:[%s15 + $0x28] sm:$0x3]
        %v3544 = vld [vmem:[%s16] sm:$0x1]
        %v3556 = vunpack.c.l.b16 %v3533
        %v3557 = vunpack.c.l.b16 %v3534
        %v3558 = vunpack.c.l.b16 %v3535
        %v3559 = vunpack.c.l.b16 %v3536
        %v3560 = vunpack.c.l.b16 %v3537
        %v3561 = vunpack.c.l.b16 %v3538
        %v3562 = vunpack.c.l.b16 %v3539
        %v3563 = vunpack.c.l.b16 %v3540
        %v3564 = vunpack.c.l.b16 %v3541
        %v3565 = vunpack.c.l.b16 %v3542
        %v3566 = vunpack.c.l.b16 %v3543
        %v3567 = vpack.c.b16 %v3557, %v3556
        %v3568 = vpack.c.b16 %v3559, %v3558
        %v3569 = vpack.c.b16 %v3561, %v3560
        %v3570 = vpack.c.b16 %v3563, %v3562
        %v3571 = vpack.c.b16 %v3565, %v3564
        %v3572 = vpack.c.b16 %v3566, %v3566
        %vm3578 = vcmask 687104
        %v3580 = vsel %vm3578, %v3532, 0
        %v3583 = vsel %vm2779, %v3572, 0
        %3585 = vmatprep.subr.bf16.mxu0 0
        %3586 = vmatpush1.bf16.msra.mxu0 %v3567
        %3587 = vmatprep.subr.bf16.mxu0 0
        %3588 = vmatpush1.bf16.msra.mxu0 %v3568
        %3589 = vmatprep.subr.bf16.mxu0 0
        %3590 = vmatpush1.bf16.msra.mxu0 %v3569
        %3591 = vmatprep.subr.bf16.mxu0 0
        %3592 = vmatpush1.bf16.msra.mxu0 %v3570
        %3593 = vmatprep.subr.bf16.mxu0 0
        %3594 = vmatpush1.bf16.msra.mxu0 %v3571
        %3595 = vmatprep.subr.bf16.mxu0 0
        %3596 = vmatpush1.bf16.msra.mxu0 %v3583
        %3597 = vmatprep.subr.bf16.mxu0 0
        %3598 = vmatpush1.bf16.msra.mxu0 0
        %3599 = vmatprep.subr.bf16.mxu0 0
        %3600 = vmatpush1.bf16.msra.mxu0 0
        %3601 = vmatprep.subr.bf16.mxu0 0
        %3602 = vmatpush1.bf16.msra.mxu0 0
        %3603 = vmatprep.subr.bf16.mxu0 0
        %3604 = vmatpush1.bf16.msra.mxu0 0
        %3605 = vmatprep.subr.bf16.mxu0 0
        %3606 = vmatpush1.bf16.msra.mxu0 0
        %3607 = vmatprep.subr.bf16.mxu0 0
        %3608 = vmatpush1.bf16.msra.mxu0 0
        %3609 = vmatprep.subr.bf16.mxu0 0
        %3610 = vmatpush1.bf16.msra.mxu0 0
        %3611 = vmatprep.subr.bf16.mxu0 0
        %3612 = vmatpush1.bf16.msra.mxu0 0
        %3613 = vmatprep.subr.bf16.mxu0 0
        %3614 = vmatpush1.bf16.msra.mxu0 0
        %3615 = vmatprep.subr.bf16.mxu0 0
        %3616 = vmatpush1.bf16.msra.mxu0 0
        %3617 = vmatprep.mubr.bf16.mxu0 0
        %3618 = vmatmul.mubr.bf16.gmra.mrb[0].mxu0 %v3580
        %v3619 = vpop.f32.mrb[0].mxu0
        %v3620 = vadd.f32 %v3544, %v3619
        %v3621 = vpop.f32.mrb[0].mxu0
        %v3622 = vpop.f32.mrb[0].mxu0
        %v3623 = vpop.f32.mrb[0].mxu0
        %3624 = vdwg.mxu0
        %vm3625 = vcmask 73728
        %3626 = vst.msk [vmem:[%s656] sm:$0x1] %vm3625, %v3620
        %p3627 = scmp.lt.s32.totalorder %s38, 1
        %s3628 = scalar_select %p3627, %s38, 1
        %s3629 = scalar_lea.vmem %s17, %s3628
        %s3630 = sand.u32 %s434, 1
        %s3631 = scalar_lea.sflag [#allocation4], %s3630
        %s3632 = sand.u32 %s434, 1
        %s3633 = scalar_lea.vmem [#allocation11], %s3632
        // Predicated region
        $region109: #{forward.1} parent=87 // pred_check
          %p3634 = pneg %p418
        $region110: #{forward.1} parent=87 // pred_check_branch
          %3636 = sbr.rel (%p3634) target = $region112
        $region111: #{forward.1} parent=87 // pred_region
          _
        $region112: #{forward.1} parent=87 // pred_fallthru
          _
        // Predicated region
        $region113: #{forward.1} parent=87 // pred_check
          %p3637 = pneg %p444
        $region114: #{forward.1} parent=87 // pred_check_branch
          %3639 = sbr.rel (%p3637) target = $region116
        $region115: #{forward.1} parent=87 // pred_region
          %s3641 = ssub.s32 16, 16
          %3642 = vsyncadd %s3631, %s3641
          %s3643 = smul.addr %s38, 16
          %s3644 = scalar_lea.hbm %s18, %s3643
          %s3646 = sshll.u32 %s3633, 4
          %s3647 = int_to_ptr.vmem [resolvable:$true] %s3646
          %3649 = dma.vmem_to_hbm [thread:$0]  %s3647, 16, %s3644, %s3631
        $region116: #{forward.1} parent=87 // pred_fallthru
          _
      $region88: #{forward.1} parent=5 // pred_fallthru
        _
      %p3650 = scmp.le.s32.totalorder 2, %s33
      // Predicated region
      $region117: #{forward.1} parent=5 // pred_check
        %p3651 = pneg %p3650
      $region118: #{forward.1} parent=5 // pred_check_branch
        %3653 = sbr.rel (%p3651) target = $region120
      $region119: #{forward.1} parent=5 // pred_region
        %s3654 = ssub.s32 %s33, 2
        // Predicated region
        $region121: #{forward.1} parent=119 // pred_check
          %p3655 = pneg %p424
        $region122: #{forward.1} parent=119 // pred_check_branch
          %3657 = sbr.rel (%p3655) target = $region124
        $region123: #{forward.1} parent=119 // pred_region
          %p3658 = scmp.lt.s32.totalorder %s39, 1
          %s3659 = scalar_select %p3658, %s39, 1
          %s3660 = scalar_lea.vmem %s17, %s3659
        $region124: #{forward.1} parent=119 // pred_fallthru
          _
        // Predicated region
        $region125: #{forward.1} parent=119 // pred_check
          %p3661 = pneg %p450
        $region126: #{forward.1} parent=119 // pred_check_branch
          %3663 = sbr.rel (%p3661) target = $region128
        $region127: #{forward.1} parent=119 // pred_region
          %s3664 = sand.u32 %s435, 1
          %s3665 = scalar_lea.sflag [#allocation4], %s3664
          %s3666 = sand.u32 %s435, 1
          %s3667 = scalar_lea.vmem [#allocation11], %s3666
          %3668 = dma.done %s3665, 16
        $region128: #{forward.1} parent=119 // pred_fallthru
          _
      $region120: #{forward.1} parent=5 // pred_fallthru
        _
    $region6: #{forward.1} parent=1 // loop_footer
      %s37 = sadd.s32 1, %s33
    $region7: #{forward.1} parent=1 // loop_footer_branch
      %32 = sbr.rel target = $region3
    $region8: #{forward.1} parent=1 // loop_exit
      _
    %3669 = vsyncpa [#allocation3], 1
    %s3670 = scalar_lea.sflag [#allocation3], 1
    %3671 = vsyncpa %s3670, 1
    %3672 = vsyncpa [#allocation6], 1
    %3673 = vsyncpa [#allocation9], 1
    %3674 = vsyncpa [#allocation4], 1
    %s3675 = scalar_lea.sflag [#allocation4], 1
    %3676 = vsyncpa %s3675, 1

</llo_original>
